<compile_context>
chip_gen: v7x
topology: tpu7x:2x2x1
jax: 0.10.0
libtpu: 0.0.40
codegen_flags: <defaults>
</compile_context>

<pallas_src>
import jax
import jax.numpy as jnp
from jax import lax
from jax.experimental import pallas as pl
from jax.experimental.pallas import tpu as pltpu
import numpy as np

N_OUTPUT = 10
EPS = 1e-5
OUT_PAD = 128        # lane-dense output width (>= N_OUTPUT, sliced in wrapper)
MAX_B_TILE = 64      # keeps the f32 conv1 temp (~4.7 MB) small; plenty of MXU rows


def net_kernel(x_ref, w1_ref, w2_ref, t2_ref, wfc1_ref, bfc1_ref, wfc2_ref,
               bfc2_ref, out_ref):
    B = out_ref.shape[0]

    # ---- conv1 (1->32, k3) + folded BN1: one bf16 MXU dot --------------------
    # rows = (yi, yo, b); cols = (xi, xo, o): xi/yi pool-window idx, xo/yo pooled
    # position, o = conv1 channel.  K = 128 = 3*26 im2row cols + ones col + pad.
    c1 = jnp.dot(x_ref[...], w1_ref[...],
                 preferred_element_type=jnp.float32)           # (24B, 768) f32

    # ---- maxpool 3x3 / stride 3, then relu ------------------------------------
    # x-direction: the three 256-wide, 128-aligned lane groups (xi).
    p1 = jnp.maximum(jnp.maximum(c1[:, 0:256], c1[:, 256:512]), c1[:, 512:768])
    # y-direction: rows are (yi, yo, b) -> three aligned 8B-row chunks.
    p1 = jnp.maximum(jnp.maximum(p1[0:8 * B], p1[8 * B:16 * B]), p1[16 * B:24 * B])
    p1 = jnp.maximum(p1, 0.0)                                  # (8B, 256): rows (yo, b)

    # ---- conv2 (32->64, k3) + folded BN2 scale: one bf16 MXU dot, K=768 -------
    # dy2-im2row via 8-aligned row-range slices + lane concat (rows become (y2, b)).
    lhs2 = jnp.concatenate([p1[0:6 * B], p1[B:7 * B], p1[2 * B:8 * B]], axis=-1)
    c2 = jnp.dot(lhs2.astype(jnp.bfloat16), w2_ref[...],
                 preferred_element_type=jnp.float32)           # (6B, 512) f32
    # cols = (xi2, xp*64 + o2 [+ 64 dead lanes]) -> two aligned 256-lane groups.

    # ---- maxpool 2x2 / stride 2 (+ BN2 shift, commutes with max), relu, fc1 ---
    m = jnp.maximum(c2[:, 0:256], c2[:, 256:512])              # x-pool, (6B, 256)
    h = jnp.zeros((B, 256), jnp.float32)
    for yp in range(3):                                        # y-pool + fc1 contraction
        q = jnp.maximum(m[(2 * yp) * B:(2 * yp + 1) * B],
                        m[(2 * yp + 1) * B:(2 * yp + 2) * B])  # (B, 256): rows b
        q = jnp.maximum(q + t2_ref[...], 0.0)                  # BN2 shift + relu
        # dropout(0.25): identity in eval mode.
        h = h + jnp.dot(q.astype(jnp.bfloat16), wfc1_ref[yp],
                        preferred_element_type=jnp.float32)
    h = jnp.maximum(h + bfc1_ref[...], 0.0)                    # (B, 256); cols>=200 are 0
    # dropout(0.25): identity in eval mode.

    # ---- fc2 (200 -> n_output), lane-dense 128-wide output slab ---------------
    out_ref[...] = (jnp.dot(h.astype(jnp.bfloat16), wfc2_ref[...],
                            preferred_element_type=jnp.float32) + bfc2_ref[...])


def _round_up(x, m):
    return (x + m - 1) // m * m


def _prep_params(P):
    """Parameter-sized glue: BN folds, banded conv weights, fc re-indexing, bf16 casts."""
    f32, bf16 = jnp.float32, jnp.bfloat16

    # eval-mode BN folds (conv bias absorbed into the additive shift).
    s1 = P["g1"] / jnp.sqrt(P["v1"] + EPS)                     # (32,)
    t1 = P["be1"] + (P["b1"] - P["m1"]) * s1
    s2 = P["g2"] / jnp.sqrt(P["v2"] + EPS)                     # (64,)
    t2 = P["be2"] + (P["b2"] - P["m2"]) * s2

    # conv1 banded weight (128, 768): rows = dy*26 + xin (+ bias row 78),
    # cols = xi*256 + xo*32 + o, with BN1 scale folded in.
    sel1 = (np.arange(26)[:, None, None, None] ==
            (3 * np.arange(8))[None, :, None, None]
            + np.arange(3)[None, None, :, None]
            + np.arange(3)[None, None, None, :]).astype(np.float32)   # (xin, xo, xi, dx)
    ws1 = jnp.transpose(P["W1"][:, 0, :, :], (1, 2, 0)) * s1          # (dy, dx, o)
    band1 = jnp.einsum("Xqid,ado->aXiqo", sel1, ws1)                  # (dy, xin, xi, xo, o)
    w1_full = jnp.zeros((128, 768), f32)
    w1_full = w1_full.at[0:78, :].set(band1.reshape(78, 768))
    w1_full = w1_full.at[78, :].set(jnp.tile(t1, 24))                 # ones-column shift row
    w1b = w1_full.astype(bf16)

    # conv2 banded weight (768, 512): rows = dy2*256 + xo*32 + c,
    # cols = xi2*256 + xp*64 + o2 (cols 192:256 of each group are zero pad),
    # with BN2 scale folded in.
    sel2 = (np.arange(8)[:, None, None, None] ==
            (2 * np.arange(3))[None, :, None, None]
            + np.arange(2)[None, None, :, None]
            + np.arange(3)[None, None, None, :]).astype(np.float32)   # (xo_in, xp, xi2, dx2)
    ws2 = jnp.transpose(P["W2"], (2, 3, 1, 0)) * s2                   # (dy2, dx2, c, o2)
    band2 = jnp.einsum("Xpjd,adco->aXcjpo", sel2, ws2)                # (dy2, xo, c, xi2, xp, o2)
    band2 = band2.reshape(768, 2, 192)
    band2 = jnp.pad(band2, ((0, 0), (0, 0), (0, 64)))
    w2b = band2.reshape(768, 512).astype(bf16)

    # BN2 shift, tiled over xp (added after pooling; dead lanes stay 0).
    t2row = jnp.pad(jnp.tile(t2, 3), (0, 64)).reshape(1, 256).astype(f32)

    # fc1: PyTorch (200, 576) with 576 flattened as (c, h, w) = (o2, yp, xp).
    # Re-index to (yp, xp*64 + o2) rows, pad rows 192->256 and cols 200->256.
    wfc1 = P["Wfc1"].reshape(200, 64, 3, 3)                           # (j, o2, yp, xp)
    wfc1 = jnp.transpose(wfc1, (2, 3, 1, 0)).reshape(3, 192, 200)     # (yp, xp*64+o2, j)
    wfc1b = jnp.pad(wfc1, ((0, 0), (0, 64), (0, 56))).astype(bf16)    # (3, 256, 256)
    bfc1p = jnp.pad(P["bfc1"], (0, 56)).reshape(1, 256).astype(f32)

    # fc2: pad K 200->256 and the output dim to a lane-dense 128.
    wfc2b = jnp.pad(P["Wfc2"].T,
                    ((0, 56), (0, OUT_PAD - N_OUTPUT))).astype(bf16)  # (256, 128)
    bfc2p = jnp.pad(P["bfc2"], (0, OUT_PAD - N_OUTPUT)).reshape(1, OUT_PAD).astype(f32)

    return w1b, w2b, t2row, wfc1b, bfc1p, wfc2b, bfc2p


def _build_lhs1(x, b_tile):
    """x: (N_pad, 26, 26) f32 -> conv1 im2row, per-tile rows ordered (yi, yo, b)."""
    n = x.shape[0]
    lhs = jnp.concatenate([x[:, 0:24, :], x[:, 1:25, :], x[:, 2:26, :]], axis=-1)  # (N,24,78)
    lhs = jnp.pad(lhs, ((0, 0), (0, 0), (0, 128 - 78)))
    lhs = lhs.at[:, :, 78].set(1.0)                 # ones column -> BN1 shift (weight row 78)
    n_tiles = n // b_tile
    lhs = lhs.reshape(n_tiles, b_tile, 8, 3, 128)   # (tile, b, yo, yi, k)
    lhs = jnp.transpose(lhs, (0, 3, 2, 1, 4))       # (tile, yi, yo, b, k)
    return lhs.reshape(n_tiles * 24 * b_tile, 128).astype(jnp.bfloat16)


def net_forward_pallas(x_nchw, P):
    """x_nchw: (N, 1, 26, 26) float32 -> (N, n_output) float32."""
    N = x_nchw.shape[0]
    x = x_nchw[:, 0, :, :].astype(jnp.float32)      # (N, 26, 26)

    w1b, w2b, t2row, wfc1b, bfc1p, wfc2b, bfc2p = _prep_params(P)

    # Batch tile: at least two grid steps for small/medium batches so both v7x
    # TensorCores get work; capped so f32 temporaries stay small in VMEM.
    if N <= 2 * MAX_B_TILE:
        b_tile = max(8, _round_up((N + 1) // 2, 8))
    else:
        b_tile = MAX_B_TILE
    n_pad = _round_up(N, b_tile)
    if n_pad != N:
        x = jnp.pad(x, ((0, n_pad - N), (0, 0), (0, 0)))

    lhs1 = _build_lhs1(x, b_tile)                   # (n_pad*24, 128) bf16

    out = pl.pallas_call(
        net_kernel,
        out_shape=jax.ShapeDtypeStruct((n_pad, OUT_PAD), jnp.float32),
        grid_spec=pltpu.PrefetchScalarGridSpec(
            num_scalar_prefetch=0,
            grid=(n_pad // b_tile,),
            in_specs=[
                pl.BlockSpec((24 * b_tile, 128), lambda n: (n, 0)),   # conv1 im2row input
                pl.BlockSpec((128, 768), lambda n: (0, 0)),           # conv1 weight (BN1 folded)
                pl.BlockSpec((768, 512), lambda n: (0, 0)),           # conv2 weight (BN2 scale)
                pl.BlockSpec((1, 256), lambda n: (0, 0)),             # BN2 shift row
                pl.BlockSpec((3, 256, 256), lambda n: (0, 0, 0)),     # fc1 weight
                pl.BlockSpec((1, 256), lambda n: (0, 0)),             # fc1 bias
                pl.BlockSpec((256, OUT_PAD), lambda n: (0, 0)),       # fc2 weight
                pl.BlockSpec((1, OUT_PAD), lambda n: (0, 0)),         # fc2 bias
            ],
            out_specs=pl.BlockSpec((b_tile, OUT_PAD), lambda n: (n, 0)),
        ),
        compiler_params=pltpu.CompilerParams(
            dimension_semantics=("parallel",),
            vmem_limit_bytes=40 * 1024 * 1024),
    )(lhs1, w1b, w2b, t2row, wfc1b, bfc1p, wfc2b, bfc2p)
    return out[:N, :N_OUTPUT]


def net_forward_ref(x_nchw, P):
    """Pure-JAX f32 reference with PyTorch (NCHW, eval-mode BN/dropout) semantics."""
    x = jnp.transpose(x_nchw, (0, 2, 3, 1)).astype(jnp.float32)
    w1 = jnp.transpose(P["W1"], (2, 3, 1, 0))   # HWIO (3,3,1,32)
    w2 = jnp.transpose(P["W2"], (2, 3, 1, 0))   # HWIO (3,3,32,64)

    y = lax.conv_general_dilated(x, w1, (1, 1), "VALID",
                                 dimension_numbers=("NHWC", "HWIO", "NHWC"))
    y = y + P["b1"]
    y = (y - P["m1"]) / jnp.sqrt(P["v1"] + EPS) * P["g1"] + P["be1"]
    y = lax.reduce_window(y, -jnp.inf, lax.max, (1, 3, 3, 1), (1, 3, 3, 1), "VALID")
    y = jnp.maximum(y, 0.0)

    y = lax.conv_general_dilated(y, w2, (1, 1), "VALID",
                                 dimension_numbers=("NHWC", "HWIO", "NHWC"))
    y = y + P["b2"]
    y = (y - P["m2"]) / jnp.sqrt(P["v2"] + EPS) * P["g2"] + P["be2"]
    y = lax.reduce_window(y, -jnp.inf, lax.max, (1, 2, 2, 1), (1, 2, 2, 1), "VALID")
    y = jnp.maximum(y, 0.0)

    y = jnp.transpose(y, (0, 3, 1, 2)).reshape(x.shape[0], 576)   # NCHW flatten
    y = jnp.maximum(y @ P["Wfc1"].T + P["bfc1"], 0.0)
    y = y @ P["Wfc2"].T + P["bfc2"]
    return y


def make_params(key):
    ks = jax.random.split(key, 16)
    f32 = jnp.float32
    return dict(
        W1=0.1 * jax.random.normal(ks[0], (32, 1, 3, 3), f32),
        b1=0.1 * jax.random.normal(ks[1], (32,), f32),
        g1=1.0 + 0.1 * jax.random.normal(ks[2], (32,), f32),
        be1=0.1 * jax.random.normal(ks[3], (32,), f32),
        m1=0.1 * jax.random.normal(ks[4], (32,), f32),
        v1=0.5 + jnp.abs(jax.random.normal(ks[5], (32,), f32)),
        W2=0.1 * jax.random.normal(ks[6], (64, 32, 3, 3), f32),
        b2=0.1 * jax.random.normal(ks[7], (64,), f32),
        g2=1.0 + 0.1 * jax.random.normal(ks[8], (64,), f32),
        be2=0.1 * jax.random.normal(ks[9], (64,), f32),
        m2=0.1 * jax.random.normal(ks[10], (64,), f32),
        v2=0.5 + jnp.abs(jax.random.normal(ks[11], (64,), f32)),
        Wfc1=0.05 * jax.random.normal(ks[12], (200, 576), f32),
        bfc1=0.05 * jax.random.normal(ks[13], (200,), f32),
        Wfc2=0.05 * jax.random.normal(ks[14], (N_OUTPUT, 200), f32),
        bfc2=0.05 * jax.random.normal(ks[15], (N_OUTPUT,), f32),
    )


if __name__ == "__main__":
    key = jax.random.PRNGKey(0)
    kx, kp = jax.random.split(key)
    # batch=2, 1 input channel, 26x26 spatial (gives the 576 flatten dim).
    x = jax.random.normal(kx, (2, 1, 26, 26), jnp.float32)
    params = make_params(kp)

    out = net_forward_pallas(x, params)
    out = jax.block_until_ready(out)

    ref = jax.block_until_ready(net_forward_ref(x, params))
    # bf16 MXU operands (f32 accumulation) vs an all-f32 reference: compare at a
    # bf16-appropriate tolerance (measured error is ~5e-3 or less).
    np.testing.assert_allclose(np.asarray(out), np.asarray(ref),
                               rtol=2e-2, atol=2e-2)
    print("KERNEL_OK")
</pallas_src>

<mosaic_0001>
module attributes {stable_mosaic.version = 11 : i64} {
  func.func @net_kernel(%arg0: i32, %arg1: memref<192x128xbf16, #tpu.memory_space<vmem>>, %arg2: memref<128x768xbf16, #tpu.memory_space<vmem>>, %arg3: memref<768x512xbf16, #tpu.memory_space<vmem>>, %arg4: memref<1x256xf32, #tpu.memory_space<vmem>>, %arg5: memref<3x256x256xbf16, #tpu.memory_space<vmem>>, %arg6: memref<1x256xf32, #tpu.memory_space<vmem>>, %arg7: memref<256x128xbf16, #tpu.memory_space<vmem>>, %arg8: memref<1x128xf32, #tpu.memory_space<vmem>>, %arg9: memref<8x128xf32, #tpu.memory_space<vmem>>) attributes {dimension_semantics = [#tpu.dimension_semantics<parallel>], iteration_bounds = array<i64: 1>, scalar_prefetch = 0 : i64, scratch_operands = 0 : i64, tpu.core_type = #tpu.core_type<tc>, window_params = [{transform_indices = @transform_0, window_bounds = array<i64: 192, 128>}, {pipeline_mode = #tpu.pipeline_mode<synchronous>, transform_indices = @transform_1, window_bounds = array<i64: 128, 768>}, {pipeline_mode = #tpu.pipeline_mode<synchronous>, transform_indices = @transform_2, window_bounds = array<i64: 768, 512>}, {pipeline_mode = #tpu.pipeline_mode<synchronous>, transform_indices = @transform_3, window_bounds = array<i64: 1, 256>}, {pipeline_mode = #tpu.pipeline_mode<synchronous>, transform_indices = @transform_4, window_bounds = array<i64: 3, 256, 256>}, {pipeline_mode = #tpu.pipeline_mode<synchronous>, transform_indices = @transform_5, window_bounds = array<i64: 1, 256>}, {pipeline_mode = #tpu.pipeline_mode<synchronous>, transform_indices = @transform_6, window_bounds = array<i64: 256, 128>}, {pipeline_mode = #tpu.pipeline_mode<synchronous>, transform_indices = @transform_7, window_bounds = array<i64: 1, 128>}, {transform_indices = @transform_8, window_bounds = array<i64: 8, 128>}]} {
    %c0 = arith.constant 0 : index
    %c0_0 = arith.constant 0 : index
    %0 = vector.load %arg1[%c0, %c0_0] : memref<192x128xbf16, #tpu.memory_space<vmem>>, vector<192x128xbf16>
    %c0_1 = arith.constant 0 : index
    %c0_2 = arith.constant 0 : index
    %1 = vector.load %arg2[%c0_1, %c0_2] : memref<128x768xbf16, #tpu.memory_space<vmem>>, vector<128x768xbf16>
    %cst = arith.constant dense<0.000000e+00> : vector<192x768xf32>
    %2 = tpu.matmul %0, %1, %cst {dimension_numbers = #tpu.dot_dimension_numbers<[1], [0], [0], [1], [0, 0, 1, 1], [], []>} : vector<192x128xbf16>, vector<128x768xbf16>, vector<192x768xf32> -> vector<192x768xf32>
    %3 = vector.extract_strided_slice %2 {offsets = [0, 0], sizes = [192, 256], strides = [1, 1]} : vector<192x768xf32> to vector<192x256xf32>
    %4 = vector.extract_strided_slice %2 {offsets = [0, 256], sizes = [192, 256], strides = [1, 1]} : vector<192x768xf32> to vector<192x256xf32>
    %5 = arith.maximumf %3, %4 : vector<192x256xf32>
    %6 = vector.extract_strided_slice %2 {offsets = [0, 512], sizes = [192, 256], strides = [1, 1]} : vector<192x768xf32> to vector<192x256xf32>
    %7 = arith.maximumf %5, %6 : vector<192x256xf32>
    %8 = vector.extract_strided_slice %7 {offsets = [0, 0], sizes = [64, 256], strides = [1, 1]} : vector<192x256xf32> to vector<64x256xf32>
    %9 = vector.extract_strided_slice %7 {offsets = [64, 0], sizes = [64, 256], strides = [1, 1]} : vector<192x256xf32> to vector<64x256xf32>
    %10 = arith.maximumf %8, %9 : vector<64x256xf32>
    %11 = vector.extract_strided_slice %7 {offsets = [128, 0], sizes = [64, 256], strides = [1, 1]} : vector<192x256xf32> to vector<64x256xf32>
    %12 = arith.maximumf %10, %11 : vector<64x256xf32>
    %cst_3 = arith.constant 0.000000e+00 : f32
    %13 = vector.broadcast %cst_3 : f32 to vector<64x256xf32>
    %14 = arith.maximumf %12, %13 : vector<64x256xf32>
    %15 = vector.extract_strided_slice %14 {offsets = [0, 0], sizes = [48, 256], strides = [1, 1]} : vector<64x256xf32> to vector<48x256xf32>
    %16 = vector.extract_strided_slice %14 {offsets = [8, 0], sizes = [48, 256], strides = [1, 1]} : vector<64x256xf32> to vector<48x256xf32>
    %17 = vector.extract_strided_slice %14 {offsets = [16, 0], sizes = [48, 256], strides = [1, 1]} : vector<64x256xf32> to vector<48x256xf32>
    %18 = tpu.concatenate %15, %16, %17 in 1 : vector<48x256xf32>, vector<48x256xf32>, vector<48x256xf32> -> vector<48x768xf32>
    %19 = arith.truncf %18 : vector<48x768xf32> to vector<48x768xbf16>
    %c0_4 = arith.constant 0 : index
    %c0_5 = arith.constant 0 : index
    %20 = vector.load %arg3[%c0_4, %c0_5] : memref<768x512xbf16, #tpu.memory_space<vmem>>, vector<768x512xbf16>
    %cst_6 = arith.constant dense<0.000000e+00> : vector<48x512xf32>
    %21 = tpu.matmul %19, %20, %cst_6 {dimension_numbers = #tpu.dot_dimension_numbers<[1], [0], [0], [1], [0, 0, 1, 1], [], []>} : vector<48x768xbf16>, vector<768x512xbf16>, vector<48x512xf32> -> vector<48x512xf32>
    %22 = vector.extract_strided_slice %21 {offsets = [0, 0], sizes = [48, 256], strides = [1, 1]} : vector<48x512xf32> to vector<48x256xf32>
    %23 = vector.extract_strided_slice %21 {offsets = [0, 256], sizes = [48, 256], strides = [1, 1]} : vector<48x512xf32> to vector<48x256xf32>
    %24 = arith.maximumf %22, %23 : vector<48x256xf32>
    %cst_7 = arith.constant 0.000000e+00 : f32
    %25 = vector.broadcast %cst_7 : f32 to vector<8x256xf32>
    %26 = vector.extract_strided_slice %24 {offsets = [0, 0], sizes = [8, 256], strides = [1, 1]} : vector<48x256xf32> to vector<8x256xf32>
    %27 = vector.extract_strided_slice %24 {offsets = [8, 0], sizes = [8, 256], strides = [1, 1]} : vector<48x256xf32> to vector<8x256xf32>
    %28 = arith.maximumf %26, %27 : vector<8x256xf32>
    %c0_8 = arith.constant 0 : index
    %c0_9 = arith.constant 0 : index
    %29 = vector.load %arg4[%c0_8, %c0_9] : memref<1x256xf32, #tpu.memory_space<vmem>>, vector<1x256xf32>
    %30 = vector.broadcast %29 : vector<1x256xf32> to vector<8x256xf32>
    %31 = arith.addf %28, %30 : vector<8x256xf32>
    %cst_10 = arith.constant 0.000000e+00 : f32
    %32 = vector.broadcast %cst_10 : f32 to vector<8x256xf32>
    %33 = arith.maximumf %31, %32 : vector<8x256xf32>
    %34 = arith.truncf %33 : vector<8x256xf32> to vector<8x256xbf16>
    %c0_11 = arith.constant 0 : index
    %c0_12 = arith.constant 0 : index
    %c0_13 = arith.constant 0 : index
    %35 = vector.load %arg5[%c0_11, %c0_12, %c0_13] : memref<3x256x256xbf16, #tpu.memory_space<vmem>>, vector<1x256x256xbf16>
    %36 = vector.shape_cast %35 : vector<1x256x256xbf16> to vector<256x256xbf16>
    %cst_14 = arith.constant dense<0.000000e+00> : vector<8x256xf32>
    %37 = tpu.matmul %34, %36, %cst_14 {dimension_numbers = #tpu.dot_dimension_numbers<[1], [0], [0], [1], [0, 0, 1, 1], [], []>} : vector<8x256xbf16>, vector<256x256xbf16>, vector<8x256xf32> -> vector<8x256xf32>
    %38 = arith.addf %25, %37 : vector<8x256xf32>
    %39 = vector.extract_strided_slice %24 {offsets = [16, 0], sizes = [8, 256], strides = [1, 1]} : vector<48x256xf32> to vector<8x256xf32>
    %40 = vector.extract_strided_slice %24 {offsets = [24, 0], sizes = [8, 256], strides = [1, 1]} : vector<48x256xf32> to vector<8x256xf32>
    %41 = arith.maximumf %39, %40 : vector<8x256xf32>
    %c0_15 = arith.constant 0 : index
    %c0_16 = arith.constant 0 : index
    %42 = vector.load %arg4[%c0_15, %c0_16] : memref<1x256xf32, #tpu.memory_space<vmem>>, vector<1x256xf32>
    %43 = vector.broadcast %42 : vector<1x256xf32> to vector<8x256xf32>
    %44 = arith.addf %41, %43 : vector<8x256xf32>
    %cst_17 = arith.constant 0.000000e+00 : f32
    %45 = vector.broadcast %cst_17 : f32 to vector<8x256xf32>
    %46 = arith.maximumf %44, %45 : vector<8x256xf32>
    %47 = arith.truncf %46 : vector<8x256xf32> to vector<8x256xbf16>
    %c1 = arith.constant 1 : index
    %c0_18 = arith.constant 0 : index
    %c0_19 = arith.constant 0 : index
    %48 = vector.load %arg5[%c1, %c0_18, %c0_19] : memref<3x256x256xbf16, #tpu.memory_space<vmem>>, vector<1x256x256xbf16>
    %49 = vector.shape_cast %48 : vector<1x256x256xbf16> to vector<256x256xbf16>
    %cst_20 = arith.constant dense<0.000000e+00> : vector<8x256xf32>
    %50 = tpu.matmul %47, %49, %cst_20 {dimension_numbers = #tpu.dot_dimension_numbers<[1], [0], [0], [1], [0, 0, 1, 1], [], []>} : vector<8x256xbf16>, vector<256x256xbf16>, vector<8x256xf32> -> vector<8x256xf32>
    %51 = arith.addf %38, %50 : vector<8x256xf32>
    %52 = vector.extract_strided_slice %24 {offsets = [32, 0], sizes = [8, 256], strides = [1, 1]} : vector<48x256xf32> to vector<8x256xf32>
    %53 = vector.extract_strided_slice %24 {offsets = [40, 0], sizes = [8, 256], strides = [1, 1]} : vector<48x256xf32> to vector<8x256xf32>
    %54 = arith.maximumf %52, %53 : vector<8x256xf32>
    %c0_21 = arith.constant 0 : index
    %c0_22 = arith.constant 0 : index
    %55 = vector.load %arg4[%c0_21, %c0_22] : memref<1x256xf32, #tpu.memory_space<vmem>>, vector<1x256xf32>
    %56 = vector.broadcast %55 : vector<1x256xf32> to vector<8x256xf32>
    %57 = arith.addf %54, %56 : vector<8x256xf32>
    %cst_23 = arith.constant 0.000000e+00 : f32
    %58 = vector.broadcast %cst_23 : f32 to vector<8x256xf32>
    %59 = arith.maximumf %57, %58 : vector<8x256xf32>
    %60 = arith.truncf %59 : vector<8x256xf32> to vector<8x256xbf16>
    %c2 = arith.constant 2 : index
    %c0_24 = arith.constant 0 : index
    %c0_25 = arith.constant 0 : index
    %61 = vector.load %arg5[%c2, %c0_24, %c0_25] : memref<3x256x256xbf16, #tpu.memory_space<vmem>>, vector<1x256x256xbf16>
    %62 = vector.shape_cast %61 : vector<1x256x256xbf16> to vector<256x256xbf16>
    %cst_26 = arith.constant dense<0.000000e+00> : vector<8x256xf32>
    %63 = tpu.matmul %60, %62, %cst_26 {dimension_numbers = #tpu.dot_dimension_numbers<[1], [0], [0], [1], [0, 0, 1, 1], [], []>} : vector<8x256xbf16>, vector<256x256xbf16>, vector<8x256xf32> -> vector<8x256xf32>
    %64 = arith.addf %51, %63 : vector<8x256xf32>
    %c0_27 = arith.constant 0 : index
    %c0_28 = arith.constant 0 : index
    %65 = vector.load %arg6[%c0_27, %c0_28] : memref<1x256xf32, #tpu.memory_space<vmem>>, vector<1x256xf32>
    %66 = vector.broadcast %65 : vector<1x256xf32> to vector<8x256xf32>
    %67 = arith.addf %64, %66 : vector<8x256xf32>
    %cst_29 = arith.constant 0.000000e+00 : f32
    %68 = vector.broadcast %cst_29 : f32 to vector<8x256xf32>
    %69 = arith.maximumf %67, %68 : vector<8x256xf32>
    %70 = arith.truncf %69 : vector<8x256xf32> to vector<8x256xbf16>
    %c0_30 = arith.constant 0 : index
    %c0_31 = arith.constant 0 : index
    %71 = vector.load %arg7[%c0_30, %c0_31] : memref<256x128xbf16, #tpu.memory_space<vmem>>, vector<256x128xbf16>
    %cst_32 = arith.constant dense<0.000000e+00> : vector<8x128xf32>
    %72 = tpu.matmul %70, %71, %cst_32 {dimension_numbers = #tpu.dot_dimension_numbers<[1], [0], [0], [1], [0, 0, 1, 1], [], []>} : vector<8x256xbf16>, vector<256x128xbf16>, vector<8x128xf32> -> vector<8x128xf32>
    %c0_33 = arith.constant 0 : index
    %c0_34 = arith.constant 0 : index
    %73 = vector.load %arg8[%c0_33, %c0_34] : memref<1x128xf32, #tpu.memory_space<vmem>>, vector<1x128xf32>
    %74 = vector.broadcast %73 : vector<1x128xf32> to vector<8x128xf32>
    %75 = arith.addf %72, %74 : vector<8x128xf32>
    %c0_35 = arith.constant 0 : index
    %c0_36 = arith.constant 0 : index
    %76 = vector.load %arg9[%c0_35, %c0_36] : memref<8x128xf32, #tpu.memory_space<vmem>>, vector<8x128xf32>
    tpu.vector_store %arg9[%c0_35, %c0_36], %75 {strides = array<i32>} : memref<8x128xf32, #tpu.memory_space<vmem>>, vector<8x128xf32>,
    return
  }
  func.func @transform_0(%arg0: i32) -> (i32, i32) {
    %c0_i32 = arith.constant 0 : i32
    %c0_i32_0 = arith.constant 0 : i32
    return %arg0, %c0_i32 : i32, i32
  }
  func.func @transform_1(%arg0: i32) -> (i32, i32) {
    %c0_i32 = arith.constant 0 : i32
    %c0_i32_0 = arith.constant 0 : i32
    %c0_i32_1 = arith.constant 0 : i32
    return %c0_i32, %c0_i32_0 : i32, i32
  }
  func.func @transform_2(%arg0: i32) -> (i32, i32) {
    %c0_i32 = arith.constant 0 : i32
    %c0_i32_0 = arith.constant 0 : i32
    %c0_i32_1 = arith.constant 0 : i32
    return %c0_i32, %c0_i32_0 : i32, i32
  }
  func.func @transform_3(%arg0: i32) -> (i32, i32) {
    %c0_i32 = arith.constant 0 : i32
    %c0_i32_0 = arith.constant 0 : i32
    %c0_i32_1 = arith.constant 0 : i32
    return %c0_i32, %c0_i32_0 : i32, i32
  }
  func.func @transform_4(%arg0: i32) -> (i32, i32, i32) {
    %c0_i32 = arith.constant 0 : i32
    %c0_i32_0 = arith.constant 0 : i32
    %c0_i32_1 = arith.constant 0 : i32
    %c0_i32_2 = arith.constant 0 : i32
    return %c0_i32, %c0_i32_0, %c0_i32_1 : i32, i32, i32
  }
  func.func @transform_5(%arg0: i32) -> (i32, i32) {
    %c0_i32 = arith.constant 0 : i32
    %c0_i32_0 = arith.constant 0 : i32
    %c0_i32_1 = arith.constant 0 : i32
    return %c0_i32, %c0_i32_0 : i32, i32
  }
  func.func @transform_6(%arg0: i32) -> (i32, i32) {
    %c0_i32 = arith.constant 0 : i32
    %c0_i32_0 = arith.constant 0 : i32
    %c0_i32_1 = arith.constant 0 : i32
    return %c0_i32, %c0_i32_0 : i32, i32
  }
  func.func @transform_7(%arg0: i32) -> (i32, i32) {
    %c0_i32 = arith.constant 0 : i32
    %c0_i32_0 = arith.constant 0 : i32
    %c0_i32_1 = arith.constant 0 : i32
    return %c0_i32, %c0_i32_0 : i32, i32
  }
  func.func @transform_8(%arg0: i32) -> (i32, i32) {
    %c0_i32 = arith.constant 0 : i32
    %c0_i32_0 = arith.constant 0 : i32
    return %arg0, %c0_i32 : i32, i32
  }
}

</mosaic_0001>

<llo_original>
// kernel: tpu_custom_call.1
$region0: #{tpu_custom_call.1}
  #allocation0 [shape = 'u32[]', space=smem, size = 0x4, offset = 0x4, fixed_abs, tag = 'smem constant byte address 0x4 - core index']
  #allocation1 [shape = 'u32[144,128]{1,0:T(1,128)}', space=vmem, size = 0x12000, scoped, tag = 'internal scratch']
  %s0 = inlined_call_operand.hbm [shape: bf16[192,128], index: 0, kind: input, shape index: {}]
  %s1 = inlined_call_operand.hbm [shape: bf16[128,768], index: 1, kind: input, shape index: {}]
  %s2 = inlined_call_operand.hbm [shape: bf16[768,512], index: 2, kind: input, shape index: {}]
  %s3 = inlined_call_operand.vmem [shape: f32[1,256], index: 3, kind: input, shape index: {}]
  %s4 = inlined_call_operand.hbm [shape: bf16[3,256,256], index: 4, kind: input, shape index: {}]
  %s5 = inlined_call_operand.vmem [shape: f32[1,256], index: 5, kind: input, shape index: {}]
  %s6 = inlined_call_operand.hbm [shape: bf16[256,128], index: 6, kind: input, shape index: {}]
  %s7 = inlined_call_operand.vmem [shape: f32[1,128], index: 7, kind: input, shape index: {}]
  %s8 = inlined_call_operand.hbm [shape: f32[8,128], index: 8, kind: output, shape index: {}]
  %s9 = sld [smem:[#allocation0]]
  $region62: #{tpu_custom_call.1} parent=0
    _
  %s11 = ssub.s32 1, %s9
  %s12 = scalar_select 0, %s11, %s9
  $region1: #{tpu_custom_call.1} parent=0
    #allocation2 [shape = 'u8[49152]{0}', space=vmem, size = 0xc000, scoped, tag = 'input window, operand 0, single buffered']
    #allocation3 [shape = 's32[1]{0}', space=sflag, size = 0x4, scoped, tag = 'scoped memory for tpu_custom_call.1']
    #allocation4 [shape = 's32[1]{0}', space=sflag, size = 0x4, scoped, tag = 'scoped memory for tpu_custom_call.1']
    #allocation5 [shape = 'u8[196608]{0}', space=vmem, size = 0x30000, scoped, tag = 'input window, operand 1, single buffered']
    #allocation6 [shape = 's32[1]{0}', space=sflag, size = 0x4, scoped, tag = 'scoped memory for tpu_custom_call.1']
    #allocation7 [shape = 'u8[786432]{0}', space=vmem, size = 0xc0000, scoped, tag = 'input window, operand 2, single buffered']
    #allocation8 [shape = 'u8[393216]{0}', space=vmem, size = 0x60000, scoped, tag = 'input window, operand 4, single buffered']
    #allocation9 [shape = 's32[1]{0}', space=sflag, size = 0x4, scoped, tag = 'scoped memory for tpu_custom_call.1']
    #allocation10 [shape = 'u8[65536]{0}', space=vmem, size = 0x10000, scoped, tag = 'input window, operand 6, single buffered']
    #allocation11 [shape = 'u8[4096]{0}', space=vmem, size = 0x1000, scoped, tag = 'output window, operand 0, single buffered']
    %13 = vsyncpa [#allocation3], 0
    %14 = vsyncpa [#allocation6], 0
    %15 = vsyncpa [#allocation9], 0
    %16 = vsyncpa [#allocation4], 0
    // Predicated region
    $region2: #{tpu_custom_call.1} parent=1 // pred_check
      _
    $region3: #{tpu_custom_call.1} parent=1 // pred_check_branch
      %18 = sbr.rel (0) target = $region5
    $region4: #{tpu_custom_call.1} parent=1 // pred_region
      %s20 = ssub.s32 1536, 1536
      %21 = vsyncadd [#allocation3], %s20
      %s22 = sshll.u32 [#allocation2], 4
      %s23 = int_to_ptr.vmem [resolvable:$true] %s22
      %28 = dma.hbm_to_vmem [thread:$0]  %s0, 1536, %s23, [#allocation3], 64, 64, 4
    $region5: #{tpu_custom_call.1} parent=1 // pred_fallthru
      _
    // Predicated region
    $region6: #{tpu_custom_call.1} parent=1 // pred_check
      _
    $region7: #{tpu_custom_call.1} parent=1 // pred_check_branch
      %30 = sbr.rel (0) target = $region9
    $region8: #{tpu_custom_call.1} parent=1 // pred_region
      %s32 = ssub.s32 6144, 6144
      %33 = vsyncadd [#allocation6], %s32
      %s34 = sshll.u32 [#allocation5], 4
      %s35 = int_to_ptr.vmem [resolvable:$true] %s34
      %40 = dma.hbm_to_vmem [thread:$0]  %s1, 6144, %s35, [#allocation6], 384, 384, 24
    $region9: #{tpu_custom_call.1} parent=1 // pred_fallthru
      _
    // Predicated region
    $region10: #{tpu_custom_call.1} parent=1 // pred_check
      _
    $region11: #{tpu_custom_call.1} parent=1 // pred_check_branch
      %42 = sbr.rel (0) target = $region13
    $region12: #{tpu_custom_call.1} parent=1 // pred_region
      %s44 = ssub.s32 24576, 24576
      %45 = vsyncadd [#allocation6], %s44
      %s46 = sshll.u32 [#allocation7], 4
      %s47 = int_to_ptr.vmem [resolvable:$true] %s46
      %52 = dma.hbm_to_vmem [thread:$0]  %s2, 24576, %s47, [#allocation6], 256, 256, 16
    $region13: #{tpu_custom_call.1} parent=1 // pred_fallthru
      _
    // Predicated region
    $region14: #{tpu_custom_call.1} parent=1 // pred_check
      _
    $region15: #{tpu_custom_call.1} parent=1 // pred_check_branch
      %54 = sbr.rel (0) target = $region17
    $region16: #{tpu_custom_call.1} parent=1 // pred_region
      _
    $region17: #{tpu_custom_call.1} parent=1 // pred_fallthru
      _
    // Predicated region
    $region18: #{tpu_custom_call.1} parent=1 // pred_check
      _
    $region19: #{tpu_custom_call.1} parent=1 // pred_check_branch
      %56 = sbr.rel (0) target = $region21
    $region20: #{tpu_custom_call.1} parent=1 // pred_region
      %s58 = ssub.s32 12288, 12288
      %59 = vsyncadd [#allocation9], %s58
      %s60 = sshll.u32 [#allocation8], 4
      %s61 = int_to_ptr.vmem [resolvable:$true] %s60
      %66 = dma.hbm_to_vmem [thread:$0]  %s4, 12288, %s61, [#allocation9], 128, 128, 8
    $region21: #{tpu_custom_call.1} parent=1 // pred_fallthru
      _
    // Predicated region
    $region22: #{tpu_custom_call.1} parent=1 // pred_check
      _
    $region23: #{tpu_custom_call.1} parent=1 // pred_check_branch
      %68 = sbr.rel (0) target = $region25
    $region24: #{tpu_custom_call.1} parent=1 // pred_region
      _
    $region25: #{tpu_custom_call.1} parent=1 // pred_fallthru
      _
    // Predicated region
    $region26: #{tpu_custom_call.1} parent=1 // pred_check
      _
    $region27: #{tpu_custom_call.1} parent=1 // pred_check_branch
      %70 = sbr.rel (0) target = $region29
    $region28: #{tpu_custom_call.1} parent=1 // pred_region
      %s72 = ssub.s32 2048, 2048
      %73 = vsyncadd [#allocation9], %s72
      %s74 = sshll.u32 [#allocation10], 4
      %s75 = int_to_ptr.vmem [resolvable:$true] %s74
      %80 = dma.hbm_to_vmem [thread:$0]  %s6, 2048, %s75, [#allocation9], 64, 64, 4
    $region29: #{tpu_custom_call.1} parent=1 // pred_fallthru
      _
    // Predicated region
    $region30: #{tpu_custom_call.1} parent=1 // pred_check
      _
    $region31: #{tpu_custom_call.1} parent=1 // pred_check_branch
      %82 = sbr.rel (0) target = $region33
    $region32: #{tpu_custom_call.1} parent=1 // pred_region
      _
    $region33: #{tpu_custom_call.1} parent=1 // pred_fallthru
      _
    // Predicated region
    $region34: #{tpu_custom_call.1} parent=1 // pred_check
      _
    $region35: #{tpu_custom_call.1} parent=1 // pred_check_branch
      %84 = sbr.rel (0) target = $region37
    $region36: #{tpu_custom_call.1} parent=1 // pred_region
      %85 = dma.done [#allocation3], 1536
    $region37: #{tpu_custom_call.1} parent=1 // pred_fallthru
      _
    // Predicated region
    $region38: #{tpu_custom_call.1} parent=1 // pred_check
      _
    $region39: #{tpu_custom_call.1} parent=1 // pred_check_branch
      %87 = sbr.rel (0) target = $region41
    $region40: #{tpu_custom_call.1} parent=1 // pred_region
      %88 = dma.done [#allocation6], 6144
    $region41: #{tpu_custom_call.1} parent=1 // pred_fallthru
      _
    // Predicated region
    $region42: #{tpu_custom_call.1} parent=1 // pred_check
      _
    $region43: #{tpu_custom_call.1} parent=1 // pred_check_branch
      %90 = sbr.rel (0) target = $region45
    $region44: #{tpu_custom_call.1} parent=1 // pred_region
      %91 = dma.done [#allocation6], 24576
    $region45: #{tpu_custom_call.1} parent=1 // pred_fallthru
      _
    // Predicated region
    $region46: #{tpu_custom_call.1} parent=1 // pred_check
      _
    $region47: #{tpu_custom_call.1} parent=1 // pred_check_branch
      %93 = sbr.rel (0) target = $region49
    $region48: #{tpu_custom_call.1} parent=1 // pred_region
      %94 = dma.done [#allocation9], 12288
    $region49: #{tpu_custom_call.1} parent=1 // pred_fallthru
      _
    // Predicated region
    $region50: #{tpu_custom_call.1} parent=1 // pred_check
      _
    $region51: #{tpu_custom_call.1} parent=1 // pred_check_branch
      %96 = sbr.rel (0) target = $region53
    $region52: #{tpu_custom_call.1} parent=1 // pred_region
      %97 = dma.done [#allocation9], 2048
    $region53: #{tpu_custom_call.1} parent=1 // pred_fallthru
      _
    %v99 = vld [vmem:[#allocation2] sm:$0xf]
    %v100 = vld [vmem:[#allocation2 + $0x4] sm:$0xf]
    %v101 = vld [vmem:[#allocation2 + $0x8] sm:$0xf]
    %v102 = vld [vmem:[#allocation2 + $0xc] sm:$0xf]
    %v103 = vld [vmem:[#allocation2 + $0x10] sm:$0xf]
    %v104 = vld [vmem:[#allocation2 + $0x14] sm:$0xf]
    %v105 = vld [vmem:[#allocation2 + $0x18] sm:$0xf]
    %v106 = vld [vmem:[#allocation2 + $0x1c] sm:$0xf]
    %v107 = vld [vmem:[#allocation2 + $0x20] sm:$0xf]
    %v108 = vld [vmem:[#allocation2 + $0x24] sm:$0xf]
    %v109 = vld [vmem:[#allocation2 + $0x28] sm:$0xf]
    %v110 = vld [vmem:[#allocation2 + $0x2c] sm:$0xf]
    %v111 = vld [vmem:[#allocation2 + $0x30] sm:$0xf]
    %v112 = vld [vmem:[#allocation2 + $0x34] sm:$0xf]
    %v113 = vld [vmem:[#allocation2 + $0x38] sm:$0xf]
    %v114 = vld [vmem:[#allocation2 + $0x3c] sm:$0xf]
    %v115 = vld [vmem:[#allocation2 + $0x40] sm:$0xf]
    %v116 = vld [vmem:[#allocation2 + $0x44] sm:$0xf]
    %v117 = vld [vmem:[#allocation2 + $0x48] sm:$0xf]
    %v118 = vld [vmem:[#allocation2 + $0x4c] sm:$0xf]
    %v119 = vld [vmem:[#allocation2 + $0x50] sm:$0xf]
    %v120 = vld [vmem:[#allocation2 + $0x54] sm:$0xf]
    %v121 = vld [vmem:[#allocation2 + $0x58] sm:$0xf]
    %v122 = vld [vmem:[#allocation2 + $0x5c] sm:$0xf]
    %v123 = vld [vmem:[#allocation5] sm:$0xff]
    %v124 = vld [vmem:[#allocation5 + $0x8] sm:$0xff]
    %v125 = vld [vmem:[#allocation5 + $0x10] sm:$0xff]
    %v126 = vld [vmem:[#allocation5 + $0x18] sm:$0xff]
    %v127 = vld [vmem:[#allocation5 + $0x20] sm:$0xff]
    %v128 = vld [vmem:[#allocation5 + $0x28] sm:$0xff]
    %v129 = vld [vmem:[#allocation5 + $0x30] sm:$0xff]
    %v130 = vld [vmem:[#allocation5 + $0x38] sm:$0xff]
    %v131 = vld [vmem:[#allocation5 + $0x40] sm:$0xff]
    %v132 = vld [vmem:[#allocation5 + $0x48] sm:$0xff]
    %v133 = vld [vmem:[#allocation5 + $0x50] sm:$0xff]
    %v134 = vld [vmem:[#allocation5 + $0x58] sm:$0xff]
    %v135 = vld [vmem:[#allocation5 + $0x60] sm:$0xff]
    %v136 = vld [vmem:[#allocation5 + $0x68] sm:$0xff]
    %v137 = vld [vmem:[#allocation5 + $0x70] sm:$0xff]
    %v138 = vld [vmem:[#allocation5 + $0x78] sm:$0xff]
    %v139 = vld [vmem:[#allocation5 + $0x80] sm:$0xff]
    %v140 = vld [vmem:[#allocation5 + $0x88] sm:$0xff]
    %v141 = vld [vmem:[#allocation5 + $0x90] sm:$0xff]
    %v142 = vld [vmem:[#allocation5 + $0x98] sm:$0xff]
    %v143 = vld [vmem:[#allocation5 + $0xa0] sm:$0xff]
    %v144 = vld [vmem:[#allocation5 + $0xa8] sm:$0xff]
    %v145 = vld [vmem:[#allocation5 + $0xb0] sm:$0xff]
    %v146 = vld [vmem:[#allocation5 + $0xb8] sm:$0xff]
    %v147 = vld [vmem:[#allocation5 + $0xc0] sm:$0xff]
    %v148 = vld [vmem:[#allocation5 + $0xc8] sm:$0xff]
    %v149 = vld [vmem:[#allocation5 + $0xd0] sm:$0xff]
    %v150 = vld [vmem:[#allocation5 + $0xd8] sm:$0xff]
    %v151 = vld [vmem:[#allocation5 + $0xe0] sm:$0xff]
    %v152 = vld [vmem:[#allocation5 + $0xe8] sm:$0xff]
    %v153 = vld [vmem:[#allocation5 + $0xf0] sm:$0xff]
    %v154 = vld [vmem:[#allocation5 + $0xf8] sm:$0xff]
    %v155 = vld [vmem:[#allocation5 + $0x100] sm:$0xff]
    %v156 = vld [vmem:[#allocation5 + $0x108] sm:$0xff]
    %v157 = vld [vmem:[#allocation5 + $0x110] sm:$0xff]
    %v158 = vld [vmem:[#allocation5 + $0x118] sm:$0xff]
    %v159 = vld [vmem:[#allocation5 + $0x120] sm:$0xff]
    %v160 = vld [vmem:[#allocation5 + $0x128] sm:$0xff]
    %v161 = vld [vmem:[#allocation5 + $0x130] sm:$0xff]
    %v162 = vld [vmem:[#allocation5 + $0x138] sm:$0xff]
    %v163 = vld [vmem:[#allocation5 + $0x140] sm:$0xff]
    %v164 = vld [vmem:[#allocation5 + $0x148] sm:$0xff]
    %v165 = vld [vmem:[#allocation5 + $0x150] sm:$0xff]
    %v166 = vld [vmem:[#allocation5 + $0x158] sm:$0xff]
    %v167 = vld [vmem:[#allocation5 + $0x160] sm:$0xff]
    %v168 = vld [vmem:[#allocation5 + $0x168] sm:$0xff]
    %v169 = vld [vmem:[#allocation5 + $0x170] sm:$0xff]
    %v170 = vld [vmem:[#allocation5 + $0x178] sm:$0xff]
    %v195 = vunpack.c.l.b16 %v99
    %v196 = vunpack.c.l.b16 %v100
    %v197 = vunpack.c.l.b16 %v101
    %v198 = vunpack.c.l.b16 %v102
    %v199 = vunpack.c.l.b16 %v103
    %v200 = vunpack.c.l.b16 %v104
    %v201 = vunpack.c.l.b16 %v105
    %v202 = vunpack.c.l.b16 %v106
    %v203 = vunpack.c.l.b16 %v107
    %v204 = vunpack.c.l.b16 %v108
    %v205 = vunpack.c.l.b16 %v109
    %v206 = vunpack.c.l.b16 %v110
    %v207 = vunpack.c.l.b16 %v111
    %v208 = vunpack.c.l.b16 %v112
    %v209 = vunpack.c.l.b16 %v113
    %v210 = vunpack.c.l.b16 %v114
    %v211 = vunpack.c.l.b16 %v115
    %v212 = vunpack.c.l.b16 %v116
    %v213 = vunpack.c.l.b16 %v117
    %v214 = vunpack.c.l.b16 %v118
    %v215 = vunpack.c.l.b16 %v119
    %v216 = vunpack.c.l.b16 %v120
    %v217 = vunpack.c.l.b16 %v121
    %v218 = vunpack.c.l.b16 %v122
    %v219 = vpack.c.b16 %v196, %v195
    %v220 = vpack.c.b16 %v198, %v197
    %v221 = vpack.c.b16 %v200, %v199
    %v222 = vpack.c.b16 %v202, %v201
    %v223 = vpack.c.b16 %v204, %v203
    %v224 = vpack.c.b16 %v206, %v205
    %v225 = vpack.c.b16 %v208, %v207
    %v226 = vpack.c.b16 %v210, %v209
    %v227 = vpack.c.b16 %v212, %v211
    %v228 = vpack.c.b16 %v214, %v213
    %v229 = vpack.c.b16 %v216, %v215
    %v230 = vpack.c.b16 %v218, %v217
    %v291 = vunpack.c.l.b16 %v123
    %v292 = vunpack.c.h.b16 %v123
    %v293 = vunpack.c.l.b16 %v124
    %v294 = vunpack.c.h.b16 %v124
    %v295 = vunpack.c.l.b16 %v125
    %v296 = vunpack.c.h.b16 %v125
    %v297 = vunpack.c.l.b16 %v126
    %v298 = vunpack.c.h.b16 %v126
    %v299 = vunpack.c.l.b16 %v127
    %v300 = vunpack.c.h.b16 %v127
    %v301 = vunpack.c.l.b16 %v128
    %v302 = vunpack.c.h.b16 %v128
    %v303 = vunpack.c.l.b16 %v129
    %v304 = vunpack.c.h.b16 %v129
    %v305 = vunpack.c.l.b16 %v130
    %v306 = vunpack.c.h.b16 %v130
    %v307 = vunpack.c.l.b16 %v131
    %v308 = vunpack.c.h.b16 %v131
    %v309 = vunpack.c.l.b16 %v132
    %v310 = vunpack.c.h.b16 %v132
    %v311 = vunpack.c.l.b16 %v133
    %v312 = vunpack.c.h.b16 %v133
    %v313 = vunpack.c.l.b16 %v134
    %v314 = vunpack.c.h.b16 %v134
    %v315 = vunpack.c.l.b16 %v135
    %v316 = vunpack.c.h.b16 %v135
    %v317 = vunpack.c.l.b16 %v136
    %v318 = vunpack.c.h.b16 %v136
    %v319 = vunpack.c.l.b16 %v137
    %v320 = vunpack.c.h.b16 %v137
    %v321 = vunpack.c.l.b16 %v138
    %v322 = vunpack.c.h.b16 %v138
    %v323 = vunpack.c.l.b16 %v139
    %v324 = vunpack.c.h.b16 %v139
    %v325 = vunpack.c.l.b16 %v140
    %v326 = vunpack.c.h.b16 %v140
    %v327 = vunpack.c.l.b16 %v141
    %v328 = vunpack.c.h.b16 %v141
    %v329 = vunpack.c.l.b16 %v142
    %v330 = vunpack.c.h.b16 %v142
    %v331 = vunpack.c.l.b16 %v143
    %v332 = vunpack.c.h.b16 %v143
    %v333 = vunpack.c.l.b16 %v144
    %v334 = vunpack.c.h.b16 %v144
    %v335 = vunpack.c.l.b16 %v145
    %v336 = vunpack.c.h.b16 %v145
    %v337 = vunpack.c.l.b16 %v146
    %v338 = vunpack.c.h.b16 %v146
    %v339 = vunpack.c.l.b16 %v147
    %v340 = vunpack.c.h.b16 %v147
    %v341 = vunpack.c.l.b16 %v148
    %v342 = vunpack.c.h.b16 %v148
    %v343 = vunpack.c.l.b16 %v149
    %v344 = vunpack.c.h.b16 %v149
    %v345 = vunpack.c.l.b16 %v150
    %v346 = vunpack.c.h.b16 %v150
    %v347 = vunpack.c.l.b16 %v151
    %v348 = vunpack.c.h.b16 %v151
    %v349 = vunpack.c.l.b16 %v152
    %v350 = vunpack.c.h.b16 %v152
    %v351 = vunpack.c.l.b16 %v153
    %v352 = vunpack.c.h.b16 %v153
    %v353 = vunpack.c.l.b16 %v154
    %v354 = vunpack.c.h.b16 %v154
    %v355 = vunpack.c.l.b16 %v155
    %v356 = vunpack.c.h.b16 %v155
    %v357 = vunpack.c.l.b16 %v156
    %v358 = vunpack.c.h.b16 %v156
    %v359 = vunpack.c.l.b16 %v157
    %v360 = vunpack.c.h.b16 %v157
    %v361 = vunpack.c.l.b16 %v158
    %v362 = vunpack.c.h.b16 %v158
    %v363 = vunpack.c.l.b16 %v159
    %v364 = vunpack.c.h.b16 %v159
    %v365 = vunpack.c.l.b16 %v160
    %v366 = vunpack.c.h.b16 %v160
    %v367 = vunpack.c.l.b16 %v161
    %v368 = vunpack.c.h.b16 %v161
    %v369 = vunpack.c.l.b16 %v162
    %v370 = vunpack.c.h.b16 %v162
    %v371 = vunpack.c.l.b16 %v163
    %v372 = vunpack.c.h.b16 %v163
    %v373 = vunpack.c.l.b16 %v164
    %v374 = vunpack.c.h.b16 %v164
    %v375 = vunpack.c.l.b16 %v165
    %v376 = vunpack.c.h.b16 %v165
    %v377 = vunpack.c.l.b16 %v166
    %v378 = vunpack.c.h.b16 %v166
    %v379 = vunpack.c.l.b16 %v167
    %v380 = vunpack.c.h.b16 %v167
    %v381 = vunpack.c.l.b16 %v168
    %v382 = vunpack.c.h.b16 %v168
    %v383 = vunpack.c.l.b16 %v169
    %v384 = vunpack.c.h.b16 %v169
    %v385 = vunpack.c.l.b16 %v170
    %v386 = vunpack.c.h.b16 %v170
    %v387 = vpack.c.b16 %v297, %v291
    %v388 = vpack.c.b16 %v298, %v292
    %v389 = vpack.c.b16 %v299, %v293
    %v390 = vpack.c.b16 %v300, %v294
    %v391 = vpack.c.b16 %v301, %v295
    %v392 = vpack.c.b16 %v302, %v296
    %v393 = vpack.c.b16 %v309, %v303
    %v394 = vpack.c.b16 %v310, %v304
    %v395 = vpack.c.b16 %v311, %v305
    %v396 = vpack.c.b16 %v312, %v306
    %v397 = vpack.c.b16 %v313, %v307
    %v398 = vpack.c.b16 %v314, %v308
    %v399 = vpack.c.b16 %v321, %v315
    %v400 = vpack.c.b16 %v322, %v316
    %v401 = vpack.c.b16 %v323, %v317
    %v402 = vpack.c.b16 %v324, %v318
    %v403 = vpack.c.b16 %v325, %v319
    %v404 = vpack.c.b16 %v326, %v320
    %v405 = vpack.c.b16 %v333, %v327
    %v406 = vpack.c.b16 %v334, %v328
    %v407 = vpack.c.b16 %v335, %v329
    %v408 = vpack.c.b16 %v336, %v330
    %v409 = vpack.c.b16 %v337, %v331
    %v410 = vpack.c.b16 %v338, %v332
    %v411 = vpack.c.b16 %v345, %v339
    %v412 = vpack.c.b16 %v346, %v340
    %v413 = vpack.c.b16 %v347, %v341
    %v414 = vpack.c.b16 %v348, %v342
    %v415 = vpack.c.b16 %v349, %v343
    %v416 = vpack.c.b16 %v350, %v344
    %v417 = vpack.c.b16 %v357, %v351
    %v418 = vpack.c.b16 %v358, %v352
    %v419 = vpack.c.b16 %v359, %v353
    %v420 = vpack.c.b16 %v360, %v354
    %v421 = vpack.c.b16 %v361, %v355
    %v422 = vpack.c.b16 %v362, %v356
    %v423 = vpack.c.b16 %v369, %v363
    %v424 = vpack.c.b16 %v370, %v364
    %v425 = vpack.c.b16 %v371, %v365
    %v426 = vpack.c.b16 %v372, %v366
    %v427 = vpack.c.b16 %v373, %v367
    %v428 = vpack.c.b16 %v374, %v368
    %v429 = vpack.c.b16 %v381, %v375
    %v430 = vpack.c.b16 %v382, %v376
    %v431 = vpack.c.b16 %v383, %v377
    %v432 = vpack.c.b16 %v384, %v378
    %v433 = vpack.c.b16 %v385, %v379
    %v434 = vpack.c.b16 %v386, %v380
    %483 = vmatprep.subr.bf16.mxu0 %v388
    %484 = vmatpush1.bf16.msra.mxu0 %v387
    %485 = vmatprep.subr.bf16.mxu0 %v394
    %486 = vmatpush1.bf16.msra.mxu0 %v393
    %487 = vmatprep.subr.bf16.mxu0 %v400
    %488 = vmatpush1.bf16.msra.mxu0 %v399
    %489 = vmatprep.subr.bf16.mxu0 %v406
    %490 = vmatpush1.bf16.msra.mxu0 %v405
    %491 = vmatprep.subr.bf16.mxu0 %v412
    %492 = vmatpush1.bf16.msra.mxu0 %v411
    %493 = vmatprep.subr.bf16.mxu0 %v418
    %494 = vmatpush1.bf16.msra.mxu0 %v417
    %495 = vmatprep.subr.bf16.mxu0 %v424
    %496 = vmatpush1.bf16.msra.mxu0 %v423
    %497 = vmatprep.subr.bf16.mxu0 %v430
    %498 = vmatpush1.bf16.msra.mxu0 %v429
    %499 = vmatprep.subr.bf16.mxu0 0
    %500 = vmatpush1.bf16.msra.mxu0 0
    %501 = vmatprep.subr.bf16.mxu0 0
    %502 = vmatpush1.bf16.msra.mxu0 0
    %503 = vmatprep.subr.bf16.mxu0 0
    %504 = vmatpush1.bf16.msra.mxu0 0
    %505 = vmatprep.subr.bf16.mxu0 0
    %506 = vmatpush1.bf16.msra.mxu0 0
    %507 = vmatprep.subr.bf16.mxu0 0
    %508 = vmatpush1.bf16.msra.mxu0 0
    %509 = vmatprep.subr.bf16.mxu0 0
    %510 = vmatpush1.bf16.msra.mxu0 0
    %511 = vmatprep.subr.bf16.mxu0 0
    %512 = vmatpush1.bf16.msra.mxu0 0
    %513 = vmatprep.subr.bf16.mxu0 0
    %514 = vmatpush1.bf16.msra.mxu0 0
    %515 = vmatprep.mubr.bf16.mxu0 0
    %516 = vmatmul.mubr.bf16.gmra.mrb[0].mxu0 %v219
    %v517 = vpop.f32.mrb[0].mxu0
    %v518 = vadd.f32 0.0, %v517
    %v519 = vpop.f32.mrb[0].mxu0
    %v520 = vadd.f32 0.0, %v519
    %v521 = vpop.f32.mrb[0].mxu0
    %v522 = vadd.f32 0.0, %v521
    %v523 = vpop.f32.mrb[0].mxu0
    %v524 = vadd.f32 0.0, %v523
    %525 = vmatprep.mubr.bf16.mxu0 0
    %526 = vmatmul.mubr.bf16.gmra.mrb[0].mxu0 %v220
    %v527 = vpop.f32.mrb[0].mxu0
    %v528 = vadd.f32 0.0, %v527
    %v529 = vpop.f32.mrb[0].mxu0
    %v530 = vadd.f32 0.0, %v529
    %v531 = vpop.f32.mrb[0].mxu0
    %v532 = vadd.f32 0.0, %v531
    %v533 = vpop.f32.mrb[0].mxu0
    %v534 = vadd.f32 0.0, %v533
    %535 = vmatprep.mubr.bf16.mxu0 0
    %536 = vmatmul.mubr.bf16.gmra.mrb[0].mxu0 %v221
    %v537 = vpop.f32.mrb[0].mxu0
    %v538 = vadd.f32 0.0, %v537
    %v539 = vpop.f32.mrb[0].mxu0
    %v540 = vadd.f32 0.0, %v539
    %v541 = vpop.f32.mrb[0].mxu0
    %v542 = vadd.f32 0.0, %v541
    %v543 = vpop.f32.mrb[0].mxu0
    %v544 = vadd.f32 0.0, %v543
    %545 = vmatprep.mubr.bf16.mxu0 0
    %546 = vmatmul.mubr.bf16.gmra.mrb[0].mxu0 %v222
    %v547 = vpop.f32.mrb[0].mxu0
    %v548 = vadd.f32 0.0, %v547
    %v549 = vpop.f32.mrb[0].mxu0
    %v550 = vadd.f32 0.0, %v549
    %v551 = vpop.f32.mrb[0].mxu0
    %v552 = vadd.f32 0.0, %v551
    %v553 = vpop.f32.mrb[0].mxu0
    %v554 = vadd.f32 0.0, %v553
    %555 = vmatprep.mubr.bf16.mxu0 0
    %556 = vmatmul.mubr.bf16.gmra.mrb[0].mxu0 %v223
    %v557 = vpop.f32.mrb[0].mxu0
    %v558 = vadd.f32 0.0, %v557
    %v559 = vpop.f32.mrb[0].mxu0
    %v560 = vadd.f32 0.0, %v559
    %v561 = vpop.f32.mrb[0].mxu0
    %v562 = vadd.f32 0.0, %v561
    %v563 = vpop.f32.mrb[0].mxu0
    %v564 = vadd.f32 0.0, %v563
    %565 = vmatprep.mubr.bf16.mxu0 0
    %566 = vmatmul.mubr.bf16.gmra.mrb[0].mxu0 %v224
    %v567 = vpop.f32.mrb[0].mxu0
    %v568 = vadd.f32 0.0, %v567
    %v569 = vpop.f32.mrb[0].mxu0
    %v570 = vadd.f32 0.0, %v569
    %v571 = vpop.f32.mrb[0].mxu0
    %v572 = vadd.f32 0.0, %v571
    %v573 = vpop.f32.mrb[0].mxu0
    %v574 = vadd.f32 0.0, %v573
    %575 = vmatprep.mubr.bf16.mxu0 0
    %576 = vmatmul.mubr.bf16.gmra.mrb[0].mxu0 %v225
    %v577 = vpop.f32.mrb[0].mxu0
    %v578 = vadd.f32 0.0, %v577
    %v579 = vpop.f32.mrb[0].mxu0
    %v580 = vadd.f32 0.0, %v579
    %v581 = vpop.f32.mrb[0].mxu0
    %v582 = vadd.f32 0.0, %v581
    %v583 = vpop.f32.mrb[0].mxu0
    %v584 = vadd.f32 0.0, %v583
    %585 = vmatprep.mubr.bf16.mxu0 0
    %586 = vmatmul.mubr.bf16.gmra.mrb[0].mxu0 %v226
    %v587 = vpop.f32.mrb[0].mxu0
    %v588 = vadd.f32 0.0, %v587
    %v589 = vpop.f32.mrb[0].mxu0
    %v590 = vadd.f32 0.0, %v589
    %v591 = vpop.f32.mrb[0].mxu0
    %v592 = vadd.f32 0.0, %v591
    %v593 = vpop.f32.mrb[0].mxu0
    %v594 = vadd.f32 0.0, %v593
    %595 = vmatprep.mubr.bf16.mxu0 0
    %596 = vmatmul.mubr.bf16.gmra.mrb[0].mxu0 %v227
    %v597 = vpop.f32.mrb[0].mxu0
    %v598 = vadd.f32 0.0, %v597
    %v599 = vpop.f32.mrb[0].mxu0
    %v600 = vadd.f32 0.0, %v599
    %v601 = vpop.f32.mrb[0].mxu0
    %v602 = vadd.f32 0.0, %v601
    %v603 = vpop.f32.mrb[0].mxu0
    %v604 = vadd.f32 0.0, %v603
    %605 = vmatprep.mubr.bf16.mxu0 0
    %606 = vmatmul.mubr.bf16.gmra.mrb[0].mxu0 %v228
    %v607 = vpop.f32.mrb[0].mxu0
    %v608 = vadd.f32 0.0, %v607
    %v609 = vpop.f32.mrb[0].mxu0
    %v610 = vadd.f32 0.0, %v609
    %v611 = vpop.f32.mrb[0].mxu0
    %v612 = vadd.f32 0.0, %v611
    %v613 = vpop.f32.mrb[0].mxu0
    %v614 = vadd.f32 0.0, %v613
    %615 = vmatprep.mubr.bf16.mxu0 0
    %616 = vmatmul.mubr.bf16.gmra.mrb[0].mxu0 %v229
    %v617 = vpop.f32.mrb[0].mxu0
    %v618 = vadd.f32 0.0, %v617
    %v619 = vpop.f32.mrb[0].mxu0
    %v620 = vadd.f32 0.0, %v619
    %v621 = vpop.f32.mrb[0].mxu0
    %v622 = vadd.f32 0.0, %v621
    %v623 = vpop.f32.mrb[0].mxu0
    %v624 = vadd.f32 0.0, %v623
    %625 = vmatprep.mubr.bf16.mxu0 0
    %626 = vmatmul.mubr.bf16.gmra.mrb[0].mxu0 %v230
    %v627 = vpop.f32.mrb[0].mxu0
    %v628 = vadd.f32 0.0, %v627
    %v629 = vpop.f32.mrb[0].mxu0
    %v630 = vadd.f32 0.0, %v629
    %v631 = vpop.f32.mrb[0].mxu0
    %v632 = vadd.f32 0.0, %v631
    %v633 = vpop.f32.mrb[0].mxu0
    %v634 = vadd.f32 0.0, %v633
    %635 = vdwg.mxu0
    %636 = vmatprep.subr.bf16.mxu0 %v390
    %637 = vmatpush1.bf16.msra.mxu0 %v389
    %638 = vmatprep.subr.bf16.mxu0 %v396
    %639 = vmatpush1.bf16.msra.mxu0 %v395
    %640 = vmatprep.subr.bf16.mxu0 %v402
    %641 = vmatpush1.bf16.msra.mxu0 %v401
    %642 = vmatprep.subr.bf16.mxu0 %v408
    %643 = vmatpush1.bf16.msra.mxu0 %v407
    %644 = vmatprep.subr.bf16.mxu0 %v414
    %645 = vmatpush1.bf16.msra.mxu0 %v413
    %646 = vmatprep.subr.bf16.mxu0 %v420
    %647 = vmatpush1.bf16.msra.mxu0 %v419
    %648 = vmatprep.subr.bf16.mxu0 %v426
    %649 = vmatpush1.bf16.msra.mxu0 %v425
    %650 = vmatprep.subr.bf16.mxu0 %v432
    %651 = vmatpush1.bf16.msra.mxu0 %v431
    %652 = vmatprep.subr.bf16.mxu0 0
    %653 = vmatpush1.bf16.msra.mxu0 0
    %654 = vmatprep.subr.bf16.mxu0 0
    %655 = vmatpush1.bf16.msra.mxu0 0
    %656 = vmatprep.subr.bf16.mxu0 0
    %657 = vmatpush1.bf16.msra.mxu0 0
    %658 = vmatprep.subr.bf16.mxu0 0
    %659 = vmatpush1.bf16.msra.mxu0 0
    %660 = vmatprep.subr.bf16.mxu0 0
    %661 = vmatpush1.bf16.msra.mxu0 0
    %662 = vmatprep.subr.bf16.mxu0 0
    %663 = vmatpush1.bf16.msra.mxu0 0
    %664 = vmatprep.subr.bf16.mxu0 0
    %665 = vmatpush1.bf16.msra.mxu0 0
    %666 = vmatprep.subr.bf16.mxu0 0
    %667 = vmatpush1.bf16.msra.mxu0 0
    %668 = vmatprep.mubr.bf16.mxu0 0
    %669 = vmatmul.mubr.bf16.gmra.mrb[0].mxu0 %v219
    %v670 = vpop.f32.mrb[0].mxu0
    %v671 = vadd.f32 0.0, %v670
    %v672 = vpop.f32.mrb[0].mxu0
    %v673 = vadd.f32 0.0, %v672
    %v674 = vpop.f32.mrb[0].mxu0
    %v675 = vadd.f32 0.0, %v674
    %v676 = vpop.f32.mrb[0].mxu0
    %v677 = vadd.f32 0.0, %v676
    %678 = vmatprep.mubr.bf16.mxu0 0
    %679 = vmatmul.mubr.bf16.gmra.mrb[0].mxu0 %v220
    %v680 = vpop.f32.mrb[0].mxu0
    %v681 = vadd.f32 0.0, %v680
    %v682 = vpop.f32.mrb[0].mxu0
    %v683 = vadd.f32 0.0, %v682
    %v684 = vpop.f32.mrb[0].mxu0
    %v685 = vadd.f32 0.0, %v684
    %v686 = vpop.f32.mrb[0].mxu0
    %v687 = vadd.f32 0.0, %v686
    %688 = vmatprep.mubr.bf16.mxu0 0
    %689 = vmatmul.mubr.bf16.gmra.mrb[0].mxu0 %v221
    %v690 = vpop.f32.mrb[0].mxu0
    %v691 = vadd.f32 0.0, %v690
    %v692 = vpop.f32.mrb[0].mxu0
    %v693 = vadd.f32 0.0, %v692
    %v694 = vpop.f32.mrb[0].mxu0
    %v695 = vadd.f32 0.0, %v694
    %v696 = vpop.f32.mrb[0].mxu0
    %v697 = vadd.f32 0.0, %v696
    %698 = vmatprep.mubr.bf16.mxu0 0
    %699 = vmatmul.mubr.bf16.gmra.mrb[0].mxu0 %v222
    %v700 = vpop.f32.mrb[0].mxu0
    %v701 = vadd.f32 0.0, %v700
    %v702 = vpop.f32.mrb[0].mxu0
    %v703 = vadd.f32 0.0, %v702
    %v704 = vpop.f32.mrb[0].mxu0
    %v705 = vadd.f32 0.0, %v704
    %v706 = vpop.f32.mrb[0].mxu0
    %v707 = vadd.f32 0.0, %v706
    %708 = vmatprep.mubr.bf16.mxu0 0
    %709 = vmatmul.mubr.bf16.gmra.mrb[0].mxu0 %v223
    %v710 = vpop.f32.mrb[0].mxu0
    %v711 = vadd.f32 0.0, %v710
    %v712 = vpop.f32.mrb[0].mxu0
    %v713 = vadd.f32 0.0, %v712
    %v714 = vpop.f32.mrb[0].mxu0
    %v715 = vadd.f32 0.0, %v714
    %v716 = vpop.f32.mrb[0].mxu0
    %v717 = vadd.f32 0.0, %v716
    %718 = vmatprep.mubr.bf16.mxu0 0
    %719 = vmatmul.mubr.bf16.gmra.mrb[0].mxu0 %v224
    %v720 = vpop.f32.mrb[0].mxu0
    %v721 = vadd.f32 0.0, %v720
    %v722 = vpop.f32.mrb[0].mxu0
    %v723 = vadd.f32 0.0, %v722
    %v724 = vpop.f32.mrb[0].mxu0
    %v725 = vadd.f32 0.0, %v724
    %v726 = vpop.f32.mrb[0].mxu0
    %v727 = vadd.f32 0.0, %v726
    %728 = vmatprep.mubr.bf16.mxu0 0
    %729 = vmatmul.mubr.bf16.gmra.mrb[0].mxu0 %v225
    %v730 = vpop.f32.mrb[0].mxu0
    %v731 = vadd.f32 0.0, %v730
    %v732 = vpop.f32.mrb[0].mxu0
    %v733 = vadd.f32 0.0, %v732
    %v734 = vpop.f32.mrb[0].mxu0
    %v735 = vadd.f32 0.0, %v734
    %v736 = vpop.f32.mrb[0].mxu0
    %v737 = vadd.f32 0.0, %v736
    %738 = vmatprep.mubr.bf16.mxu0 0
    %739 = vmatmul.mubr.bf16.gmra.mrb[0].mxu0 %v226
    %v740 = vpop.f32.mrb[0].mxu0
    %v741 = vadd.f32 0.0, %v740
    %v742 = vpop.f32.mrb[0].mxu0
    %v743 = vadd.f32 0.0, %v742
    %v744 = vpop.f32.mrb[0].mxu0
    %v745 = vadd.f32 0.0, %v744
    %v746 = vpop.f32.mrb[0].mxu0
    %v747 = vadd.f32 0.0, %v746
    %748 = vmatprep.mubr.bf16.mxu0 0
    %749 = vmatmul.mubr.bf16.gmra.mrb[0].mxu0 %v227
    %v750 = vpop.f32.mrb[0].mxu0
    %v751 = vadd.f32 0.0, %v750
    %v752 = vpop.f32.mrb[0].mxu0
    %v753 = vadd.f32 0.0, %v752
    %v754 = vpop.f32.mrb[0].mxu0
    %v755 = vadd.f32 0.0, %v754
    %v756 = vpop.f32.mrb[0].mxu0
    %v757 = vadd.f32 0.0, %v756
    %758 = vmatprep.mubr.bf16.mxu0 0
    %759 = vmatmul.mubr.bf16.gmra.mrb[0].mxu0 %v228
    %v760 = vpop.f32.mrb[0].mxu0
    %v761 = vadd.f32 0.0, %v760
    %v762 = vpop.f32.mrb[0].mxu0
    %v763 = vadd.f32 0.0, %v762
    %v764 = vpop.f32.mrb[0].mxu0
    %v765 = vadd.f32 0.0, %v764
    %v766 = vpop.f32.mrb[0].mxu0
    %v767 = vadd.f32 0.0, %v766
    %768 = vmatprep.mubr.bf16.mxu0 0
    %769 = vmatmul.mubr.bf16.gmra.mrb[0].mxu0 %v229
    %v770 = vpop.f32.mrb[0].mxu0
    %v771 = vadd.f32 0.0, %v770
    %v772 = vpop.f32.mrb[0].mxu0
    %v773 = vadd.f32 0.0, %v772
    %v774 = vpop.f32.mrb[0].mxu0
    %v775 = vadd.f32 0.0, %v774
    %v776 = vpop.f32.mrb[0].mxu0
    %v777 = vadd.f32 0.0, %v776
    %778 = vmatprep.mubr.bf16.mxu0 0
    %779 = vmatmul.mubr.bf16.gmra.mrb[0].mxu0 %v230
    %v780 = vpop.f32.mrb[0].mxu0
    %v781 = vadd.f32 0.0, %v780
    %v782 = vpop.f32.mrb[0].mxu0
    %v783 = vadd.f32 0.0, %v782
    %v784 = vpop.f32.mrb[0].mxu0
    %v785 = vadd.f32 0.0, %v784
    %v786 = vpop.f32.mrb[0].mxu0
    %v787 = vadd.f32 0.0, %v786
    %788 = vdwg.mxu0
    %789 = vmatprep.subr.bf16.mxu0 %v392
    %790 = vmatpush1.bf16.msra.mxu0 %v391
    %791 = vmatprep.subr.bf16.mxu0 %v398
    %792 = vmatpush1.bf16.msra.mxu0 %v397
    %793 = vmatprep.subr.bf16.mxu0 %v404
    %794 = vmatpush1.bf16.msra.mxu0 %v403
    %795 = vmatprep.subr.bf16.mxu0 %v410
    %796 = vmatpush1.bf16.msra.mxu0 %v409
    %797 = vmatprep.subr.bf16.mxu0 %v416
    %798 = vmatpush1.bf16.msra.mxu0 %v415
    %799 = vmatprep.subr.bf16.mxu0 %v422
    %800 = vmatpush1.bf16.msra.mxu0 %v421
    %801 = vmatprep.subr.bf16.mxu0 %v428
    %802 = vmatpush1.bf16.msra.mxu0 %v427
    %803 = vmatprep.subr.bf16.mxu0 %v434
    %804 = vmatpush1.bf16.msra.mxu0 %v433
    %805 = vmatprep.subr.bf16.mxu0 0
    %806 = vmatpush1.bf16.msra.mxu0 0
    %807 = vmatprep.subr.bf16.mxu0 0
    %808 = vmatpush1.bf16.msra.mxu0 0
    %809 = vmatprep.subr.bf16.mxu0 0
    %810 = vmatpush1.bf16.msra.mxu0 0
    %811 = vmatprep.subr.bf16.mxu0 0
    %812 = vmatpush1.bf16.msra.mxu0 0
    %813 = vmatprep.subr.bf16.mxu0 0
    %814 = vmatpush1.bf16.msra.mxu0 0
    %815 = vmatprep.subr.bf16.mxu0 0
    %816 = vmatpush1.bf16.msra.mxu0 0
    %817 = vmatprep.subr.bf16.mxu0 0
    %818 = vmatpush1.bf16.msra.mxu0 0
    %819 = vmatprep.subr.bf16.mxu0 0
    %820 = vmatpush1.bf16.msra.mxu0 0
    %821 = vmatprep.mubr.bf16.mxu0 0
    %822 = vmatmul.mubr.bf16.gmra.mrb[0].mxu0 %v219
    %v823 = vpop.f32.mrb[0].mxu0
    %v824 = vadd.f32 0.0, %v823
    %v825 = vpop.f32.mrb[0].mxu0
    %v826 = vadd.f32 0.0, %v825
    %v827 = vpop.f32.mrb[0].mxu0
    %v828 = vadd.f32 0.0, %v827
    %v829 = vpop.f32.mrb[0].mxu0
    %v830 = vadd.f32 0.0, %v829
    %831 = vmatprep.mubr.bf16.mxu0 0
    %832 = vmatmul.mubr.bf16.gmra.mrb[0].mxu0 %v220
    %v833 = vpop.f32.mrb[0].mxu0
    %v834 = vadd.f32 0.0, %v833
    %v835 = vpop.f32.mrb[0].mxu0
    %v836 = vadd.f32 0.0, %v835
    %v837 = vpop.f32.mrb[0].mxu0
    %v838 = vadd.f32 0.0, %v837
    %v839 = vpop.f32.mrb[0].mxu0
    %v840 = vadd.f32 0.0, %v839
    %841 = vmatprep.mubr.bf16.mxu0 0
    %842 = vmatmul.mubr.bf16.gmra.mrb[0].mxu0 %v221
    %v843 = vpop.f32.mrb[0].mxu0
    %v844 = vadd.f32 0.0, %v843
    %v845 = vpop.f32.mrb[0].mxu0
    %v846 = vadd.f32 0.0, %v845
    %v847 = vpop.f32.mrb[0].mxu0
    %v848 = vadd.f32 0.0, %v847
    %v849 = vpop.f32.mrb[0].mxu0
    %v850 = vadd.f32 0.0, %v849
    %851 = vmatprep.mubr.bf16.mxu0 0
    %852 = vmatmul.mubr.bf16.gmra.mrb[0].mxu0 %v222
    %v853 = vpop.f32.mrb[0].mxu0
    %v854 = vadd.f32 0.0, %v853
    %v855 = vpop.f32.mrb[0].mxu0
    %v856 = vadd.f32 0.0, %v855
    %v857 = vpop.f32.mrb[0].mxu0
    %v858 = vadd.f32 0.0, %v857
    %v859 = vpop.f32.mrb[0].mxu0
    %v860 = vadd.f32 0.0, %v859
    %861 = vmatprep.mubr.bf16.mxu0 0
    %862 = vmatmul.mubr.bf16.gmra.mrb[0].mxu0 %v223
    %v863 = vpop.f32.mrb[0].mxu0
    %v864 = vadd.f32 0.0, %v863
    %v865 = vpop.f32.mrb[0].mxu0
    %v866 = vadd.f32 0.0, %v865
    %v867 = vpop.f32.mrb[0].mxu0
    %v868 = vadd.f32 0.0, %v867
    %v869 = vpop.f32.mrb[0].mxu0
    %v870 = vadd.f32 0.0, %v869
    %871 = vmatprep.mubr.bf16.mxu0 0
    %872 = vmatmul.mubr.bf16.gmra.mrb[0].mxu0 %v224
    %v873 = vpop.f32.mrb[0].mxu0
    %v874 = vadd.f32 0.0, %v873
    %v875 = vpop.f32.mrb[0].mxu0
    %v876 = vadd.f32 0.0, %v875
    %v877 = vpop.f32.mrb[0].mxu0
    %v878 = vadd.f32 0.0, %v877
    %v879 = vpop.f32.mrb[0].mxu0
    %v880 = vadd.f32 0.0, %v879
    %881 = vmatprep.mubr.bf16.mxu0 0
    %882 = vmatmul.mubr.bf16.gmra.mrb[0].mxu0 %v225
    %v883 = vpop.f32.mrb[0].mxu0
    %v884 = vadd.f32 0.0, %v883
    %v885 = vpop.f32.mrb[0].mxu0
    %v886 = vadd.f32 0.0, %v885
    %v887 = vpop.f32.mrb[0].mxu0
    %v888 = vadd.f32 0.0, %v887
    %v889 = vpop.f32.mrb[0].mxu0
    %v890 = vadd.f32 0.0, %v889
    %891 = vmatprep.mubr.bf16.mxu0 0
    %892 = vmatmul.mubr.bf16.gmra.mrb[0].mxu0 %v226
    %v893 = vpop.f32.mrb[0].mxu0
    %v894 = vadd.f32 0.0, %v893
    %v895 = vpop.f32.mrb[0].mxu0
    %v896 = vadd.f32 0.0, %v895
    %v897 = vpop.f32.mrb[0].mxu0
    %v898 = vadd.f32 0.0, %v897
    %v899 = vpop.f32.mrb[0].mxu0
    %v900 = vadd.f32 0.0, %v899
    %901 = vmatprep.mubr.bf16.mxu0 0
    %902 = vmatmul.mubr.bf16.gmra.mrb[0].mxu0 %v227
    %v903 = vpop.f32.mrb[0].mxu0
    %v904 = vadd.f32 0.0, %v903
    %v905 = vpop.f32.mrb[0].mxu0
    %v906 = vadd.f32 0.0, %v905
    %v907 = vpop.f32.mrb[0].mxu0
    %v908 = vadd.f32 0.0, %v907
    %v909 = vpop.f32.mrb[0].mxu0
    %v910 = vadd.f32 0.0, %v909
    %911 = vmatprep.mubr.bf16.mxu0 0
    %912 = vmatmul.mubr.bf16.gmra.mrb[0].mxu0 %v228
    %v913 = vpop.f32.mrb[0].mxu0
    %v914 = vadd.f32 0.0, %v913
    %v915 = vpop.f32.mrb[0].mxu0
    %v916 = vadd.f32 0.0, %v915
    %v917 = vpop.f32.mrb[0].mxu0
    %v918 = vadd.f32 0.0, %v917
    %v919 = vpop.f32.mrb[0].mxu0
    %v920 = vadd.f32 0.0, %v919
    %921 = vmatprep.mubr.bf16.mxu0 0
    %922 = vmatmul.mubr.bf16.gmra.mrb[0].mxu0 %v229
    %v923 = vpop.f32.mrb[0].mxu0
    %v924 = vadd.f32 0.0, %v923
    %v925 = vpop.f32.mrb[0].mxu0
    %v926 = vadd.f32 0.0, %v925
    %v927 = vpop.f32.mrb[0].mxu0
    %v928 = vadd.f32 0.0, %v927
    %v929 = vpop.f32.mrb[0].mxu0
    %v930 = vadd.f32 0.0, %v929
    %931 = vmatprep.mubr.bf16.mxu0 0
    %932 = vmatmul.mubr.bf16.gmra.mrb[0].mxu0 %v230
    %v933 = vpop.f32.mrb[0].mxu0
    %v934 = vadd.f32 0.0, %v933
    %v935 = vpop.f32.mrb[0].mxu0
    %v936 = vadd.f32 0.0, %v935
    %v937 = vpop.f32.mrb[0].mxu0
    %v938 = vadd.f32 0.0, %v937
    %v939 = vpop.f32.mrb[0].mxu0
    %v940 = vadd.f32 0.0, %v939
    %941 = vdwg.mxu0
    %v942 = vmax.f32 %v518, %v671
    %v943 = vmax.f32 %v520, %v673
    %v944 = vmax.f32 %v522, %v675
    %v945 = vmax.f32 %v524, %v677
    %v946 = vmax.f32 %v528, %v681
    %v947 = vmax.f32 %v530, %v683
    %v948 = vmax.f32 %v532, %v685
    %v949 = vmax.f32 %v534, %v687
    %v950 = vmax.f32 %v538, %v691
    %v951 = vmax.f32 %v540, %v693
    %v952 = vmax.f32 %v542, %v695
    %v953 = vmax.f32 %v544, %v697
    %v954 = vmax.f32 %v548, %v701
    %v955 = vmax.f32 %v550, %v703
    %v956 = vmax.f32 %v552, %v705
    %v957 = vmax.f32 %v554, %v707
    %v958 = vmax.f32 %v558, %v711
    %v959 = vmax.f32 %v560, %v713
    %v960 = vmax.f32 %v562, %v715
    %v961 = vmax.f32 %v564, %v717
    %v962 = vmax.f32 %v568, %v721
    %v963 = vmax.f32 %v570, %v723
    %v964 = vmax.f32 %v572, %v725
    %v965 = vmax.f32 %v574, %v727
    %v966 = vmax.f32 %v578, %v731
    %v967 = vmax.f32 %v580, %v733
    %v968 = vmax.f32 %v582, %v735
    %v969 = vmax.f32 %v584, %v737
    %v970 = vmax.f32 %v588, %v741
    %v971 = vmax.f32 %v590, %v743
    %v972 = vmax.f32 %v592, %v745
    %v973 = vmax.f32 %v594, %v747
    %v974 = vmax.f32 %v598, %v751
    %v975 = vmax.f32 %v600, %v753
    %v976 = vmax.f32 %v602, %v755
    %v977 = vmax.f32 %v604, %v757
    %v978 = vmax.f32 %v608, %v761
    %v979 = vmax.f32 %v610, %v763
    %v980 = vmax.f32 %v612, %v765
    %v981 = vmax.f32 %v614, %v767
    %v982 = vmax.f32 %v618, %v771
    %v983 = vmax.f32 %v620, %v773
    %v984 = vmax.f32 %v622, %v775
    %v985 = vmax.f32 %v624, %v777
    %v986 = vmax.f32 %v628, %v781
    %v987 = vmax.f32 %v630, %v783
    %v988 = vmax.f32 %v632, %v785
    %v989 = vmax.f32 %v634, %v787
    %v990 = vmax.f32 %v942, %v824
    %v991 = vmax.f32 %v943, %v826
    %v992 = vmax.f32 %v944, %v828
    %v993 = vmax.f32 %v945, %v830
    %v994 = vmax.f32 %v946, %v834
    %v995 = vmax.f32 %v947, %v836
    %v996 = vmax.f32 %v948, %v838
    %v997 = vmax.f32 %v949, %v840
    %v998 = vmax.f32 %v950, %v844
    %v999 = vmax.f32 %v951, %v846
    %v1000 = vmax.f32 %v952, %v848
    %v1001 = vmax.f32 %v953, %v850
    %v1002 = vmax.f32 %v954, %v854
    %v1003 = vmax.f32 %v955, %v856
    %v1004 = vmax.f32 %v956, %v858
    %v1005 = vmax.f32 %v957, %v860
    %v1006 = vmax.f32 %v958, %v864
    %v1007 = vmax.f32 %v959, %v866
    %v1008 = vmax.f32 %v960, %v868
    %v1009 = vmax.f32 %v961, %v870
    %v1010 = vmax.f32 %v962, %v874
    %v1011 = vmax.f32 %v963, %v876
    %v1012 = vmax.f32 %v964, %v878
    %v1013 = vmax.f32 %v965, %v880
    %v1014 = vmax.f32 %v966, %v884
    %v1015 = vmax.f32 %v967, %v886
    %v1016 = vmax.f32 %v968, %v888
    %v1017 = vmax.f32 %v969, %v890
    %v1018 = vmax.f32 %v970, %v894
    %v1019 = vmax.f32 %v971, %v896
    %v1020 = vmax.f32 %v972, %v898
    %v1021 = vmax.f32 %v973, %v900
    %v1022 = vmax.f32 %v974, %v904
    %v1023 = vmax.f32 %v975, %v906
    %v1024 = vmax.f32 %v976, %v908
    %v1025 = vmax.f32 %v977, %v910
    %v1026 = vmax.f32 %v978, %v914
    %v1027 = vmax.f32 %v979, %v916
    %v1028 = vmax.f32 %v980, %v918
    %v1029 = vmax.f32 %v981, %v920
    %v1030 = vmax.f32 %v982, %v924
    %v1031 = vmax.f32 %v983, %v926
    %v1032 = vmax.f32 %v984, %v928
    %v1033 = vmax.f32 %v985, %v930
    %v1034 = vmax.f32 %v986, %v934
    %v1035 = vmax.f32 %v987, %v936
    %v1036 = vmax.f32 %v988, %v938
    %v1037 = vmax.f32 %v989, %v940
    %v1038 = vmax.f32 %v990, %v1006
    %v1039 = vmax.f32 %v991, %v1007
    %v1040 = vmax.f32 %v992, %v1008
    %v1041 = vmax.f32 %v993, %v1009
    %v1042 = vmax.f32 %v994, %v1010
    %v1043 = vmax.f32 %v995, %v1011
    %v1044 = vmax.f32 %v996, %v1012
    %v1045 = vmax.f32 %v997, %v1013
    %v1046 = vmax.f32 %v998, %v1014
    %v1047 = vmax.f32 %v999, %v1015
    %v1048 = vmax.f32 %v1000, %v1016
    %v1049 = vmax.f32 %v1001, %v1017
    %v1050 = vmax.f32 %v1002, %v1018
    %v1051 = vmax.f32 %v1003, %v1019
    %v1052 = vmax.f32 %v1004, %v1020
    %v1053 = vmax.f32 %v1005, %v1021
    %v1054 = vmax.f32 %v1038, %v1022
    %v1055 = vmax.f32 %v1039, %v1023
    %v1056 = vmax.f32 %v1040, %v1024
    %v1057 = vmax.f32 %v1041, %v1025
    %v1058 = vmax.f32 %v1042, %v1026
    %v1059 = vmax.f32 %v1043, %v1027
    %v1060 = vmax.f32 %v1044, %v1028
    %v1061 = vmax.f32 %v1045, %v1029
    %v1062 = vmax.f32 %v1046, %v1030
    %v1063 = vmax.f32 %v1047, %v1031
    %v1064 = vmax.f32 %v1048, %v1032
    %v1065 = vmax.f32 %v1049, %v1033
    %v1066 = vmax.f32 %v1050, %v1034
    %v1067 = vmax.f32 %v1051, %v1035
    %v1068 = vmax.f32 %v1052, %v1036
    %v1069 = vmax.f32 %v1053, %v1037
    %v1070 = vmax.f32 %v1054, 0.0
    %v1071 = vmax.f32 %v1055, 0.0
    %v1072 = vmax.f32 %v1056, 0.0
    %v1073 = vmax.f32 %v1057, 0.0
    %v1074 = vmax.f32 %v1058, 0.0
    %v1075 = vmax.f32 %v1059, 0.0
    %v1076 = vmax.f32 %v1060, 0.0
    %v1077 = vmax.f32 %v1061, 0.0
    %v1078 = vmax.f32 %v1062, 0.0
    %v1079 = vmax.f32 %v1063, 0.0
    %v1080 = vmax.f32 %v1064, 0.0
    %v1081 = vmax.f32 %v1065, 0.0
    %v1082 = vmax.f32 %v1066, 0.0
    %v1083 = vmax.f32 %v1067, 0.0
    %v1084 = vmax.f32 %v1068, 0.0
    %v1085 = vmax.f32 %v1069, 0.0
    %v1086 = vpack.c.bf16 %v1072, %v1070
    %v1087 = vpack.c.bf16 %v1073, %v1071
    %v1088 = vpack.c.bf16 %v1074, %v1072
    %v1089 = vpack.c.bf16 %v1075, %v1073
    %v1090 = vpack.c.bf16 %v1076, %v1074
    %v1091 = vpack.c.bf16 %v1077, %v1075
    %v1092 = vpack.c.bf16 %v1078, %v1076
    %v1093 = vpack.c.bf16 %v1079, %v1077
    %v1094 = vpack.c.bf16 %v1080, %v1078
    %v1095 = vpack.c.bf16 %v1081, %v1079
    %v1096 = vpack.c.bf16 %v1082, %v1080
    %v1097 = vpack.c.bf16 %v1083, %v1081
    %v1098 = vpack.c.bf16 %v1084, %v1082
    %v1099 = vpack.c.bf16 %v1085, %v1083
    %v1100 = vld [vmem:[#allocation7] sm:$0xff]
    %v1101 = vld [vmem:[#allocation7 + $0x8] sm:$0xff]
    %v1102 = vld [vmem:[#allocation7 + $0x10] sm:$0xff]
    %v1103 = vld [vmem:[#allocation7 + $0x18] sm:$0xff]
    %v1104 = vld [vmem:[#allocation7 + $0x20] sm:$0xff]
    %v1105 = vld [vmem:[#allocation7 + $0x28] sm:$0xff]
    %v1106 = vld [vmem:[#allocation7 + $0x30] sm:$0xff]
    %v1107 = vld [vmem:[#allocation7 + $0x38] sm:$0xff]
    %v1108 = vld [vmem:[#allocation7 + $0x40] sm:$0xff]
    %v1109 = vld [vmem:[#allocation7 + $0x48] sm:$0xff]
    %v1110 = vld [vmem:[#allocation7 + $0x50] sm:$0xff]
    %v1111 = vld [vmem:[#allocation7 + $0x58] sm:$0xff]
    %v1112 = vld [vmem:[#allocation7 + $0x60] sm:$0xff]
    %v1113 = vld [vmem:[#allocation7 + $0x68] sm:$0xff]
    %v1114 = vld [vmem:[#allocation7 + $0x70] sm:$0xff]
    %v1115 = vld [vmem:[#allocation7 + $0x78] sm:$0xff]
    %v1116 = vld [vmem:[#allocation7 + $0x80] sm:$0xff]
    %v1117 = vld [vmem:[#allocation7 + $0x88] sm:$0xff]
    %v1118 = vld [vmem:[#allocation7 + $0x90] sm:$0xff]
    %v1119 = vld [vmem:[#allocation7 + $0x98] sm:$0xff]
    %v1120 = vld [vmem:[#allocation7 + $0xa0] sm:$0xff]
    %v1121 = vld [vmem:[#allocation7 + $0xa8] sm:$0xff]
    %v1122 = vld [vmem:[#allocation7 + $0xb0] sm:$0xff]
    %v1123 = vld [vmem:[#allocation7 + $0xb8] sm:$0xff]
    %v1124 = vld [vmem:[#allocation7 + $0xc0] sm:$0xff]
    %v1125 = vld [vmem:[#allocation7 + $0xc8] sm:$0xff]
    %v1126 = vld [vmem:[#allocation7 + $0xd0] sm:$0xff]
    %v1127 = vld [vmem:[#allocation7 + $0xd8] sm:$0xff]
    %v1128 = vld [vmem:[#allocation7 + $0xe0] sm:$0xff]
    %v1129 = vld [vmem:[#allocation7 + $0xe8] sm:$0xff]
    %v1130 = vld [vmem:[#allocation7 + $0xf0] sm:$0xff]
    %v1131 = vld [vmem:[#allocation7 + $0xf8] sm:$0xff]
    %v1132 = vld [vmem:[#allocation7 + $0x100] sm:$0xff]
    %v1133 = vld [vmem:[#allocation7 + $0x108] sm:$0xff]
    %v1134 = vld [vmem:[#allocation7 + $0x110] sm:$0xff]
    %v1135 = vld [vmem:[#allocation7 + $0x118] sm:$0xff]
    %v1136 = vld [vmem:[#allocation7 + $0x120] sm:$0xff]
    %v1137 = vld [vmem:[#allocation7 + $0x128] sm:$0xff]
    %v1138 = vld [vmem:[#allocation7 + $0x130] sm:$0xff]
    %v1139 = vld [vmem:[#allocation7 + $0x138] sm:$0xff]
    %v1140 = vld [vmem:[#allocation7 + $0x140] sm:$0xff]
    %v1141 = vld [vmem:[#allocation7 + $0x148] sm:$0xff]
    %v1142 = vld [vmem:[#allocation7 + $0x150] sm:$0xff]
    %v1143 = vld [vmem:[#allocation7 + $0x158] sm:$0xff]
    %v1144 = vld [vmem:[#allocation7 + $0x160] sm:$0xff]
    %v1145 = vld [vmem:[#allocation7 + $0x168] sm:$0xff]
    %v1146 = vld [vmem:[#allocation7 + $0x170] sm:$0xff]
    %v1147 = vld [vmem:[#allocation7 + $0x178] sm:$0xff]
    %v1148 = vld [vmem:[#allocation7 + $0x180] sm:$0xff]
    %v1149 = vld [vmem:[#allocation7 + $0x188] sm:$0xff]
    %v1150 = vld [vmem:[#allocation7 + $0x190] sm:$0xff]
    %v1151 = vld [vmem:[#allocation7 + $0x198] sm:$0xff]
    %v1152 = vld [vmem:[#allocation7 + $0x1a0] sm:$0xff]
    %v1153 = vld [vmem:[#allocation7 + $0x1a8] sm:$0xff]
    %v1154 = vld [vmem:[#allocation7 + $0x1b0] sm:$0xff]
    %v1155 = vld [vmem:[#allocation7 + $0x1b8] sm:$0xff]
    %v1156 = vld [vmem:[#allocation7 + $0x1c0] sm:$0xff]
    %v1157 = vld [vmem:[#allocation7 + $0x1c8] sm:$0xff]
    %v1158 = vld [vmem:[#allocation7 + $0x1d0] sm:$0xff]
    %v1159 = vld [vmem:[#allocation7 + $0x1d8] sm:$0xff]
    %v1160 = vld [vmem:[#allocation7 + $0x1e0] sm:$0xff]
    %v1161 = vld [vmem:[#allocation7 + $0x1e8] sm:$0xff]
    %v1162 = vld [vmem:[#allocation7 + $0x1f0] sm:$0xff]
    %v1163 = vld [vmem:[#allocation7 + $0x1f8] sm:$0xff]
    %v1164 = vld [vmem:[#allocation7 + $0x200] sm:$0xff]
    %v1165 = vld [vmem:[#allocation7 + $0x208] sm:$0xff]
    %v1166 = vld [vmem:[#allocation7 + $0x210] sm:$0xff]
    %v1167 = vld [vmem:[#allocation7 + $0x218] sm:$0xff]
    %v1168 = vld [vmem:[#allocation7 + $0x220] sm:$0xff]
    %v1169 = vld [vmem:[#allocation7 + $0x228] sm:$0xff]
    %v1170 = vld [vmem:[#allocation7 + $0x230] sm:$0xff]
    %v1171 = vld [vmem:[#allocation7 + $0x238] sm:$0xff]
    %v1172 = vld [vmem:[#allocation7 + $0x240] sm:$0xff]
    %v1173 = vld [vmem:[#allocation7 + $0x248] sm:$0xff]
    %v1174 = vld [vmem:[#allocation7 + $0x250] sm:$0xff]
    %v1175 = vld [vmem:[#allocation7 + $0x258] sm:$0xff]
    %v1176 = vld [vmem:[#allocation7 + $0x260] sm:$0xff]
    %v1177 = vld [vmem:[#allocation7 + $0x268] sm:$0xff]
    %v1178 = vld [vmem:[#allocation7 + $0x270] sm:$0xff]
    %v1179 = vld [vmem:[#allocation7 + $0x278] sm:$0xff]
    %v1180 = vld [vmem:[#allocation7 + $0x280] sm:$0xff]
    %v1181 = vld [vmem:[#allocation7 + $0x288] sm:$0xff]
    %v1182 = vld [vmem:[#allocation7 + $0x290] sm:$0xff]
    %v1183 = vld [vmem:[#allocation7 + $0x298] sm:$0xff]
    %v1184 = vld [vmem:[#allocation7 + $0x2a0] sm:$0xff]
    %v1185 = vld [vmem:[#allocation7 + $0x2a8] sm:$0xff]
    %v1186 = vld [vmem:[#allocation7 + $0x2b0] sm:$0xff]
    %v1187 = vld [vmem:[#allocation7 + $0x2b8] sm:$0xff]
    %v1188 = vld [vmem:[#allocation7 + $0x2c0] sm:$0xff]
    %v1189 = vld [vmem:[#allocation7 + $0x2c8] sm:$0xff]
    %v1190 = vld [vmem:[#allocation7 + $0x2d0] sm:$0xff]
    %v1191 = vld [vmem:[#allocation7 + $0x2d8] sm:$0xff]
    %v1192 = vld [vmem:[#allocation7 + $0x2e0] sm:$0xff]
    %v1193 = vld [vmem:[#allocation7 + $0x2e8] sm:$0xff]
    %v1194 = vld [vmem:[#allocation7 + $0x2f0] sm:$0xff]
    %v1195 = vld [vmem:[#allocation7 + $0x2f8] sm:$0xff]
    %v1196 = vld [vmem:[#allocation7 + $0x300] sm:$0xff]
    %v1197 = vld [vmem:[#allocation7 + $0x308] sm:$0xff]
    %v1198 = vld [vmem:[#allocation7 + $0x310] sm:$0xff]
    %v1199 = vld [vmem:[#allocation7 + $0x318] sm:$0xff]
    %v1200 = vld [vmem:[#allocation7 + $0x320] sm:$0xff]
    %v1201 = vld [vmem:[#allocation7 + $0x328] sm:$0xff]
    %v1202 = vld [vmem:[#allocation7 + $0x330] sm:$0xff]
    %v1203 = vld [vmem:[#allocation7 + $0x338] sm:$0xff]
    %v1204 = vld [vmem:[#allocation7 + $0x340] sm:$0xff]
    %v1205 = vld [vmem:[#allocation7 + $0x348] sm:$0xff]
    %v1206 = vld [vmem:[#allocation7 + $0x350] sm:$0xff]
    %v1207 = vld [vmem:[#allocation7 + $0x358] sm:$0xff]
    %v1208 = vld [vmem:[#allocation7 + $0x360] sm:$0xff]
    %v1209 = vld [vmem:[#allocation7 + $0x368] sm:$0xff]
    %v1210 = vld [vmem:[#allocation7 + $0x370] sm:$0xff]
    %v1211 = vld [vmem:[#allocation7 + $0x378] sm:$0xff]
    %v1212 = vld [vmem:[#allocation7 + $0x380] sm:$0xff]
    %v1213 = vld [vmem:[#allocation7 + $0x388] sm:$0xff]
    %v1214 = vld [vmem:[#allocation7 + $0x390] sm:$0xff]
    %v1215 = vld [vmem:[#allocation7 + $0x398] sm:$0xff]
    %v1216 = vld [vmem:[#allocation7 + $0x3a0] sm:$0xff]
    %v1217 = vld [vmem:[#allocation7 + $0x3a8] sm:$0xff]
    %v1218 = vld [vmem:[#allocation7 + $0x3b0] sm:$0xff]
    %v1219 = vld [vmem:[#allocation7 + $0x3b8] sm:$0xff]
    %v1220 = vld [vmem:[#allocation7 + $0x3c0] sm:$0xff]
    %v1221 = vld [vmem:[#allocation7 + $0x3c8] sm:$0xff]
    %v1222 = vld [vmem:[#allocation7 + $0x3d0] sm:$0xff]
    %v1223 = vld [vmem:[#allocation7 + $0x3d8] sm:$0xff]
    %v1224 = vld [vmem:[#allocation7 + $0x3e0] sm:$0xff]
    %v1225 = vld [vmem:[#allocation7 + $0x3e8] sm:$0xff]
    %v1226 = vld [vmem:[#allocation7 + $0x3f0] sm:$0xff]
    %v1227 = vld [vmem:[#allocation7 + $0x3f8] sm:$0xff]
    %v1228 = vld [vmem:[#allocation7 + $0x400] sm:$0xff]
    %v1229 = vld [vmem:[#allocation7 + $0x408] sm:$0xff]
    %v1230 = vld [vmem:[#allocation7 + $0x410] sm:$0xff]
    %v1231 = vld [vmem:[#allocation7 + $0x418] sm:$0xff]
    %v1232 = vld [vmem:[#allocation7 + $0x420] sm:$0xff]
    %v1233 = vld [vmem:[#allocation7 + $0x428] sm:$0xff]
    %v1234 = vld [vmem:[#allocation7 + $0x430] sm:$0xff]
    %v1235 = vld [vmem:[#allocation7 + $0x438] sm:$0xff]
    %v1236 = vld [vmem:[#allocation7 + $0x440] sm:$0xff]
    %v1237 = vld [vmem:[#allocation7 + $0x448] sm:$0xff]
    %v1238 = vld [vmem:[#allocation7 + $0x450] sm:$0xff]
    %v1239 = vld [vmem:[#allocation7 + $0x458] sm:$0xff]
    %v1240 = vld [vmem:[#allocation7 + $0x460] sm:$0xff]
    %v1241 = vld [vmem:[#allocation7 + $0x468] sm:$0xff]
    %v1242 = vld [vmem:[#allocation7 + $0x470] sm:$0xff]
    %v1243 = vld [vmem:[#allocation7 + $0x478] sm:$0xff]
    %v1244 = vld [vmem:[#allocation7 + $0x480] sm:$0xff]
    %v1245 = vld [vmem:[#allocation7 + $0x488] sm:$0xff]
    %v1246 = vld [vmem:[#allocation7 + $0x490] sm:$0xff]
    %v1247 = vld [vmem:[#allocation7 + $0x498] sm:$0xff]
    %v1248 = vld [vmem:[#allocation7 + $0x4a0] sm:$0xff]
    %v1249 = vld [vmem:[#allocation7 + $0x4a8] sm:$0xff]
    %v1250 = vld [vmem:[#allocation7 + $0x4b0] sm:$0xff]
    %v1251 = vld [vmem:[#allocation7 + $0x4b8] sm:$0xff]
    %v1252 = vld [vmem:[#allocation7 + $0x4c0] sm:$0xff]
    %v1253 = vld [vmem:[#allocation7 + $0x4c8] sm:$0xff]
    %v1254 = vld [vmem:[#allocation7 + $0x4d0] sm:$0xff]
    %v1255 = vld [vmem:[#allocation7 + $0x4d8] sm:$0xff]
    %v1256 = vld [vmem:[#allocation7 + $0x4e0] sm:$0xff]
    %v1257 = vld [vmem:[#allocation7 + $0x4e8] sm:$0xff]
    %v1258 = vld [vmem:[#allocation7 + $0x4f0] sm:$0xff]
    %v1259 = vld [vmem:[#allocation7 + $0x4f8] sm:$0xff]
    %v1260 = vld [vmem:[#allocation7 + $0x500] sm:$0xff]
    %v1261 = vld [vmem:[#allocation7 + $0x508] sm:$0xff]
    %v1262 = vld [vmem:[#allocation7 + $0x510] sm:$0xff]
    %v1263 = vld [vmem:[#allocation7 + $0x518] sm:$0xff]
    %v1264 = vld [vmem:[#allocation7 + $0x520] sm:$0xff]
    %v1265 = vld [vmem:[#allocation7 + $0x528] sm:$0xff]
    %v1266 = vld [vmem:[#allocation7 + $0x530] sm:$0xff]
    %v1267 = vld [vmem:[#allocation7 + $0x538] sm:$0xff]
    %v1268 = vld [vmem:[#allocation7 + $0x540] sm:$0xff]
    %v1269 = vld [vmem:[#allocation7 + $0x548] sm:$0xff]
    %v1270 = vld [vmem:[#allocation7 + $0x550] sm:$0xff]
    %v1271 = vld [vmem:[#allocation7 + $0x558] sm:$0xff]
    %v1272 = vld [vmem:[#allocation7 + $0x560] sm:$0xff]
    %v1273 = vld [vmem:[#allocation7 + $0x568] sm:$0xff]
    %v1274 = vld [vmem:[#allocation7 + $0x570] sm:$0xff]
    %v1275 = vld [vmem:[#allocation7 + $0x578] sm:$0xff]
    %v1276 = vld [vmem:[#allocation7 + $0x580] sm:$0xff]
    %v1277 = vld [vmem:[#allocation7 + $0x588] sm:$0xff]
    %v1278 = vld [vmem:[#allocation7 + $0x590] sm:$0xff]
    %v1279 = vld [vmem:[#allocation7 + $0x598] sm:$0xff]
    %v1280 = vld [vmem:[#allocation7 + $0x5a0] sm:$0xff]
    %v1281 = vld [vmem:[#allocation7 + $0x5a8] sm:$0xff]
    %v1282 = vld [vmem:[#allocation7 + $0x5b0] sm:$0xff]
    %v1283 = vld [vmem:[#allocation7 + $0x5b8] sm:$0xff]
    %v1284 = vld [vmem:[#allocation7 + $0x5c0] sm:$0xff]
    %v1285 = vld [vmem:[#allocation7 + $0x5c8] sm:$0xff]
    %v1286 = vld [vmem:[#allocation7 + $0x5d0] sm:$0xff]
    %v1287 = vld [vmem:[#allocation7 + $0x5d8] sm:$0xff]
    %v1288 = vld [vmem:[#allocation7 + $0x5e0] sm:$0xff]
    %v1289 = vld [vmem:[#allocation7 + $0x5e8] sm:$0xff]
    %v1290 = vld [vmem:[#allocation7 + $0x5f0] sm:$0xff]
    %v1291 = vld [vmem:[#allocation7 + $0x5f8] sm:$0xff]
    %v1484 = vunpack.c.l.b16 %v1100
    %v1485 = vunpack.c.h.b16 %v1100
    %v1486 = vunpack.c.l.b16 %v1101
    %v1487 = vunpack.c.h.b16 %v1101
    %v1488 = vunpack.c.l.b16 %v1102
    %v1489 = vunpack.c.h.b16 %v1102
    %v1490 = vunpack.c.l.b16 %v1103
    %v1491 = vunpack.c.h.b16 %v1103
    %v1492 = vunpack.c.l.b16 %v1104
    %v1493 = vunpack.c.h.b16 %v1104
    %v1494 = vunpack.c.l.b16 %v1105
    %v1495 = vunpack.c.h.b16 %v1105
    %v1496 = vunpack.c.l.b16 %v1106
    %v1497 = vunpack.c.h.b16 %v1106
    %v1498 = vunpack.c.l.b16 %v1107
    %v1499 = vunpack.c.h.b16 %v1107
    %v1500 = vunpack.c.l.b16 %v1108
    %v1501 = vunpack.c.h.b16 %v1108
    %v1502 = vunpack.c.l.b16 %v1109
    %v1503 = vunpack.c.h.b16 %v1109
    %v1504 = vunpack.c.l.b16 %v1110
    %v1505 = vunpack.c.h.b16 %v1110
    %v1506 = vunpack.c.l.b16 %v1111
    %v1507 = vunpack.c.h.b16 %v1111
    %v1508 = vunpack.c.l.b16 %v1112
    %v1509 = vunpack.c.h.b16 %v1112
    %v1510 = vunpack.c.l.b16 %v1113
    %v1511 = vunpack.c.h.b16 %v1113
    %v1512 = vunpack.c.l.b16 %v1114
    %v1513 = vunpack.c.h.b16 %v1114
    %v1514 = vunpack.c.l.b16 %v1115
    %v1515 = vunpack.c.h.b16 %v1115
    %v1516 = vunpack.c.l.b16 %v1116
    %v1517 = vunpack.c.h.b16 %v1116
    %v1518 = vunpack.c.l.b16 %v1117
    %v1519 = vunpack.c.h.b16 %v1117
    %v1520 = vunpack.c.l.b16 %v1118
    %v1521 = vunpack.c.h.b16 %v1118
    %v1522 = vunpack.c.l.b16 %v1119
    %v1523 = vunpack.c.h.b16 %v1119
    %v1524 = vunpack.c.l.b16 %v1120
    %v1525 = vunpack.c.h.b16 %v1120
    %v1526 = vunpack.c.l.b16 %v1121
    %v1527 = vunpack.c.h.b16 %v1121
    %v1528 = vunpack.c.l.b16 %v1122
    %v1529 = vunpack.c.h.b16 %v1122
    %v1530 = vunpack.c.l.b16 %v1123
    %v1531 = vunpack.c.h.b16 %v1123
    %v1532 = vunpack.c.l.b16 %v1124
    %v1533 = vunpack.c.h.b16 %v1124
    %v1534 = vunpack.c.l.b16 %v1125
    %v1535 = vunpack.c.h.b16 %v1125
    %v1536 = vunpack.c.l.b16 %v1126
    %v1537 = vunpack.c.h.b16 %v1126
    %v1538 = vunpack.c.l.b16 %v1127
    %v1539 = vunpack.c.h.b16 %v1127
    %v1540 = vunpack.c.l.b16 %v1128
    %v1541 = vunpack.c.h.b16 %v1128
    %v1542 = vunpack.c.l.b16 %v1129
    %v1543 = vunpack.c.h.b16 %v1129
    %v1544 = vunpack.c.l.b16 %v1130
    %v1545 = vunpack.c.h.b16 %v1130
    %v1546 = vunpack.c.l.b16 %v1131
    %v1547 = vunpack.c.h.b16 %v1131
    %v1548 = vunpack.c.l.b16 %v1132
    %v1549 = vunpack.c.h.b16 %v1132
    %v1550 = vunpack.c.l.b16 %v1133
    %v1551 = vunpack.c.h.b16 %v1133
    %v1552 = vunpack.c.l.b16 %v1134
    %v1553 = vunpack.c.h.b16 %v1134
    %v1554 = vunpack.c.l.b16 %v1135
    %v1555 = vunpack.c.h.b16 %v1135
    %v1556 = vunpack.c.l.b16 %v1136
    %v1557 = vunpack.c.h.b16 %v1136
    %v1558 = vunpack.c.l.b16 %v1137
    %v1559 = vunpack.c.h.b16 %v1137
    %v1560 = vunpack.c.l.b16 %v1138
    %v1561 = vunpack.c.h.b16 %v1138
    %v1562 = vunpack.c.l.b16 %v1139
    %v1563 = vunpack.c.h.b16 %v1139
    %v1564 = vunpack.c.l.b16 %v1140
    %v1565 = vunpack.c.h.b16 %v1140
    %v1566 = vunpack.c.l.b16 %v1141
    %v1567 = vunpack.c.h.b16 %v1141
    %v1568 = vunpack.c.l.b16 %v1142
    %v1569 = vunpack.c.h.b16 %v1142
    %v1570 = vunpack.c.l.b16 %v1143
    %v1571 = vunpack.c.h.b16 %v1143
    %v1572 = vunpack.c.l.b16 %v1144
    %v1573 = vunpack.c.h.b16 %v1144
    %v1574 = vunpack.c.l.b16 %v1145
    %v1575 = vunpack.c.h.b16 %v1145
    %v1576 = vunpack.c.l.b16 %v1146
    %v1577 = vunpack.c.h.b16 %v1146
    %v1578 = vunpack.c.l.b16 %v1147
    %v1579 = vunpack.c.h.b16 %v1147
    %v1580 = vunpack.c.l.b16 %v1148
    %v1581 = vunpack.c.h.b16 %v1148
    %v1582 = vunpack.c.l.b16 %v1149
    %v1583 = vunpack.c.h.b16 %v1149
    %v1584 = vunpack.c.l.b16 %v1150
    %v1585 = vunpack.c.h.b16 %v1150
    %v1586 = vunpack.c.l.b16 %v1151
    %v1587 = vunpack.c.h.b16 %v1151
    %v1588 = vunpack.c.l.b16 %v1152
    %v1589 = vunpack.c.h.b16 %v1152
    %v1590 = vunpack.c.l.b16 %v1153
    %v1591 = vunpack.c.h.b16 %v1153
    %v1592 = vunpack.c.l.b16 %v1154
    %v1593 = vunpack.c.h.b16 %v1154
    %v1594 = vunpack.c.l.b16 %v1155
    %v1595 = vunpack.c.h.b16 %v1155
    %v1596 = vunpack.c.l.b16 %v1156
    %v1597 = vunpack.c.h.b16 %v1156
    %v1598 = vunpack.c.l.b16 %v1157
    %v1599 = vunpack.c.h.b16 %v1157
    %v1600 = vunpack.c.l.b16 %v1158
    %v1601 = vunpack.c.h.b16 %v1158
    %v1602 = vunpack.c.l.b16 %v1159
    %v1603 = vunpack.c.h.b16 %v1159
    %v1604 = vunpack.c.l.b16 %v1160
    %v1605 = vunpack.c.h.b16 %v1160
    %v1606 = vunpack.c.l.b16 %v1161
    %v1607 = vunpack.c.h.b16 %v1161
    %v1608 = vunpack.c.l.b16 %v1162
    %v1609 = vunpack.c.h.b16 %v1162
    %v1610 = vunpack.c.l.b16 %v1163
    %v1611 = vunpack.c.h.b16 %v1163
    %v1612 = vunpack.c.l.b16 %v1164
    %v1613 = vunpack.c.h.b16 %v1164
    %v1614 = vunpack.c.l.b16 %v1165
    %v1615 = vunpack.c.h.b16 %v1165
    %v1616 = vunpack.c.l.b16 %v1166
    %v1617 = vunpack.c.h.b16 %v1166
    %v1618 = vunpack.c.l.b16 %v1167
    %v1619 = vunpack.c.h.b16 %v1167
    %v1620 = vunpack.c.l.b16 %v1168
    %v1621 = vunpack.c.h.b16 %v1168
    %v1622 = vunpack.c.l.b16 %v1169
    %v1623 = vunpack.c.h.b16 %v1169
    %v1624 = vunpack.c.l.b16 %v1170
    %v1625 = vunpack.c.h.b16 %v1170
    %v1626 = vunpack.c.l.b16 %v1171
    %v1627 = vunpack.c.h.b16 %v1171
    %v1628 = vunpack.c.l.b16 %v1172
    %v1629 = vunpack.c.h.b16 %v1172
    %v1630 = vunpack.c.l.b16 %v1173
    %v1631 = vunpack.c.h.b16 %v1173
    %v1632 = vunpack.c.l.b16 %v1174
    %v1633 = vunpack.c.h.b16 %v1174
    %v1634 = vunpack.c.l.b16 %v1175
    %v1635 = vunpack.c.h.b16 %v1175
    %v1636 = vunpack.c.l.b16 %v1176
    %v1637 = vunpack.c.h.b16 %v1176
    %v1638 = vunpack.c.l.b16 %v1177
    %v1639 = vunpack.c.h.b16 %v1177
    %v1640 = vunpack.c.l.b16 %v1178
    %v1641 = vunpack.c.h.b16 %v1178
    %v1642 = vunpack.c.l.b16 %v1179
    %v1643 = vunpack.c.h.b16 %v1179
    %v1644 = vunpack.c.l.b16 %v1180
    %v1645 = vunpack.c.h.b16 %v1180
    %v1646 = vunpack.c.l.b16 %v1181
    %v1647 = vunpack.c.h.b16 %v1181
    %v1648 = vunpack.c.l.b16 %v1182
    %v1649 = vunpack.c.h.b16 %v1182
    %v1650 = vunpack.c.l.b16 %v1183
    %v1651 = vunpack.c.h.b16 %v1183
    %v1652 = vunpack.c.l.b16 %v1184
    %v1653 = vunpack.c.h.b16 %v1184
    %v1654 = vunpack.c.l.b16 %v1185
    %v1655 = vunpack.c.h.b16 %v1185
    %v1656 = vunpack.c.l.b16 %v1186
    %v1657 = vunpack.c.h.b16 %v1186
    %v1658 = vunpack.c.l.b16 %v1187
    %v1659 = vunpack.c.h.b16 %v1187
    %v1660 = vunpack.c.l.b16 %v1188
    %v1661 = vunpack.c.h.b16 %v1188
    %v1662 = vunpack.c.l.b16 %v1189
    %v1663 = vunpack.c.h.b16 %v1189
    %v1664 = vunpack.c.l.b16 %v1190
    %v1665 = vunpack.c.h.b16 %v1190
    %v1666 = vunpack.c.l.b16 %v1191
    %v1667 = vunpack.c.h.b16 %v1191
    %v1668 = vunpack.c.l.b16 %v1192
    %v1669 = vunpack.c.h.b16 %v1192
    %v1670 = vunpack.c.l.b16 %v1193
    %v1671 = vunpack.c.h.b16 %v1193
    %v1672 = vunpack.c.l.b16 %v1194
    %v1673 = vunpack.c.h.b16 %v1194
    %v1674 = vunpack.c.l.b16 %v1195
    %v1675 = vunpack.c.h.b16 %v1195
    %v1676 = vunpack.c.l.b16 %v1196
    %v1677 = vunpack.c.h.b16 %v1196
    %v1678 = vunpack.c.l.b16 %v1197
    %v1679 = vunpack.c.h.b16 %v1197
    %v1680 = vunpack.c.l.b16 %v1198
    %v1681 = vunpack.c.h.b16 %v1198
    %v1682 = vunpack.c.l.b16 %v1199
    %v1683 = vunpack.c.h.b16 %v1199
    %v1684 = vunpack.c.l.b16 %v1200
    %v1685 = vunpack.c.h.b16 %v1200
    %v1686 = vunpack.c.l.b16 %v1201
    %v1687 = vunpack.c.h.b16 %v1201
    %v1688 = vunpack.c.l.b16 %v1202
    %v1689 = vunpack.c.h.b16 %v1202
    %v1690 = vunpack.c.l.b16 %v1203
    %v1691 = vunpack.c.h.b16 %v1203
    %v1692 = vunpack.c.l.b16 %v1204
    %v1693 = vunpack.c.h.b16 %v1204
    %v1694 = vunpack.c.l.b16 %v1205
    %v1695 = vunpack.c.h.b16 %v1205
    %v1696 = vunpack.c.l.b16 %v1206
    %v1697 = vunpack.c.h.b16 %v1206
    %v1698 = vunpack.c.l.b16 %v1207
    %v1699 = vunpack.c.h.b16 %v1207
    %v1700 = vunpack.c.l.b16 %v1208
    %v1701 = vunpack.c.h.b16 %v1208
    %v1702 = vunpack.c.l.b16 %v1209
    %v1703 = vunpack.c.h.b16 %v1209
    %v1704 = vunpack.c.l.b16 %v1210
    %v1705 = vunpack.c.h.b16 %v1210
    %v1706 = vunpack.c.l.b16 %v1211
    %v1707 = vunpack.c.h.b16 %v1211
    %v1708 = vunpack.c.l.b16 %v1212
    %v1709 = vunpack.c.h.b16 %v1212
    %v1710 = vunpack.c.l.b16 %v1213
    %v1711 = vunpack.c.h.b16 %v1213
    %v1712 = vunpack.c.l.b16 %v1214
    %v1713 = vunpack.c.h.b16 %v1214
    %v1714 = vunpack.c.l.b16 %v1215
    %v1715 = vunpack.c.h.b16 %v1215
    %v1716 = vunpack.c.l.b16 %v1216
    %v1717 = vunpack.c.h.b16 %v1216
    %v1718 = vunpack.c.l.b16 %v1217
    %v1719 = vunpack.c.h.b16 %v1217
    %v1720 = vunpack.c.l.b16 %v1218
    %v1721 = vunpack.c.h.b16 %v1218
    %v1722 = vunpack.c.l.b16 %v1219
    %v1723 = vunpack.c.h.b16 %v1219
    %v1724 = vunpack.c.l.b16 %v1220
    %v1725 = vunpack.c.h.b16 %v1220
    %v1726 = vunpack.c.l.b16 %v1221
    %v1727 = vunpack.c.h.b16 %v1221
    %v1728 = vunpack.c.l.b16 %v1222
    %v1729 = vunpack.c.h.b16 %v1222
    %v1730 = vunpack.c.l.b16 %v1223
    %v1731 = vunpack.c.h.b16 %v1223
    %v1732 = vunpack.c.l.b16 %v1224
    %v1733 = vunpack.c.h.b16 %v1224
    %v1734 = vunpack.c.l.b16 %v1225
    %v1735 = vunpack.c.h.b16 %v1225
    %v1736 = vunpack.c.l.b16 %v1226
    %v1737 = vunpack.c.h.b16 %v1226
    %v1738 = vunpack.c.l.b16 %v1227
    %v1739 = vunpack.c.h.b16 %v1227
    %v1740 = vunpack.c.l.b16 %v1228
    %v1741 = vunpack.c.h.b16 %v1228
    %v1742 = vunpack.c.l.b16 %v1229
    %v1743 = vunpack.c.h.b16 %v1229
    %v1744 = vunpack.c.l.b16 %v1230
    %v1745 = vunpack.c.h.b16 %v1230
    %v1746 = vunpack.c.l.b16 %v1231
    %v1747 = vunpack.c.h.b16 %v1231
    %v1748 = vunpack.c.l.b16 %v1232
    %v1749 = vunpack.c.h.b16 %v1232
    %v1750 = vunpack.c.l.b16 %v1233
    %v1751 = vunpack.c.h.b16 %v1233
    %v1752 = vunpack.c.l.b16 %v1234
    %v1753 = vunpack.c.h.b16 %v1234
    %v1754 = vunpack.c.l.b16 %v1235
    %v1755 = vunpack.c.h.b16 %v1235
    %v1756 = vunpack.c.l.b16 %v1236
    %v1757 = vunpack.c.h.b16 %v1236
    %v1758 = vunpack.c.l.b16 %v1237
    %v1759 = vunpack.c.h.b16 %v1237
    %v1760 = vunpack.c.l.b16 %v1238
    %v1761 = vunpack.c.h.b16 %v1238
    %v1762 = vunpack.c.l.b16 %v1239
    %v1763 = vunpack.c.h.b16 %v1239
    %v1764 = vunpack.c.l.b16 %v1240
    %v1765 = vunpack.c.h.b16 %v1240
    %v1766 = vunpack.c.l.b16 %v1241
    %v1767 = vunpack.c.h.b16 %v1241
    %v1768 = vunpack.c.l.b16 %v1242
    %v1769 = vunpack.c.h.b16 %v1242
    %v1770 = vunpack.c.l.b16 %v1243
    %v1771 = vunpack.c.h.b16 %v1243
    %v1772 = vunpack.c.l.b16 %v1244
    %v1773 = vunpack.c.h.b16 %v1244
    %v1774 = vunpack.c.l.b16 %v1245
    %v1775 = vunpack.c.h.b16 %v1245
    %v1776 = vunpack.c.l.b16 %v1246
    %v1777 = vunpack.c.h.b16 %v1246
    %v1778 = vunpack.c.l.b16 %v1247
    %v1779 = vunpack.c.h.b16 %v1247
    %v1780 = vunpack.c.l.b16 %v1248
    %v1781 = vunpack.c.h.b16 %v1248
    %v1782 = vunpack.c.l.b16 %v1249
    %v1783 = vunpack.c.h.b16 %v1249
    %v1784 = vunpack.c.l.b16 %v1250
    %v1785 = vunpack.c.h.b16 %v1250
    %v1786 = vunpack.c.l.b16 %v1251
    %v1787 = vunpack.c.h.b16 %v1251
    %v1788 = vunpack.c.l.b16 %v1252
    %v1789 = vunpack.c.h.b16 %v1252
    %v1790 = vunpack.c.l.b16 %v1253
    %v1791 = vunpack.c.h.b16 %v1253
    %v1792 = vunpack.c.l.b16 %v1254
    %v1793 = vunpack.c.h.b16 %v1254
    %v1794 = vunpack.c.l.b16 %v1255
    %v1795 = vunpack.c.h.b16 %v1255
    %v1796 = vunpack.c.l.b16 %v1256
    %v1797 = vunpack.c.h.b16 %v1256
    %v1798 = vunpack.c.l.b16 %v1257
    %v1799 = vunpack.c.h.b16 %v1257
    %v1800 = vunpack.c.l.b16 %v1258
    %v1801 = vunpack.c.h.b16 %v1258
    %v1802 = vunpack.c.l.b16 %v1259
    %v1803 = vunpack.c.h.b16 %v1259
    %v1804 = vunpack.c.l.b16 %v1260
    %v1805 = vunpack.c.h.b16 %v1260
    %v1806 = vunpack.c.l.b16 %v1261
    %v1807 = vunpack.c.h.b16 %v1261
    %v1808 = vunpack.c.l.b16 %v1262
    %v1809 = vunpack.c.h.b16 %v1262
    %v1810 = vunpack.c.l.b16 %v1263
    %v1811 = vunpack.c.h.b16 %v1263
    %v1812 = vunpack.c.l.b16 %v1264
    %v1813 = vunpack.c.h.b16 %v1264
    %v1814 = vunpack.c.l.b16 %v1265
    %v1815 = vunpack.c.h.b16 %v1265
    %v1816 = vunpack.c.l.b16 %v1266
    %v1817 = vunpack.c.h.b16 %v1266
    %v1818 = vunpack.c.l.b16 %v1267
    %v1819 = vunpack.c.h.b16 %v1267
    %v1820 = vunpack.c.l.b16 %v1268
    %v1821 = vunpack.c.h.b16 %v1268
    %v1822 = vunpack.c.l.b16 %v1269
    %v1823 = vunpack.c.h.b16 %v1269
    %v1824 = vunpack.c.l.b16 %v1270
    %v1825 = vunpack.c.h.b16 %v1270
    %v1826 = vunpack.c.l.b16 %v1271
    %v1827 = vunpack.c.h.b16 %v1271
    %v1828 = vunpack.c.l.b16 %v1272
    %v1829 = vunpack.c.h.b16 %v1272
    %v1830 = vunpack.c.l.b16 %v1273
    %v1831 = vunpack.c.h.b16 %v1273
    %v1832 = vunpack.c.l.b16 %v1274
    %v1833 = vunpack.c.h.b16 %v1274
    %v1834 = vunpack.c.l.b16 %v1275
    %v1835 = vunpack.c.h.b16 %v1275
    %v1836 = vunpack.c.l.b16 %v1276
    %v1837 = vunpack.c.h.b16 %v1276
    %v1838 = vunpack.c.l.b16 %v1277
    %v1839 = vunpack.c.h.b16 %v1277
    %v1840 = vunpack.c.l.b16 %v1278
    %v1841 = vunpack.c.h.b16 %v1278
    %v1842 = vunpack.c.l.b16 %v1279
    %v1843 = vunpack.c.h.b16 %v1279
    %v1844 = vunpack.c.l.b16 %v1280
    %v1845 = vunpack.c.h.b16 %v1280
    %v1846 = vunpack.c.l.b16 %v1281
    %v1847 = vunpack.c.h.b16 %v1281
    %v1848 = vunpack.c.l.b16 %v1282
    %v1849 = vunpack.c.h.b16 %v1282
    %v1850 = vunpack.c.l.b16 %v1283
    %v1851 = vunpack.c.h.b16 %v1283
    %v1852 = vunpack.c.l.b16 %v1284
    %v1853 = vunpack.c.h.b16 %v1284
    %v1854 = vunpack.c.l.b16 %v1285
    %v1855 = vunpack.c.h.b16 %v1285
    %v1856 = vunpack.c.l.b16 %v1286
    %v1857 = vunpack.c.h.b16 %v1286
    %v1858 = vunpack.c.l.b16 %v1287
    %v1859 = vunpack.c.h.b16 %v1287
    %v1860 = vunpack.c.l.b16 %v1288
    %v1861 = vunpack.c.h.b16 %v1288
    %v1862 = vunpack.c.l.b16 %v1289
    %v1863 = vunpack.c.h.b16 %v1289
    %v1864 = vunpack.c.l.b16 %v1290
    %v1865 = vunpack.c.h.b16 %v1290
    %v1866 = vunpack.c.l.b16 %v1291
    %v1867 = vunpack.c.h.b16 %v1291
    %v1868 = vpack.c.b16 %v1488, %v1484
    %v1869 = vpack.c.b16 %v1489, %v1485
    %v1870 = vpack.c.b16 %v1490, %v1486
    %v1871 = vpack.c.b16 %v1491, %v1487
    %v1872 = vpack.c.b16 %v1496, %v1492
    %v1873 = vpack.c.b16 %v1497, %v1493
    %v1874 = vpack.c.b16 %v1498, %v1494
    %v1875 = vpack.c.b16 %v1499, %v1495
    %v1876 = vpack.c.b16 %v1504, %v1500
    %v1877 = vpack.c.b16 %v1505, %v1501
    %v1878 = vpack.c.b16 %v1506, %v1502
    %v1879 = vpack.c.b16 %v1507, %v1503
    %v1880 = vpack.c.b16 %v1512, %v1508
    %v1881 = vpack.c.b16 %v1513, %v1509
    %v1882 = vpack.c.b16 %v1514, %v1510
    %v1883 = vpack.c.b16 %v1515, %v1511
    %v1884 = vpack.c.b16 %v1520, %v1516
    %v1885 = vpack.c.b16 %v1521, %v1517
    %v1886 = vpack.c.b16 %v1522, %v1518
    %v1887 = vpack.c.b16 %v1523, %v1519
    %v1888 = vpack.c.b16 %v1528, %v1524
    %v1889 = vpack.c.b16 %v1529, %v1525
    %v1890 = vpack.c.b16 %v1530, %v1526
    %v1891 = vpack.c.b16 %v1531, %v1527
    %v1892 = vpack.c.b16 %v1536, %v1532
    %v1893 = vpack.c.b16 %v1537, %v1533
    %v1894 = vpack.c.b16 %v1538, %v1534
    %v1895 = vpack.c.b16 %v1539, %v1535
    %v1896 = vpack.c.b16 %v1544, %v1540
    %v1897 = vpack.c.b16 %v1545, %v1541
    %v1898 = vpack.c.b16 %v1546, %v1542
    %v1899 = vpack.c.b16 %v1547, %v1543
    %v1900 = vpack.c.b16 %v1552, %v1548
    %v1901 = vpack.c.b16 %v1553, %v1549
    %v1902 = vpack.c.b16 %v1554, %v1550
    %v1903 = vpack.c.b16 %v1555, %v1551
    %v1904 = vpack.c.b16 %v1560, %v1556
    %v1905 = vpack.c.b16 %v1561, %v1557
    %v1906 = vpack.c.b16 %v1562, %v1558
    %v1907 = vpack.c.b16 %v1563, %v1559
    %v1908 = vpack.c.b16 %v1568, %v1564
    %v1909 = vpack.c.b16 %v1569, %v1565
    %v1910 = vpack.c.b16 %v1570, %v1566
    %v1911 = vpack.c.b16 %v1571, %v1567
    %v1912 = vpack.c.b16 %v1576, %v1572
    %v1913 = vpack.c.b16 %v1577, %v1573
    %v1914 = vpack.c.b16 %v1578, %v1574
    %v1915 = vpack.c.b16 %v1579, %v1575
    %v1916 = vpack.c.b16 %v1584, %v1580
    %v1917 = vpack.c.b16 %v1585, %v1581
    %v1918 = vpack.c.b16 %v1586, %v1582
    %v1919 = vpack.c.b16 %v1587, %v1583
    %v1920 = vpack.c.b16 %v1592, %v1588
    %v1921 = vpack.c.b16 %v1593, %v1589
    %v1922 = vpack.c.b16 %v1594, %v1590
    %v1923 = vpack.c.b16 %v1595, %v1591
    %v1924 = vpack.c.b16 %v1600, %v1596
    %v1925 = vpack.c.b16 %v1601, %v1597
    %v1926 = vpack.c.b16 %v1602, %v1598
    %v1927 = vpack.c.b16 %v1603, %v1599
    %v1928 = vpack.c.b16 %v1608, %v1604
    %v1929 = vpack.c.b16 %v1609, %v1605
    %v1930 = vpack.c.b16 %v1610, %v1606
    %v1931 = vpack.c.b16 %v1611, %v1607
    %v1932 = vpack.c.b16 %v1616, %v1612
    %v1933 = vpack.c.b16 %v1617, %v1613
    %v1934 = vpack.c.b16 %v1618, %v1614
    %v1935 = vpack.c.b16 %v1619, %v1615
    %v1936 = vpack.c.b16 %v1624, %v1620
    %v1937 = vpack.c.b16 %v1625, %v1621
    %v1938 = vpack.c.b16 %v1626, %v1622
    %v1939 = vpack.c.b16 %v1627, %v1623
    %v1940 = vpack.c.b16 %v1632, %v1628
    %v1941 = vpack.c.b16 %v1633, %v1629
    %v1942 = vpack.c.b16 %v1634, %v1630
    %v1943 = vpack.c.b16 %v1635, %v1631
    %v1944 = vpack.c.b16 %v1640, %v1636
    %v1945 = vpack.c.b16 %v1641, %v1637
    %v1946 = vpack.c.b16 %v1642, %v1638
    %v1947 = vpack.c.b16 %v1643, %v1639
    %v1948 = vpack.c.b16 %v1648, %v1644
    %v1949 = vpack.c.b16 %v1649, %v1645
    %v1950 = vpack.c.b16 %v1650, %v1646
    %v1951 = vpack.c.b16 %v1651, %v1647
    %v1952 = vpack.c.b16 %v1656, %v1652
    %v1953 = vpack.c.b16 %v1657, %v1653
    %v1954 = vpack.c.b16 %v1658, %v1654
    %v1955 = vpack.c.b16 %v1659, %v1655
    %v1956 = vpack.c.b16 %v1664, %v1660
    %v1957 = vpack.c.b16 %v1665, %v1661
    %v1958 = vpack.c.b16 %v1666, %v1662
    %v1959 = vpack.c.b16 %v1667, %v1663
    %v1960 = vpack.c.b16 %v1672, %v1668
    %v1961 = vpack.c.b16 %v1673, %v1669
    %v1962 = vpack.c.b16 %v1674, %v1670
    %v1963 = vpack.c.b16 %v1675, %v1671
    %v1964 = vpack.c.b16 %v1680, %v1676
    %v1965 = vpack.c.b16 %v1681, %v1677
    %v1966 = vpack.c.b16 %v1682, %v1678
    %v1967 = vpack.c.b16 %v1683, %v1679
    %v1968 = vpack.c.b16 %v1688, %v1684
    %v1969 = vpack.c.b16 %v1689, %v1685
    %v1970 = vpack.c.b16 %v1690, %v1686
    %v1971 = vpack.c.b16 %v1691, %v1687
    %v1972 = vpack.c.b16 %v1696, %v1692
    %v1973 = vpack.c.b16 %v1697, %v1693
    %v1974 = vpack.c.b16 %v1698, %v1694
    %v1975 = vpack.c.b16 %v1699, %v1695
    %v1976 = vpack.c.b16 %v1704, %v1700
    %v1977 = vpack.c.b16 %v1705, %v1701
    %v1978 = vpack.c.b16 %v1706, %v1702
    %v1979 = vpack.c.b16 %v1707, %v1703
    %v1980 = vpack.c.b16 %v1712, %v1708
    %v1981 = vpack.c.b16 %v1713, %v1709
    %v1982 = vpack.c.b16 %v1714, %v1710
    %v1983 = vpack.c.b16 %v1715, %v1711
    %v1984 = vpack.c.b16 %v1720, %v1716
    %v1985 = vpack.c.b16 %v1721, %v1717
    %v1986 = vpack.c.b16 %v1722, %v1718
    %v1987 = vpack.c.b16 %v1723, %v1719
    %v1988 = vpack.c.b16 %v1728, %v1724
    %v1989 = vpack.c.b16 %v1729, %v1725
    %v1990 = vpack.c.b16 %v1730, %v1726
    %v1991 = vpack.c.b16 %v1731, %v1727
    %v1992 = vpack.c.b16 %v1736, %v1732
    %v1993 = vpack.c.b16 %v1737, %v1733
    %v1994 = vpack.c.b16 %v1738, %v1734
    %v1995 = vpack.c.b16 %v1739, %v1735
    %v1996 = vpack.c.b16 %v1744, %v1740
    %v1997 = vpack.c.b16 %v1745, %v1741
    %v1998 = vpack.c.b16 %v1746, %v1742
    %v1999 = vpack.c.b16 %v1747, %v1743
    %v2000 = vpack.c.b16 %v1752, %v1748
    %v2001 = vpack.c.b16 %v1753, %v1749
    %v2002 = vpack.c.b16 %v1754, %v1750
    %v2003 = vpack.c.b16 %v1755, %v1751
    %v2004 = vpack.c.b16 %v1760, %v1756
    %v2005 = vpack.c.b16 %v1761, %v1757
    %v2006 = vpack.c.b16 %v1762, %v1758
    %v2007 = vpack.c.b16 %v1763, %v1759
    %v2008 = vpack.c.b16 %v1768, %v1764
    %v2009 = vpack.c.b16 %v1769, %v1765
    %v2010 = vpack.c.b16 %v1770, %v1766
    %v2011 = vpack.c.b16 %v1771, %v1767
    %v2012 = vpack.c.b16 %v1776, %v1772
    %v2013 = vpack.c.b16 %v1777, %v1773
    %v2014 = vpack.c.b16 %v1778, %v1774
    %v2015 = vpack.c.b16 %v1779, %v1775
    %v2016 = vpack.c.b16 %v1784, %v1780
    %v2017 = vpack.c.b16 %v1785, %v1781
    %v2018 = vpack.c.b16 %v1786, %v1782
    %v2019 = vpack.c.b16 %v1787, %v1783
    %v2020 = vpack.c.b16 %v1792, %v1788
    %v2021 = vpack.c.b16 %v1793, %v1789
    %v2022 = vpack.c.b16 %v1794, %v1790
    %v2023 = vpack.c.b16 %v1795, %v1791
    %v2024 = vpack.c.b16 %v1800, %v1796
    %v2025 = vpack.c.b16 %v1801, %v1797
    %v2026 = vpack.c.b16 %v1802, %v1798
    %v2027 = vpack.c.b16 %v1803, %v1799
    %v2028 = vpack.c.b16 %v1808, %v1804
    %v2029 = vpack.c.b16 %v1809, %v1805
    %v2030 = vpack.c.b16 %v1810, %v1806
    %v2031 = vpack.c.b16 %v1811, %v1807
    %v2032 = vpack.c.b16 %v1816, %v1812
    %v2033 = vpack.c.b16 %v1817, %v1813
    %v2034 = vpack.c.b16 %v1818, %v1814
    %v2035 = vpack.c.b16 %v1819, %v1815
    %v2036 = vpack.c.b16 %v1824, %v1820
    %v2037 = vpack.c.b16 %v1825, %v1821
    %v2038 = vpack.c.b16 %v1826, %v1822
    %v2039 = vpack.c.b16 %v1827, %v1823
    %v2040 = vpack.c.b16 %v1832, %v1828
    %v2041 = vpack.c.b16 %v1833, %v1829
    %v2042 = vpack.c.b16 %v1834, %v1830
    %v2043 = vpack.c.b16 %v1835, %v1831
    %v2044 = vpack.c.b16 %v1840, %v1836
    %v2045 = vpack.c.b16 %v1841, %v1837
    %v2046 = vpack.c.b16 %v1842, %v1838
    %v2047 = vpack.c.b16 %v1843, %v1839
    %v2048 = vpack.c.b16 %v1848, %v1844
    %v2049 = vpack.c.b16 %v1849, %v1845
    %v2050 = vpack.c.b16 %v1850, %v1846
    %v2051 = vpack.c.b16 %v1851, %v1847
    %v2052 = vpack.c.b16 %v1856, %v1852
    %v2053 = vpack.c.b16 %v1857, %v1853
    %v2054 = vpack.c.b16 %v1858, %v1854
    %v2055 = vpack.c.b16 %v1859, %v1855
    %v2056 = vpack.c.b16 %v1864, %v1860
    %v2057 = vpack.c.b16 %v1865, %v1861
    %v2058 = vpack.c.b16 %v1866, %v1862
    %v2059 = vpack.c.b16 %v1867, %v1863
    %2252 = vmatprep.subr.bf16.mxu0 %v1869
    %2253 = vmatpush1.bf16.msra.mxu0 %v1868
    %2254 = vmatprep.subr.bf16.mxu0 %v1873
    %2255 = vmatpush1.bf16.msra.mxu0 %v1872
    %2256 = vmatprep.subr.bf16.mxu0 %v1877
    %2257 = vmatpush1.bf16.msra.mxu0 %v1876
    %2258 = vmatprep.subr.bf16.mxu0 %v1881
    %2259 = vmatpush1.bf16.msra.mxu0 %v1880
    %2260 = vmatprep.subr.bf16.mxu0 %v1885
    %2261 = vmatpush1.bf16.msra.mxu0 %v1884
    %2262 = vmatprep.subr.bf16.mxu0 %v1889
    %2263 = vmatpush1.bf16.msra.mxu0 %v1888
    %2264 = vmatprep.subr.bf16.mxu0 %v1893
    %2265 = vmatpush1.bf16.msra.mxu0 %v1892
    %2266 = vmatprep.subr.bf16.mxu0 %v1897
    %2267 = vmatpush1.bf16.msra.mxu0 %v1896
    %2268 = vmatprep.subr.bf16.mxu0 %v1901
    %2269 = vmatpush1.bf16.msra.mxu0 %v1900
    %2270 = vmatprep.subr.bf16.mxu0 %v1905
    %2271 = vmatpush1.bf16.msra.mxu0 %v1904
    %2272 = vmatprep.subr.bf16.mxu0 %v1909
    %2273 = vmatpush1.bf16.msra.mxu0 %v1908
    %2274 = vmatprep.subr.bf16.mxu0 %v1913
    %2275 = vmatpush1.bf16.msra.mxu0 %v1912
    %2276 = vmatprep.subr.bf16.mxu0 %v1917
    %2277 = vmatpush1.bf16.msra.mxu0 %v1916
    %2278 = vmatprep.subr.bf16.mxu0 %v1921
    %2279 = vmatpush1.bf16.msra.mxu0 %v1920
    %2280 = vmatprep.subr.bf16.mxu0 %v1925
    %2281 = vmatpush1.bf16.msra.mxu0 %v1924
    %2282 = vmatprep.subr.bf16.mxu0 %v1929
    %2283 = vmatpush1.bf16.msra.mxu0 %v1928
    %2284 = vmatprep.mubr.bf16.mxu0 %v1087
    %2285 = vmatmul.mubr.bf16.gmra.mrb[0].mxu0 %v1086
    %v2286 = vpop.f32.mrb[0].mxu0
    %v2287 = vadd.f32 0.0, %v2286
    %v2288 = vpop.f32.mrb[0].mxu0
    %v2289 = vadd.f32 0.0, %v2288
    %v2290 = vpop.f32.mrb[0].mxu0
    %v2291 = vadd.f32 0.0, %v2290
    %v2292 = vpop.f32.mrb[0].mxu0
    %v2293 = vadd.f32 0.0, %v2292
    %2294 = vmatprep.mubr.bf16.mxu0 %v1091
    %2295 = vmatmul.mubr.bf16.gmra.mrb[0].mxu0 %v1090
    %v2296 = vpop.f32.mrb[0].mxu0
    %v2297 = vadd.f32 0.0, %v2296
    %v2298 = vpop.f32.mrb[0].mxu0
    %v2299 = vadd.f32 0.0, %v2298
    %v2300 = vpop.f32.mrb[0].mxu0
    %v2301 = vadd.f32 0.0, %v2300
    %v2302 = vpop.f32.mrb[0].mxu0
    %v2303 = vadd.f32 0.0, %v2302
    %2304 = vmatprep.mubr.bf16.mxu0 %v1095
    %2305 = vmatmul.mubr.bf16.gmra.mrb[0].mxu0 %v1094
    %v2306 = vpop.f32.mrb[0].mxu0
    %v2307 = vadd.f32 0.0, %v2306
    %v2308 = vpop.f32.mrb[0].mxu0
    %v2309 = vadd.f32 0.0, %v2308
    %v2310 = vpop.f32.mrb[0].mxu0
    %v2311 = vadd.f32 0.0, %v2310
    %v2312 = vpop.f32.mrb[0].mxu0
    %v2313 = vadd.f32 0.0, %v2312
    %2314 = vdwg.mxu0
    %2315 = vmatprep.subr.bf16.mxu0 %v1933
    %2316 = vmatpush1.bf16.msra.mxu0 %v1932
    %2317 = vmatprep.subr.bf16.mxu0 %v1937
    %2318 = vmatpush1.bf16.msra.mxu0 %v1936
    %2319 = vmatprep.subr.bf16.mxu0 %v1941
    %2320 = vmatpush1.bf16.msra.mxu0 %v1940
    %2321 = vmatprep.subr.bf16.mxu0 %v1945
    %2322 = vmatpush1.bf16.msra.mxu0 %v1944
    %2323 = vmatprep.subr.bf16.mxu0 %v1949
    %2324 = vmatpush1.bf16.msra.mxu0 %v1948
    %2325 = vmatprep.subr.bf16.mxu0 %v1953
    %2326 = vmatpush1.bf16.msra.mxu0 %v1952
    %2327 = vmatprep.subr.bf16.mxu0 %v1957
    %2328 = vmatpush1.bf16.msra.mxu0 %v1956
    %2329 = vmatprep.subr.bf16.mxu0 %v1961
    %2330 = vmatpush1.bf16.msra.mxu0 %v1960
    %2331 = vmatprep.subr.bf16.mxu0 %v1965
    %2332 = vmatpush1.bf16.msra.mxu0 %v1964
    %2333 = vmatprep.subr.bf16.mxu0 %v1969
    %2334 = vmatpush1.bf16.msra.mxu0 %v1968
    %2335 = vmatprep.subr.bf16.mxu0 %v1973
    %2336 = vmatpush1.bf16.msra.mxu0 %v1972
    %2337 = vmatprep.subr.bf16.mxu0 %v1977
    %2338 = vmatpush1.bf16.msra.mxu0 %v1976
    %2339 = vmatprep.subr.bf16.mxu0 %v1981
    %2340 = vmatpush1.bf16.msra.mxu0 %v1980
    %2341 = vmatprep.subr.bf16.mxu0 %v1985
    %2342 = vmatpush1.bf16.msra.mxu0 %v1984
    %2343 = vmatprep.subr.bf16.mxu0 %v1989
    %2344 = vmatpush1.bf16.msra.mxu0 %v1988
    %2345 = vmatprep.subr.bf16.mxu0 %v1993
    %2346 = vmatpush1.bf16.msra.mxu0 %v1992
    %2347 = vmatprep.mubr.bf16.mxu0 %v1089
    %2348 = vmatmul.mubr.bf16.gmra.mrb[0].mxu0 %v1088
    %v2349 = vpop.f32.mrb[0].mxu0
    %v2350 = vadd.f32 %v2287, %v2349
    %v2351 = vpop.f32.mrb[0].mxu0
    %v2352 = vadd.f32 %v2289, %v2351
    %v2353 = vpop.f32.mrb[0].mxu0
    %v2354 = vadd.f32 %v2291, %v2353
    %v2355 = vpop.f32.mrb[0].mxu0
    %v2356 = vadd.f32 %v2293, %v2355
    %2357 = vmatprep.mubr.bf16.mxu0 %v1093
    %2358 = vmatmul.mubr.bf16.gmra.mrb[0].mxu0 %v1092
    %v2359 = vpop.f32.mrb[0].mxu0
    %v2360 = vadd.f32 %v2297, %v2359
    %v2361 = vpop.f32.mrb[0].mxu0
    %v2362 = vadd.f32 %v2299, %v2361
    %v2363 = vpop.f32.mrb[0].mxu0
    %v2364 = vadd.f32 %v2301, %v2363
    %v2365 = vpop.f32.mrb[0].mxu0
    %v2366 = vadd.f32 %v2303, %v2365
    %2367 = vmatprep.mubr.bf16.mxu0 %v1097
    %2368 = vmatmul.mubr.bf16.gmra.mrb[0].mxu0 %v1096
    %v2369 = vpop.f32.mrb[0].mxu0
    %v2370 = vadd.f32 %v2307, %v2369
    %v2371 = vpop.f32.mrb[0].mxu0
    %v2372 = vadd.f32 %v2309, %v2371
    %v2373 = vpop.f32.mrb[0].mxu0
    %v2374 = vadd.f32 %v2311, %v2373
    %v2375 = vpop.f32.mrb[0].mxu0
    %v2376 = vadd.f32 %v2313, %v2375
    %2377 = vdwg.mxu0
    %2378 = vmatprep.subr.bf16.mxu0 %v1997
    %2379 = vmatpush1.bf16.msra.mxu0 %v1996
    %2380 = vmatprep.subr.bf16.mxu0 %v2001
    %2381 = vmatpush1.bf16.msra.mxu0 %v2000
    %2382 = vmatprep.subr.bf16.mxu0 %v2005
    %2383 = vmatpush1.bf16.msra.mxu0 %v2004
    %2384 = vmatprep.subr.bf16.mxu0 %v2009
    %2385 = vmatpush1.bf16.msra.mxu0 %v2008
    %2386 = vmatprep.subr.bf16.mxu0 %v2013
    %2387 = vmatpush1.bf16.msra.mxu0 %v2012
    %2388 = vmatprep.subr.bf16.mxu0 %v2017
    %2389 = vmatpush1.bf16.msra.mxu0 %v2016
    %2390 = vmatprep.subr.bf16.mxu0 %v2021
    %2391 = vmatpush1.bf16.msra.mxu0 %v2020
    %2392 = vmatprep.subr.bf16.mxu0 %v2025
    %2393 = vmatpush1.bf16.msra.mxu0 %v2024
    %2394 = vmatprep.subr.bf16.mxu0 %v2029
    %2395 = vmatpush1.bf16.msra.mxu0 %v2028
    %2396 = vmatprep.subr.bf16.mxu0 %v2033
    %2397 = vmatpush1.bf16.msra.mxu0 %v2032
    %2398 = vmatprep.subr.bf16.mxu0 %v2037
    %2399 = vmatpush1.bf16.msra.mxu0 %v2036
    %2400 = vmatprep.subr.bf16.mxu0 %v2041
    %2401 = vmatpush1.bf16.msra.mxu0 %v2040
    %2402 = vmatprep.subr.bf16.mxu0 %v2045
    %2403 = vmatpush1.bf16.msra.mxu0 %v2044
    %2404 = vmatprep.subr.bf16.mxu0 %v2049
    %2405 = vmatpush1.bf16.msra.mxu0 %v2048
    %2406 = vmatprep.subr.bf16.mxu0 %v2053
    %2407 = vmatpush1.bf16.msra.mxu0 %v2052
    %2408 = vmatprep.subr.bf16.mxu0 %v2057
    %2409 = vmatpush1.bf16.msra.mxu0 %v2056
    %2410 = vmatprep.mubr.bf16.mxu0 %v1091
    %2411 = vmatmul.mubr.bf16.gmra.mrb[0].mxu0 %v1090
    %v2412 = vpop.f32.mrb[0].mxu0
    %v2413 = vadd.f32 %v2350, %v2412
    %v2414 = vpop.f32.mrb[0].mxu0
    %v2415 = vadd.f32 %v2352, %v2414
    %v2416 = vpop.f32.mrb[0].mxu0
    %v2417 = vadd.f32 %v2354, %v2416
    %v2418 = vpop.f32.mrb[0].mxu0
    %v2419 = vadd.f32 %v2356, %v2418
    %2420 = vmatprep.mubr.bf16.mxu0 %v1095
    %2421 = vmatmul.mubr.bf16.gmra.mrb[0].mxu0 %v1094
    %v2422 = vpop.f32.mrb[0].mxu0
    %v2423 = vadd.f32 %v2360, %v2422
    %v2424 = vpop.f32.mrb[0].mxu0
    %v2425 = vadd.f32 %v2362, %v2424
    %v2426 = vpop.f32.mrb[0].mxu0
    %v2427 = vadd.f32 %v2364, %v2426
    %v2428 = vpop.f32.mrb[0].mxu0
    %v2429 = vadd.f32 %v2366, %v2428
    %2430 = vmatprep.mubr.bf16.mxu0 %v1099
    %2431 = vmatmul.mubr.bf16.gmra.mrb[0].mxu0 %v1098
    %v2432 = vpop.f32.mrb[0].mxu0
    %v2433 = vadd.f32 %v2370, %v2432
    %v2434 = vpop.f32.mrb[0].mxu0
    %v2435 = vadd.f32 %v2372, %v2434
    %v2436 = vpop.f32.mrb[0].mxu0
    %v2437 = vadd.f32 %v2374, %v2436
    %v2438 = vpop.f32.mrb[0].mxu0
    %v2439 = vadd.f32 %v2376, %v2438
    %2440 = vdwg.mxu0
    %2441 = vmatprep.subr.bf16.mxu0 %v1871
    %2442 = vmatpush1.bf16.msra.mxu0 %v1870
    %2443 = vmatprep.subr.bf16.mxu0 %v1875
    %2444 = vmatpush1.bf16.msra.mxu0 %v1874
    %2445 = vmatprep.subr.bf16.mxu0 %v1879
    %2446 = vmatpush1.bf16.msra.mxu0 %v1878
    %2447 = vmatprep.subr.bf16.mxu0 %v1883
    %2448 = vmatpush1.bf16.msra.mxu0 %v1882
    %2449 = vmatprep.subr.bf16.mxu0 %v1887
    %2450 = vmatpush1.bf16.msra.mxu0 %v1886
    %2451 = vmatprep.subr.bf16.mxu0 %v1891
    %2452 = vmatpush1.bf16.msra.mxu0 %v1890
    %2453 = vmatprep.subr.bf16.mxu0 %v1895
    %2454 = vmatpush1.bf16.msra.mxu0 %v1894
    %2455 = vmatprep.subr.bf16.mxu0 %v1899
    %2456 = vmatpush1.bf16.msra.mxu0 %v1898
    %2457 = vmatprep.subr.bf16.mxu0 %v1903
    %2458 = vmatpush1.bf16.msra.mxu0 %v1902
    %2459 = vmatprep.subr.bf16.mxu0 %v1907
    %2460 = vmatpush1.bf16.msra.mxu0 %v1906
    %2461 = vmatprep.subr.bf16.mxu0 %v1911
    %2462 = vmatpush1.bf16.msra.mxu0 %v1910
    %2463 = vmatprep.subr.bf16.mxu0 %v1915
    %2464 = vmatpush1.bf16.msra.mxu0 %v1914
    %2465 = vmatprep.subr.bf16.mxu0 %v1919
    %2466 = vmatpush1.bf16.msra.mxu0 %v1918
    %2467 = vmatprep.subr.bf16.mxu0 %v1923
    %2468 = vmatpush1.bf16.msra.mxu0 %v1922
    %2469 = vmatprep.subr.bf16.mxu0 %v1927
    %2470 = vmatpush1.bf16.msra.mxu0 %v1926
    %2471 = vmatprep.subr.bf16.mxu0 %v1931
    %2472 = vmatpush1.bf16.msra.mxu0 %v1930
    %2473 = vmatprep.mubr.bf16.mxu0 %v1087
    %2474 = vmatmul.mubr.bf16.gmra.mrb[0].mxu0 %v1086
    %v2475 = vpop.f32.mrb[0].mxu0
    %v2476 = vadd.f32 0.0, %v2475
    %v2477 = vpop.f32.mrb[0].mxu0
    %v2478 = vadd.f32 0.0, %v2477
    %v2479 = vpop.f32.mrb[0].mxu0
    %v2480 = vadd.f32 0.0, %v2479
    %v2481 = vpop.f32.mrb[0].mxu0
    %v2482 = vadd.f32 0.0, %v2481
    %2483 = vmatprep.mubr.bf16.mxu0 %v1091
    %2484 = vmatmul.mubr.bf16.gmra.mrb[0].mxu0 %v1090
    %v2485 = vpop.f32.mrb[0].mxu0
    %v2486 = vadd.f32 0.0, %v2485
    %v2487 = vpop.f32.mrb[0].mxu0
    %v2488 = vadd.f32 0.0, %v2487
    %v2489 = vpop.f32.mrb[0].mxu0
    %v2490 = vadd.f32 0.0, %v2489
    %v2491 = vpop.f32.mrb[0].mxu0
    %v2492 = vadd.f32 0.0, %v2491
    %2493 = vmatprep.mubr.bf16.mxu0 %v1095
    %2494 = vmatmul.mubr.bf16.gmra.mrb[0].mxu0 %v1094
    %v2495 = vpop.f32.mrb[0].mxu0
    %v2496 = vadd.f32 0.0, %v2495
    %v2497 = vpop.f32.mrb[0].mxu0
    %v2498 = vadd.f32 0.0, %v2497
    %v2499 = vpop.f32.mrb[0].mxu0
    %v2500 = vadd.f32 0.0, %v2499
    %v2501 = vpop.f32.mrb[0].mxu0
    %v2502 = vadd.f32 0.0, %v2501
    %2503 = vdwg.mxu0
    %2504 = vmatprep.subr.bf16.mxu0 %v1935
    %2505 = vmatpush1.bf16.msra.mxu0 %v1934
    %2506 = vmatprep.subr.bf16.mxu0 %v1939
    %2507 = vmatpush1.bf16.msra.mxu0 %v1938
    %2508 = vmatprep.subr.bf16.mxu0 %v1943
    %2509 = vmatpush1.bf16.msra.mxu0 %v1942
    %2510 = vmatprep.subr.bf16.mxu0 %v1947
    %2511 = vmatpush1.bf16.msra.mxu0 %v1946
    %2512 = vmatprep.subr.bf16.mxu0 %v1951
    %2513 = vmatpush1.bf16.msra.mxu0 %v1950
    %2514 = vmatprep.subr.bf16.mxu0 %v1955
    %2515 = vmatpush1.bf16.msra.mxu0 %v1954
    %2516 = vmatprep.subr.bf16.mxu0 %v1959
    %2517 = vmatpush1.bf16.msra.mxu0 %v1958
    %2518 = vmatprep.subr.bf16.mxu0 %v1963
    %2519 = vmatpush1.bf16.msra.mxu0 %v1962
    %2520 = vmatprep.subr.bf16.mxu0 %v1967
    %2521 = vmatpush1.bf16.msra.mxu0 %v1966
    %2522 = vmatprep.subr.bf16.mxu0 %v1971
    %2523 = vmatpush1.bf16.msra.mxu0 %v1970
    %2524 = vmatprep.subr.bf16.mxu0 %v1975
    %2525 = vmatpush1.bf16.msra.mxu0 %v1974
    %2526 = vmatprep.subr.bf16.mxu0 %v1979
    %2527 = vmatpush1.bf16.msra.mxu0 %v1978
    %2528 = vmatprep.subr.bf16.mxu0 %v1983
    %2529 = vmatpush1.bf16.msra.mxu0 %v1982
    %2530 = vmatprep.subr.bf16.mxu0 %v1987
    %2531 = vmatpush1.bf16.msra.mxu0 %v1986
    %2532 = vmatprep.subr.bf16.mxu0 %v1991
    %2533 = vmatpush1.bf16.msra.mxu0 %v1990
    %2534 = vmatprep.subr.bf16.mxu0 %v1995
    %2535 = vmatpush1.bf16.msra.mxu0 %v1994
    %2536 = vmatprep.mubr.bf16.mxu0 %v1089
    %2537 = vmatmul.mubr.bf16.gmra.mrb[0].mxu0 %v1088
    %v2538 = vpop.f32.mrb[0].mxu0
    %v2539 = vadd.f32 %v2476, %v2538
    %v2540 = vpop.f32.mrb[0].mxu0
    %v2541 = vadd.f32 %v2478, %v2540
    %v2542 = vpop.f32.mrb[0].mxu0
    %v2543 = vadd.f32 %v2480, %v2542
    %v2544 = vpop.f32.mrb[0].mxu0
    %v2545 = vadd.f32 %v2482, %v2544
    %2546 = vmatprep.mubr.bf16.mxu0 %v1093
    %2547 = vmatmul.mubr.bf16.gmra.mrb[0].mxu0 %v1092
    %v2548 = vpop.f32.mrb[0].mxu0
    %v2549 = vadd.f32 %v2486, %v2548
    %v2550 = vpop.f32.mrb[0].mxu0
    %v2551 = vadd.f32 %v2488, %v2550
    %v2552 = vpop.f32.mrb[0].mxu0
    %v2553 = vadd.f32 %v2490, %v2552
    %v2554 = vpop.f32.mrb[0].mxu0
    %v2555 = vadd.f32 %v2492, %v2554
    %2556 = vmatprep.mubr.bf16.mxu0 %v1097
    %2557 = vmatmul.mubr.bf16.gmra.mrb[0].mxu0 %v1096
    %v2558 = vpop.f32.mrb[0].mxu0
    %v2559 = vadd.f32 %v2496, %v2558
    %v2560 = vpop.f32.mrb[0].mxu0
    %v2561 = vadd.f32 %v2498, %v2560
    %v2562 = vpop.f32.mrb[0].mxu0
    %v2563 = vadd.f32 %v2500, %v2562
    %v2564 = vpop.f32.mrb[0].mxu0
    %v2565 = vadd.f32 %v2502, %v2564
    %2566 = vdwg.mxu0
    %2567 = vmatprep.subr.bf16.mxu0 %v1999
    %2568 = vmatpush1.bf16.msra.mxu0 %v1998
    %2569 = vmatprep.subr.bf16.mxu0 %v2003
    %2570 = vmatpush1.bf16.msra.mxu0 %v2002
    %2571 = vmatprep.subr.bf16.mxu0 %v2007
    %2572 = vmatpush1.bf16.msra.mxu0 %v2006
    %2573 = vmatprep.subr.bf16.mxu0 %v2011
    %2574 = vmatpush1.bf16.msra.mxu0 %v2010
    %2575 = vmatprep.subr.bf16.mxu0 %v2015
    %2576 = vmatpush1.bf16.msra.mxu0 %v2014
    %2577 = vmatprep.subr.bf16.mxu0 %v2019
    %2578 = vmatpush1.bf16.msra.mxu0 %v2018
    %2579 = vmatprep.subr.bf16.mxu0 %v2023
    %2580 = vmatpush1.bf16.msra.mxu0 %v2022
    %2581 = vmatprep.subr.bf16.mxu0 %v2027
    %2582 = vmatpush1.bf16.msra.mxu0 %v2026
    %2583 = vmatprep.subr.bf16.mxu0 %v2031
    %2584 = vmatpush1.bf16.msra.mxu0 %v2030
    %2585 = vmatprep.subr.bf16.mxu0 %v2035
    %2586 = vmatpush1.bf16.msra.mxu0 %v2034
    %2587 = vmatprep.subr.bf16.mxu0 %v2039
    %2588 = vmatpush1.bf16.msra.mxu0 %v2038
    %2589 = vmatprep.subr.bf16.mxu0 %v2043
    %2590 = vmatpush1.bf16.msra.mxu0 %v2042
    %2591 = vmatprep.subr.bf16.mxu0 %v2047
    %2592 = vmatpush1.bf16.msra.mxu0 %v2046
    %2593 = vmatprep.subr.bf16.mxu0 %v2051
    %2594 = vmatpush1.bf16.msra.mxu0 %v2050
    %2595 = vmatprep.subr.bf16.mxu0 %v2055
    %2596 = vmatpush1.bf16.msra.mxu0 %v2054
    %2597 = vmatprep.subr.bf16.mxu0 %v2059
    %2598 = vmatpush1.bf16.msra.mxu0 %v2058
    %2599 = vmatprep.mubr.bf16.mxu0 %v1091
    %2600 = vmatmul.mubr.bf16.gmra.mrb[0].mxu0 %v1090
    %v2601 = vpop.f32.mrb[0].mxu0
    %v2602 = vadd.f32 %v2539, %v2601
    %v2603 = vpop.f32.mrb[0].mxu0
    %v2604 = vadd.f32 %v2541, %v2603
    %v2605 = vpop.f32.mrb[0].mxu0
    %v2606 = vadd.f32 %v2543, %v2605
    %v2607 = vpop.f32.mrb[0].mxu0
    %v2608 = vadd.f32 %v2545, %v2607
    %2609 = vmatprep.mubr.bf16.mxu0 %v1095
    %2610 = vmatmul.mubr.bf16.gmra.mrb[0].mxu0 %v1094
    %v2611 = vpop.f32.mrb[0].mxu0
    %v2612 = vadd.f32 %v2549, %v2611
    %v2613 = vpop.f32.mrb[0].mxu0
    %v2614 = vadd.f32 %v2551, %v2613
    %v2615 = vpop.f32.mrb[0].mxu0
    %v2616 = vadd.f32 %v2553, %v2615
    %v2617 = vpop.f32.mrb[0].mxu0
    %v2618 = vadd.f32 %v2555, %v2617
    %2619 = vmatprep.mubr.bf16.mxu0 %v1099
    %2620 = vmatmul.mubr.bf16.gmra.mrb[0].mxu0 %v1098
    %v2621 = vpop.f32.mrb[0].mxu0
    %v2622 = vadd.f32 %v2559, %v2621
    %v2623 = vpop.f32.mrb[0].mxu0
    %v2624 = vadd.f32 %v2561, %v2623
    %v2625 = vpop.f32.mrb[0].mxu0
    %v2626 = vadd.f32 %v2563, %v2625
    %v2627 = vpop.f32.mrb[0].mxu0
    %v2628 = vadd.f32 %v2565, %v2627
    %2629 = vdwg.mxu0
    %v2630 = vmax.f32 %v2413, %v2602
    %v2631 = vmax.f32 %v2415, %v2604
    %v2632 = vmax.f32 %v2417, %v2606
    %v2633 = vmax.f32 %v2419, %v2608
    %v2634 = vmax.f32 %v2423, %v2612
    %v2635 = vmax.f32 %v2425, %v2614
    %v2636 = vmax.f32 %v2427, %v2616
    %v2637 = vmax.f32 %v2429, %v2618
    %v2638 = vmax.f32 %v2433, %v2622
    %v2639 = vmax.f32 %v2435, %v2624
    %v2640 = vmax.f32 %v2437, %v2626
    %v2641 = vmax.f32 %v2439, %v2628
    %v2642 = vmax.f32 %v2630, %v2632
    %v2643 = vmax.f32 %v2631, %v2633
    %v2644 = vld [vmem:[%s3] sm:$0x3]
    %v2646 = vlaneseq
    %v2647 = vshrl.u32 %v2646, 7
    %v2648 = vsub.s32 0, %v2647
    %v2649 = vrot.slane %v2644, %v2648
    %v2650 = vlaneseq
    %v2651 = vshrl.u32 %v2650, 7
    %v2652 = vsub.s32 1, %v2651
    %v2653 = vrot.slane %v2644, %v2652
    %v2656 = vadd.f32 %v2642, %v2649
    %v2657 = vadd.f32 %v2643, %v2653
    %v2658 = vmax.f32 %v2656, 0.0
    %v2659 = vmax.f32 %v2657, 0.0
    %v2660 = vpack.c.bf16 %v2658, %v2658
    %v2661 = vpack.c.bf16 %v2659, %v2659
    %v2662 = vld [vmem:[#allocation8] sm:$0xff]
    %v2663 = vld [vmem:[#allocation8 + $0x8] sm:$0xff]
    %v2664 = vld [vmem:[#allocation8 + $0x10] sm:$0xff]
    %v2665 = vld [vmem:[#allocation8 + $0x18] sm:$0xff]
    %v2666 = vld [vmem:[#allocation8 + $0x20] sm:$0xff]
    %v2667 = vld [vmem:[#allocation8 + $0x28] sm:$0xff]
    %v2668 = vld [vmem:[#allocation8 + $0x30] sm:$0xff]
    %v2669 = vld [vmem:[#allocation8 + $0x38] sm:$0xff]
    %v2670 = vld [vmem:[#allocation8 + $0x40] sm:$0xff]
    %v2671 = vld [vmem:[#allocation8 + $0x48] sm:$0xff]
    %v2672 = vld [vmem:[#allocation8 + $0x50] sm:$0xff]
    %v2673 = vld [vmem:[#allocation8 + $0x58] sm:$0xff]
    %v2674 = vld [vmem:[#allocation8 + $0x60] sm:$0xff]
    %v2675 = vld [vmem:[#allocation8 + $0x68] sm:$0xff]
    %v2676 = vld [vmem:[#allocation8 + $0x70] sm:$0xff]
    %v2677 = vld [vmem:[#allocation8 + $0x78] sm:$0xff]
    %v2678 = vld [vmem:[#allocation8 + $0x80] sm:$0xff]
    %v2679 = vld [vmem:[#allocation8 + $0x88] sm:$0xff]
    %v2680 = vld [vmem:[#allocation8 + $0x90] sm:$0xff]
    %v2681 = vld [vmem:[#allocation8 + $0x98] sm:$0xff]
    %v2682 = vld [vmem:[#allocation8 + $0xa0] sm:$0xff]
    %v2683 = vld [vmem:[#allocation8 + $0xa8] sm:$0xff]
    %v2684 = vld [vmem:[#allocation8 + $0xb0] sm:$0xff]
    %v2685 = vld [vmem:[#allocation8 + $0xb8] sm:$0xff]
    %v2686 = vld [vmem:[#allocation8 + $0xc0] sm:$0xff]
    %v2687 = vld [vmem:[#allocation8 + $0xc8] sm:$0xff]
    %v2688 = vld [vmem:[#allocation8 + $0xd0] sm:$0xff]
    %v2689 = vld [vmem:[#allocation8 + $0xd8] sm:$0xff]
    %v2690 = vld [vmem:[#allocation8 + $0xe0] sm:$0xff]
    %v2691 = vld [vmem:[#allocation8 + $0xe8] sm:$0xff]
    %v2692 = vld [vmem:[#allocation8 + $0xf0] sm:$0xff]
    %v2693 = vld [vmem:[#allocation8 + $0xf8] sm:$0xff]
    %v2694 = vmax.f32 %v2634, %v2636
    %v2695 = vmax.f32 %v2635, %v2637
    %v2696 = vadd.f32 %v2694, %v2649
    %v2697 = vadd.f32 %v2695, %v2653
    %v2698 = vmax.f32 %v2696, 0.0
    %v2699 = vmax.f32 %v2697, 0.0
    %v2700 = vpack.c.bf16 %v2698, %v2698
    %v2701 = vpack.c.bf16 %v2699, %v2699
    %s2702 = scalar_lea.vmem [#allocation8], 256
    %v2703 = vld [vmem:[%s2702] sm:$0xff]
    %v2704 = vld [vmem:[%s2702 + $0x8] sm:$0xff]
    %v2705 = vld [vmem:[%s2702 + $0x10] sm:$0xff]
    %v2706 = vld [vmem:[%s2702 + $0x18] sm:$0xff]
    %v2707 = vld [vmem:[%s2702 + $0x20] sm:$0xff]
    %v2708 = vld [vmem:[%s2702 + $0x28] sm:$0xff]
    %v2709 = vld [vmem:[%s2702 + $0x30] sm:$0xff]
    %v2710 = vld [vmem:[%s2702 + $0x38] sm:$0xff]
    %v2711 = vld [vmem:[%s2702 + $0x40] sm:$0xff]
    %v2712 = vld [vmem:[%s2702 + $0x48] sm:$0xff]
    %v2713 = vld [vmem:[%s2702 + $0x50] sm:$0xff]
    %v2714 = vld [vmem:[%s2702 + $0x58] sm:$0xff]
    %v2715 = vld [vmem:[%s2702 + $0x60] sm:$0xff]
    %v2716 = vld [vmem:[%s2702 + $0x68] sm:$0xff]
    %v2717 = vld [vmem:[%s2702 + $0x70] sm:$0xff]
    %v2718 = vld [vmem:[%s2702 + $0x78] sm:$0xff]
    %v2719 = vld [vmem:[%s2702 + $0x80] sm:$0xff]
    %v2720 = vld [vmem:[%s2702 + $0x88] sm:$0xff]
    %v2721 = vld [vmem:[%s2702 + $0x90] sm:$0xff]
    %v2722 = vld [vmem:[%s2702 + $0x98] sm:$0xff]
    %v2723 = vld [vmem:[%s2702 + $0xa0] sm:$0xff]
    %v2724 = vld [vmem:[%s2702 + $0xa8] sm:$0xff]
    %v2725 = vld [vmem:[%s2702 + $0xb0] sm:$0xff]
    %v2726 = vld [vmem:[%s2702 + $0xb8] sm:$0xff]
    %v2727 = vld [vmem:[%s2702 + $0xc0] sm:$0xff]
    %v2728 = vld [vmem:[%s2702 + $0xc8] sm:$0xff]
    %v2729 = vld [vmem:[%s2702 + $0xd0] sm:$0xff]
    %v2730 = vld [vmem:[%s2702 + $0xd8] sm:$0xff]
    %v2731 = vld [vmem:[%s2702 + $0xe0] sm:$0xff]
    %v2732 = vld [vmem:[%s2702 + $0xe8] sm:$0xff]
    %v2733 = vld [vmem:[%s2702 + $0xf0] sm:$0xff]
    %v2734 = vld [vmem:[%s2702 + $0xf8] sm:$0xff]
    %v2767 = vunpack.c.l.b16 %v2703
    %v2768 = vunpack.c.h.b16 %v2703
    %v2769 = vunpack.c.l.b16 %v2704
    %v2770 = vunpack.c.h.b16 %v2704
    %v2771 = vunpack.c.l.b16 %v2705
    %v2772 = vunpack.c.h.b16 %v2705
    %v2773 = vunpack.c.l.b16 %v2706
    %v2774 = vunpack.c.h.b16 %v2706
    %v2775 = vunpack.c.l.b16 %v2707
    %v2776 = vunpack.c.h.b16 %v2707
    %v2777 = vunpack.c.l.b16 %v2708
    %v2778 = vunpack.c.h.b16 %v2708
    %v2779 = vunpack.c.l.b16 %v2709
    %v2780 = vunpack.c.h.b16 %v2709
    %v2781 = vunpack.c.l.b16 %v2710
    %v2782 = vunpack.c.h.b16 %v2710
    %v2783 = vunpack.c.l.b16 %v2711
    %v2784 = vunpack.c.h.b16 %v2711
    %v2785 = vunpack.c.l.b16 %v2712
    %v2786 = vunpack.c.h.b16 %v2712
    %v2787 = vunpack.c.l.b16 %v2713
    %v2788 = vunpack.c.h.b16 %v2713
    %v2789 = vunpack.c.l.b16 %v2714
    %v2790 = vunpack.c.h.b16 %v2714
    %v2791 = vunpack.c.l.b16 %v2715
    %v2792 = vunpack.c.h.b16 %v2715
    %v2793 = vunpack.c.l.b16 %v2716
    %v2794 = vunpack.c.h.b16 %v2716
    %v2795 = vunpack.c.l.b16 %v2717
    %v2796 = vunpack.c.h.b16 %v2717
    %v2797 = vunpack.c.l.b16 %v2718
    %v2798 = vunpack.c.h.b16 %v2718
    %v2799 = vunpack.c.l.b16 %v2719
    %v2800 = vunpack.c.h.b16 %v2719
    %v2801 = vunpack.c.l.b16 %v2720
    %v2802 = vunpack.c.h.b16 %v2720
    %v2803 = vunpack.c.l.b16 %v2721
    %v2804 = vunpack.c.h.b16 %v2721
    %v2805 = vunpack.c.l.b16 %v2722
    %v2806 = vunpack.c.h.b16 %v2722
    %v2807 = vunpack.c.l.b16 %v2723
    %v2808 = vunpack.c.h.b16 %v2723
    %v2809 = vunpack.c.l.b16 %v2724
    %v2810 = vunpack.c.h.b16 %v2724
    %v2811 = vunpack.c.l.b16 %v2725
    %v2812 = vunpack.c.h.b16 %v2725
    %v2813 = vunpack.c.l.b16 %v2726
    %v2814 = vunpack.c.h.b16 %v2726
    %v2815 = vunpack.c.l.b16 %v2727
    %v2816 = vunpack.c.h.b16 %v2727
    %v2817 = vunpack.c.l.b16 %v2728
    %v2818 = vunpack.c.h.b16 %v2728
    %v2819 = vunpack.c.l.b16 %v2729
    %v2820 = vunpack.c.h.b16 %v2729
    %v2821 = vunpack.c.l.b16 %v2730
    %v2822 = vunpack.c.h.b16 %v2730
    %v2823 = vunpack.c.l.b16 %v2731
    %v2824 = vunpack.c.h.b16 %v2731
    %v2825 = vunpack.c.l.b16 %v2732
    %v2826 = vunpack.c.h.b16 %v2732
    %v2827 = vunpack.c.l.b16 %v2733
    %v2828 = vunpack.c.h.b16 %v2733
    %v2829 = vunpack.c.l.b16 %v2734
    %v2830 = vunpack.c.h.b16 %v2734
    %v2831 = vpack.c.b16 %v2769, %v2767
    %v2832 = vpack.c.b16 %v2770, %v2768
    %v2833 = vpack.c.b16 %v2773, %v2771
    %v2834 = vpack.c.b16 %v2774, %v2772
    %v2835 = vpack.c.b16 %v2777, %v2775
    %v2836 = vpack.c.b16 %v2778, %v2776
    %v2837 = vpack.c.b16 %v2781, %v2779
    %v2838 = vpack.c.b16 %v2782, %v2780
    %v2839 = vpack.c.b16 %v2785, %v2783
    %v2840 = vpack.c.b16 %v2786, %v2784
    %v2841 = vpack.c.b16 %v2789, %v2787
    %v2842 = vpack.c.b16 %v2790, %v2788
    %v2843 = vpack.c.b16 %v2793, %v2791
    %v2844 = vpack.c.b16 %v2794, %v2792
    %v2845 = vpack.c.b16 %v2797, %v2795
    %v2846 = vpack.c.b16 %v2798, %v2796
    %v2847 = vpack.c.b16 %v2801, %v2799
    %v2848 = vpack.c.b16 %v2802, %v2800
    %v2849 = vpack.c.b16 %v2805, %v2803
    %v2850 = vpack.c.b16 %v2806, %v2804
    %v2851 = vpack.c.b16 %v2809, %v2807
    %v2852 = vpack.c.b16 %v2810, %v2808
    %v2853 = vpack.c.b16 %v2813, %v2811
    %v2854 = vpack.c.b16 %v2814, %v2812
    %v2855 = vpack.c.b16 %v2817, %v2815
    %v2856 = vpack.c.b16 %v2818, %v2816
    %v2857 = vpack.c.b16 %v2821, %v2819
    %v2858 = vpack.c.b16 %v2822, %v2820
    %v2859 = vpack.c.b16 %v2825, %v2823
    %v2860 = vpack.c.b16 %v2826, %v2824
    %v2861 = vpack.c.b16 %v2829, %v2827
    %v2862 = vpack.c.b16 %v2830, %v2828
    %2895 = vmatprep.subr.bf16.mxu0 %v2832
    %2896 = vmatpush1.bf16.msra.mxu0 %v2831
    %2897 = vmatprep.subr.bf16.mxu0 %v2834
    %2898 = vmatpush1.bf16.msra.mxu0 %v2833
    %2899 = vmatprep.subr.bf16.mxu0 %v2836
    %2900 = vmatpush1.bf16.msra.mxu0 %v2835
    %2901 = vmatprep.subr.bf16.mxu0 %v2838
    %2902 = vmatpush1.bf16.msra.mxu0 %v2837
    %2903 = vmatprep.subr.bf16.mxu0 %v2840
    %2904 = vmatpush1.bf16.msra.mxu0 %v2839
    %2905 = vmatprep.subr.bf16.mxu0 %v2842
    %2906 = vmatpush1.bf16.msra.mxu0 %v2841
    %2907 = vmatprep.subr.bf16.mxu0 %v2844
    %2908 = vmatpush1.bf16.msra.mxu0 %v2843
    %2909 = vmatprep.subr.bf16.mxu0 %v2846
    %2910 = vmatpush1.bf16.msra.mxu0 %v2845
    %2911 = vmatprep.subr.bf16.mxu0 %v2848
    %2912 = vmatpush1.bf16.msra.mxu0 %v2847
    %2913 = vmatprep.subr.bf16.mxu0 %v2850
    %2914 = vmatpush1.bf16.msra.mxu0 %v2849
    %2915 = vmatprep.subr.bf16.mxu0 %v2852
    %2916 = vmatpush1.bf16.msra.mxu0 %v2851
    %2917 = vmatprep.subr.bf16.mxu0 %v2854
    %2918 = vmatpush1.bf16.msra.mxu0 %v2853
    %2919 = vmatprep.subr.bf16.mxu0 %v2856
    %2920 = vmatpush1.bf16.msra.mxu0 %v2855
    %2921 = vmatprep.subr.bf16.mxu0 %v2858
    %2922 = vmatpush1.bf16.msra.mxu0 %v2857
    %2923 = vmatprep.subr.bf16.mxu0 %v2860
    %2924 = vmatpush1.bf16.msra.mxu0 %v2859
    %2925 = vmatprep.subr.bf16.mxu0 %v2862
    %2926 = vmatpush1.bf16.msra.mxu0 %v2861
    %2927 = vmatprep.mubr.bf16.mxu0 %v2701
    %2928 = vmatmul.mubr.bf16.gmra.mrb[0].mxu0 %v2700
    %v2929 = vpop.f32.mrb[0].mxu0
    %v2930 = vadd.f32 0.0, %v2929
    %v2931 = vpop.f32.mrb[0].mxu0
    %v2932 = vadd.f32 0.0, %v2931
    %v2933 = vpop.f32.mrb[0].mxu0
    %v2934 = vpop.f32.mrb[0].mxu0
    %2935 = vdwg.mxu0
    %v2968 = vunpack.c.l.b16 %v2662
    %v2969 = vunpack.c.h.b16 %v2662
    %v2970 = vunpack.c.l.b16 %v2663
    %v2971 = vunpack.c.h.b16 %v2663
    %v2972 = vunpack.c.l.b16 %v2664
    %v2973 = vunpack.c.h.b16 %v2664
    %v2974 = vunpack.c.l.b16 %v2665
    %v2975 = vunpack.c.h.b16 %v2665
    %v2976 = vunpack.c.l.b16 %v2666
    %v2977 = vunpack.c.h.b16 %v2666
    %v2978 = vunpack.c.l.b16 %v2667
    %v2979 = vunpack.c.h.b16 %v2667
    %v2980 = vunpack.c.l.b16 %v2668
    %v2981 = vunpack.c.h.b16 %v2668
    %v2982 = vunpack.c.l.b16 %v2669
    %v2983 = vunpack.c.h.b16 %v2669
    %v2984 = vunpack.c.l.b16 %v2670
    %v2985 = vunpack.c.h.b16 %v2670
    %v2986 = vunpack.c.l.b16 %v2671
    %v2987 = vunpack.c.h.b16 %v2671
    %v2988 = vunpack.c.l.b16 %v2672
    %v2989 = vunpack.c.h.b16 %v2672
    %v2990 = vunpack.c.l.b16 %v2673
    %v2991 = vunpack.c.h.b16 %v2673
    %v2992 = vunpack.c.l.b16 %v2674
    %v2993 = vunpack.c.h.b16 %v2674
    %v2994 = vunpack.c.l.b16 %v2675
    %v2995 = vunpack.c.h.b16 %v2675
    %v2996 = vunpack.c.l.b16 %v2676
    %v2997 = vunpack.c.h.b16 %v2676
    %v2998 = vunpack.c.l.b16 %v2677
    %v2999 = vunpack.c.h.b16 %v2677
    %v3000 = vunpack.c.l.b16 %v2678
    %v3001 = vunpack.c.h.b16 %v2678
    %v3002 = vunpack.c.l.b16 %v2679
    %v3003 = vunpack.c.h.b16 %v2679
    %v3004 = vunpack.c.l.b16 %v2680
    %v3005 = vunpack.c.h.b16 %v2680
    %v3006 = vunpack.c.l.b16 %v2681
    %v3007 = vunpack.c.h.b16 %v2681
    %v3008 = vunpack.c.l.b16 %v2682
    %v3009 = vunpack.c.h.b16 %v2682
    %v3010 = vunpack.c.l.b16 %v2683
    %v3011 = vunpack.c.h.b16 %v2683
    %v3012 = vunpack.c.l.b16 %v2684
    %v3013 = vunpack.c.h.b16 %v2684
    %v3014 = vunpack.c.l.b16 %v2685
    %v3015 = vunpack.c.h.b16 %v2685
    %v3016 = vunpack.c.l.b16 %v2686
    %v3017 = vunpack.c.h.b16 %v2686
    %v3018 = vunpack.c.l.b16 %v2687
    %v3019 = vunpack.c.h.b16 %v2687
    %v3020 = vunpack.c.l.b16 %v2688
    %v3021 = vunpack.c.h.b16 %v2688
    %v3022 = vunpack.c.l.b16 %v2689
    %v3023 = vunpack.c.h.b16 %v2689
    %v3024 = vunpack.c.l.b16 %v2690
    %v3025 = vunpack.c.h.b16 %v2690
    %v3026 = vunpack.c.l.b16 %v2691
    %v3027 = vunpack.c.h.b16 %v2691
    %v3028 = vunpack.c.l.b16 %v2692
    %v3029 = vunpack.c.h.b16 %v2692
    %v3030 = vunpack.c.l.b16 %v2693
    %v3031 = vunpack.c.h.b16 %v2693
    %v3032 = vpack.c.b16 %v2970, %v2968
    %v3033 = vpack.c.b16 %v2971, %v2969
    %v3034 = vpack.c.b16 %v2974, %v2972
    %v3035 = vpack.c.b16 %v2975, %v2973
    %v3036 = vpack.c.b16 %v2978, %v2976
    %v3037 = vpack.c.b16 %v2979, %v2977
    %v3038 = vpack.c.b16 %v2982, %v2980
    %v3039 = vpack.c.b16 %v2983, %v2981
    %v3040 = vpack.c.b16 %v2986, %v2984
    %v3041 = vpack.c.b16 %v2987, %v2985
    %v3042 = vpack.c.b16 %v2990, %v2988
    %v3043 = vpack.c.b16 %v2991, %v2989
    %v3044 = vpack.c.b16 %v2994, %v2992
    %v3045 = vpack.c.b16 %v2995, %v2993
    %v3046 = vpack.c.b16 %v2998, %v2996
    %v3047 = vpack.c.b16 %v2999, %v2997
    %v3048 = vpack.c.b16 %v3002, %v3000
    %v3049 = vpack.c.b16 %v3003, %v3001
    %v3050 = vpack.c.b16 %v3006, %v3004
    %v3051 = vpack.c.b16 %v3007, %v3005
    %v3052 = vpack.c.b16 %v3010, %v3008
    %v3053 = vpack.c.b16 %v3011, %v3009
    %v3054 = vpack.c.b16 %v3014, %v3012
    %v3055 = vpack.c.b16 %v3015, %v3013
    %v3056 = vpack.c.b16 %v3018, %v3016
    %v3057 = vpack.c.b16 %v3019, %v3017
    %v3058 = vpack.c.b16 %v3022, %v3020
    %v3059 = vpack.c.b16 %v3023, %v3021
    %v3060 = vpack.c.b16 %v3026, %v3024
    %v3061 = vpack.c.b16 %v3027, %v3025
    %v3062 = vpack.c.b16 %v3030, %v3028
    %v3063 = vpack.c.b16 %v3031, %v3029
    %3096 = vmatprep.subr.bf16.mxu0 %v3033
    %3097 = vmatpush1.bf16.msra.mxu0 %v3032
    %3098 = vmatprep.subr.bf16.mxu0 %v3035
    %3099 = vmatpush1.bf16.msra.mxu0 %v3034
    %3100 = vmatprep.subr.bf16.mxu0 %v3037
    %3101 = vmatpush1.bf16.msra.mxu0 %v3036
    %3102 = vmatprep.subr.bf16.mxu0 %v3039
    %3103 = vmatpush1.bf16.msra.mxu0 %v3038
    %3104 = vmatprep.subr.bf16.mxu0 %v3041
    %3105 = vmatpush1.bf16.msra.mxu0 %v3040
    %3106 = vmatprep.subr.bf16.mxu0 %v3043
    %3107 = vmatpush1.bf16.msra.mxu0 %v3042
    %3108 = vmatprep.subr.bf16.mxu0 %v3045
    %3109 = vmatpush1.bf16.msra.mxu0 %v3044
    %3110 = vmatprep.subr.bf16.mxu0 %v3047
    %3111 = vmatpush1.bf16.msra.mxu0 %v3046
    %3112 = vmatprep.subr.bf16.mxu0 %v3049
    %3113 = vmatpush1.bf16.msra.mxu0 %v3048
    %3114 = vmatprep.subr.bf16.mxu0 %v3051
    %3115 = vmatpush1.bf16.msra.mxu0 %v3050
    %3116 = vmatprep.subr.bf16.mxu0 %v3053
    %3117 = vmatpush1.bf16.msra.mxu0 %v3052
    %3118 = vmatprep.subr.bf16.mxu0 %v3055
    %3119 = vmatpush1.bf16.msra.mxu0 %v3054
    %3120 = vmatprep.subr.bf16.mxu0 %v3057
    %3121 = vmatpush1.bf16.msra.mxu0 %v3056
    %3122 = vmatprep.subr.bf16.mxu0 %v3059
    %3123 = vmatpush1.bf16.msra.mxu0 %v3058
    %3124 = vmatprep.subr.bf16.mxu0 %v3061
    %3125 = vmatpush1.bf16.msra.mxu0 %v3060
    %3126 = vmatprep.subr.bf16.mxu0 %v3063
    %3127 = vmatpush1.bf16.msra.mxu0 %v3062
    %3128 = vmatprep.mubr.bf16.mxu0 %v2661
    %3129 = vmatmul.mubr.bf16.gmra.mrb[0].mxu0 %v2660
    %v3130 = vpop.f32.mrb[0].mxu0
    %v3131 = vadd.f32 %v2930, %v3130
    %v3132 = vpop.f32.mrb[0].mxu0
    %v3133 = vadd.f32 %v2932, %v3132
    %v3134 = vpop.f32.mrb[0].mxu0
    %v3135 = vpop.f32.mrb[0].mxu0
    %3136 = vdwg.mxu0
    %v3137 = vmax.f32 %v2638, %v2640
    %v3138 = vmax.f32 %v2639, %v2641
    %v3139 = vadd.f32 %v3137, %v2649
    %v3140 = vadd.f32 %v3138, %v2653
    %v3141 = vmax.f32 %v3139, 0.0
    %v3142 = vmax.f32 %v3140, 0.0
    %v3143 = vpack.c.bf16 %v3141, %v3141
    %v3144 = vpack.c.bf16 %v3142, %v3142
    %s3145 = scalar_lea.vmem [#allocation8], 512
    %v3146 = vld [vmem:[%s3145] sm:$0xff]
    %v3147 = vld [vmem:[%s3145 + $0x8] sm:$0xff]
    %v3148 = vld [vmem:[%s3145 + $0x10] sm:$0xff]
    %v3149 = vld [vmem:[%s3145 + $0x18] sm:$0xff]
    %v3150 = vld [vmem:[%s3145 + $0x20] sm:$0xff]
    %v3151 = vld [vmem:[%s3145 + $0x28] sm:$0xff]
    %v3152 = vld [vmem:[%s3145 + $0x30] sm:$0xff]
    %v3153 = vld [vmem:[%s3145 + $0x38] sm:$0xff]
    %v3154 = vld [vmem:[%s3145 + $0x40] sm:$0xff]
    %v3155 = vld [vmem:[%s3145 + $0x48] sm:$0xff]
    %v3156 = vld [vmem:[%s3145 + $0x50] sm:$0xff]
    %v3157 = vld [vmem:[%s3145 + $0x58] sm:$0xff]
    %v3158 = vld [vmem:[%s3145 + $0x60] sm:$0xff]
    %v3159 = vld [vmem:[%s3145 + $0x68] sm:$0xff]
    %v3160 = vld [vmem:[%s3145 + $0x70] sm:$0xff]
    %v3161 = vld [vmem:[%s3145 + $0x78] sm:$0xff]
    %v3162 = vld [vmem:[%s3145 + $0x80] sm:$0xff]
    %v3163 = vld [vmem:[%s3145 + $0x88] sm:$0xff]
    %v3164 = vld [vmem:[%s3145 + $0x90] sm:$0xff]
    %v3165 = vld [vmem:[%s3145 + $0x98] sm:$0xff]
    %v3166 = vld [vmem:[%s3145 + $0xa0] sm:$0xff]
    %v3167 = vld [vmem:[%s3145 + $0xa8] sm:$0xff]
    %v3168 = vld [vmem:[%s3145 + $0xb0] sm:$0xff]
    %v3169 = vld [vmem:[%s3145 + $0xb8] sm:$0xff]
    %v3170 = vld [vmem:[%s3145 + $0xc0] sm:$0xff]
    %v3171 = vld [vmem:[%s3145 + $0xc8] sm:$0xff]
    %v3172 = vld [vmem:[%s3145 + $0xd0] sm:$0xff]
    %v3173 = vld [vmem:[%s3145 + $0xd8] sm:$0xff]
    %v3174 = vld [vmem:[%s3145 + $0xe0] sm:$0xff]
    %v3175 = vld [vmem:[%s3145 + $0xe8] sm:$0xff]
    %v3176 = vld [vmem:[%s3145 + $0xf0] sm:$0xff]
    %v3177 = vld [vmem:[%s3145 + $0xf8] sm:$0xff]
    %v3210 = vunpack.c.l.b16 %v3146
    %v3211 = vunpack.c.h.b16 %v3146
    %v3212 = vunpack.c.l.b16 %v3147
    %v3213 = vunpack.c.h.b16 %v3147
    %v3214 = vunpack.c.l.b16 %v3148
    %v3215 = vunpack.c.h.b16 %v3148
    %v3216 = vunpack.c.l.b16 %v3149
    %v3217 = vunpack.c.h.b16 %v3149
    %v3218 = vunpack.c.l.b16 %v3150
    %v3219 = vunpack.c.h.b16 %v3150
    %v3220 = vunpack.c.l.b16 %v3151
    %v3221 = vunpack.c.h.b16 %v3151
    %v3222 = vunpack.c.l.b16 %v3152
    %v3223 = vunpack.c.h.b16 %v3152
    %v3224 = vunpack.c.l.b16 %v3153
    %v3225 = vunpack.c.h.b16 %v3153
    %v3226 = vunpack.c.l.b16 %v3154
    %v3227 = vunpack.c.h.b16 %v3154
    %v3228 = vunpack.c.l.b16 %v3155
    %v3229 = vunpack.c.h.b16 %v3155
    %v3230 = vunpack.c.l.b16 %v3156
    %v3231 = vunpack.c.h.b16 %v3156
    %v3232 = vunpack.c.l.b16 %v3157
    %v3233 = vunpack.c.h.b16 %v3157
    %v3234 = vunpack.c.l.b16 %v3158
    %v3235 = vunpack.c.h.b16 %v3158
    %v3236 = vunpack.c.l.b16 %v3159
    %v3237 = vunpack.c.h.b16 %v3159
    %v3238 = vunpack.c.l.b16 %v3160
    %v3239 = vunpack.c.h.b16 %v3160
    %v3240 = vunpack.c.l.b16 %v3161
    %v3241 = vunpack.c.h.b16 %v3161
    %v3242 = vunpack.c.l.b16 %v3162
    %v3243 = vunpack.c.h.b16 %v3162
    %v3244 = vunpack.c.l.b16 %v3163
    %v3245 = vunpack.c.h.b16 %v3163
    %v3246 = vunpack.c.l.b16 %v3164
    %v3247 = vunpack.c.h.b16 %v3164
    %v3248 = vunpack.c.l.b16 %v3165
    %v3249 = vunpack.c.h.b16 %v3165
    %v3250 = vunpack.c.l.b16 %v3166
    %v3251 = vunpack.c.h.b16 %v3166
    %v3252 = vunpack.c.l.b16 %v3167
    %v3253 = vunpack.c.h.b16 %v3167
    %v3254 = vunpack.c.l.b16 %v3168
    %v3255 = vunpack.c.h.b16 %v3168
    %v3256 = vunpack.c.l.b16 %v3169
    %v3257 = vunpack.c.h.b16 %v3169
    %v3258 = vunpack.c.l.b16 %v3170
    %v3259 = vunpack.c.h.b16 %v3170
    %v3260 = vunpack.c.l.b16 %v3171
    %v3261 = vunpack.c.h.b16 %v3171
    %v3262 = vunpack.c.l.b16 %v3172
    %v3263 = vunpack.c.h.b16 %v3172
    %v3264 = vunpack.c.l.b16 %v3173
    %v3265 = vunpack.c.h.b16 %v3173
    %v3266 = vunpack.c.l.b16 %v3174
    %v3267 = vunpack.c.h.b16 %v3174
    %v3268 = vunpack.c.l.b16 %v3175
    %v3269 = vunpack.c.h.b16 %v3175
    %v3270 = vunpack.c.l.b16 %v3176
    %v3271 = vunpack.c.h.b16 %v3176
    %v3272 = vunpack.c.l.b16 %v3177
    %v3273 = vunpack.c.h.b16 %v3177
    %v3274 = vpack.c.b16 %v3212, %v3210
    %v3275 = vpack.c.b16 %v3213, %v3211
    %v3276 = vpack.c.b16 %v3216, %v3214
    %v3277 = vpack.c.b16 %v3217, %v3215
    %v3278 = vpack.c.b16 %v3220, %v3218
    %v3279 = vpack.c.b16 %v3221, %v3219
    %v3280 = vpack.c.b16 %v3224, %v3222
    %v3281 = vpack.c.b16 %v3225, %v3223
    %v3282 = vpack.c.b16 %v3228, %v3226
    %v3283 = vpack.c.b16 %v3229, %v3227
    %v3284 = vpack.c.b16 %v3232, %v3230
    %v3285 = vpack.c.b16 %v3233, %v3231
    %v3286 = vpack.c.b16 %v3236, %v3234
    %v3287 = vpack.c.b16 %v3237, %v3235
    %v3288 = vpack.c.b16 %v3240, %v3238
    %v3289 = vpack.c.b16 %v3241, %v3239
    %v3290 = vpack.c.b16 %v3244, %v3242
    %v3291 = vpack.c.b16 %v3245, %v3243
    %v3292 = vpack.c.b16 %v3248, %v3246
    %v3293 = vpack.c.b16 %v3249, %v3247
    %v3294 = vpack.c.b16 %v3252, %v3250
    %v3295 = vpack.c.b16 %v3253, %v3251
    %v3296 = vpack.c.b16 %v3256, %v3254
    %v3297 = vpack.c.b16 %v3257, %v3255
    %v3298 = vpack.c.b16 %v3260, %v3258
    %v3299 = vpack.c.b16 %v3261, %v3259
    %v3300 = vpack.c.b16 %v3264, %v3262
    %v3301 = vpack.c.b16 %v3265, %v3263
    %v3302 = vpack.c.b16 %v3268, %v3266
    %v3303 = vpack.c.b16 %v3269, %v3267
    %v3304 = vpack.c.b16 %v3272, %v3270
    %v3305 = vpack.c.b16 %v3273, %v3271
    %3338 = vmatprep.subr.bf16.mxu0 %v3275
    %3339 = vmatpush1.bf16.msra.mxu0 %v3274
    %3340 = vmatprep.subr.bf16.mxu0 %v3277
    %3341 = vmatpush1.bf16.msra.mxu0 %v3276
    %3342 = vmatprep.subr.bf16.mxu0 %v3279
    %3343 = vmatpush1.bf16.msra.mxu0 %v3278
    %3344 = vmatprep.subr.bf16.mxu0 %v3281
    %3345 = vmatpush1.bf16.msra.mxu0 %v3280
    %3346 = vmatprep.subr.bf16.mxu0 %v3283
    %3347 = vmatpush1.bf16.msra.mxu0 %v3282
    %3348 = vmatprep.subr.bf16.mxu0 %v3285
    %3349 = vmatpush1.bf16.msra.mxu0 %v3284
    %3350 = vmatprep.subr.bf16.mxu0 %v3287
    %3351 = vmatpush1.bf16.msra.mxu0 %v3286
    %3352 = vmatprep.subr.bf16.mxu0 %v3289
    %3353 = vmatpush1.bf16.msra.mxu0 %v3288
    %3354 = vmatprep.subr.bf16.mxu0 %v3291
    %3355 = vmatpush1.bf16.msra.mxu0 %v3290
    %3356 = vmatprep.subr.bf16.mxu0 %v3293
    %3357 = vmatpush1.bf16.msra.mxu0 %v3292
    %3358 = vmatprep.subr.bf16.mxu0 %v3295
    %3359 = vmatpush1.bf16.msra.mxu0 %v3294
    %3360 = vmatprep.subr.bf16.mxu0 %v3297
    %3361 = vmatpush1.bf16.msra.mxu0 %v3296
    %3362 = vmatprep.subr.bf16.mxu0 %v3299
    %3363 = vmatpush1.bf16.msra.mxu0 %v3298
    %3364 = vmatprep.subr.bf16.mxu0 %v3301
    %3365 = vmatpush1.bf16.msra.mxu0 %v3300
    %3366 = vmatprep.subr.bf16.mxu0 %v3303
    %3367 = vmatpush1.bf16.msra.mxu0 %v3302
    %3368 = vmatprep.subr.bf16.mxu0 %v3305
    %3369 = vmatpush1.bf16.msra.mxu0 %v3304
    %3370 = vmatprep.mubr.bf16.mxu0 %v3144
    %3371 = vmatmul.mubr.bf16.gmra.mrb[0].mxu0 %v3143
    %v3372 = vpop.f32.mrb[0].mxu0
    %v3373 = vadd.f32 0.0, %v3372
    %v3374 = vpop.f32.mrb[0].mxu0
    %v3375 = vadd.f32 0.0, %v3374
    %v3376 = vpop.f32.mrb[0].mxu0
    %v3377 = vpop.f32.mrb[0].mxu0
    %3378 = vdwg.mxu0
    %v3379 = vadd.f32 %v3131, %v3373
    %v3380 = vadd.f32 %v3133, %v3375
    %v3381 = vld [vmem:[%s5] sm:$0x3]
    %v3383 = vlaneseq
    %v3384 = vshrl.u32 %v3383, 7
    %v3385 = vsub.s32 0, %v3384
    %v3386 = vrot.slane %v3381, %v3385
    %v3387 = vlaneseq
    %v3388 = vshrl.u32 %v3387, 7
    %v3389 = vsub.s32 1, %v3388
    %v3390 = vrot.slane %v3381, %v3389
    %v3393 = vadd.f32 %v3379, %v3386
    %v3394 = vadd.f32 %v3380, %v3390
    %v3395 = vmax.f32 %v3393, 0.0
    %v3396 = vmax.f32 %v3394, 0.0
    %v3397 = vpack.c.bf16 %v3395, %v3395
    %v3398 = vpack.c.bf16 %v3396, %v3396
    %v3399 = vld [vmem:[#allocation10] sm:$0xf]
    %v3400 = vld [vmem:[#allocation10 + $0x4] sm:$0xf]
    %v3401 = vld [vmem:[#allocation10 + $0x8] sm:$0xf]
    %v3402 = vld [vmem:[#allocation10 + $0xc] sm:$0xf]
    %v3403 = vld [vmem:[#allocation10 + $0x10] sm:$0xf]
    %v3404 = vld [vmem:[#allocation10 + $0x14] sm:$0xf]
    %v3405 = vld [vmem:[#allocation10 + $0x18] sm:$0xf]
    %v3406 = vld [vmem:[#allocation10 + $0x1c] sm:$0xf]
    %v3407 = vld [vmem:[#allocation10 + $0x20] sm:$0xf]
    %v3408 = vld [vmem:[#allocation10 + $0x24] sm:$0xf]
    %v3409 = vld [vmem:[#allocation10 + $0x28] sm:$0xf]
    %v3410 = vld [vmem:[#allocation10 + $0x2c] sm:$0xf]
    %v3411 = vld [vmem:[#allocation10 + $0x30] sm:$0xf]
    %v3412 = vld [vmem:[#allocation10 + $0x34] sm:$0xf]
    %v3413 = vld [vmem:[#allocation10 + $0x38] sm:$0xf]
    %v3414 = vld [vmem:[#allocation10 + $0x3c] sm:$0xf]
    %v3415 = vld [vmem:[#allocation10 + $0x40] sm:$0xf]
    %v3416 = vld [vmem:[#allocation10 + $0x44] sm:$0xf]
    %v3417 = vld [vmem:[#allocation10 + $0x48] sm:$0xf]
    %v3418 = vld [vmem:[#allocation10 + $0x4c] sm:$0xf]
    %v3419 = vld [vmem:[#allocation10 + $0x50] sm:$0xf]
    %v3420 = vld [vmem:[#allocation10 + $0x54] sm:$0xf]
    %v3421 = vld [vmem:[#allocation10 + $0x58] sm:$0xf]
    %v3422 = vld [vmem:[#allocation10 + $0x5c] sm:$0xf]
    %v3423 = vld [vmem:[#allocation10 + $0x60] sm:$0xf]
    %v3424 = vld [vmem:[#allocation10 + $0x64] sm:$0xf]
    %v3425 = vld [vmem:[#allocation10 + $0x68] sm:$0xf]
    %v3426 = vld [vmem:[#allocation10 + $0x6c] sm:$0xf]
    %v3427 = vld [vmem:[#allocation10 + $0x70] sm:$0xf]
    %v3428 = vld [vmem:[#allocation10 + $0x74] sm:$0xf]
    %v3429 = vld [vmem:[#allocation10 + $0x78] sm:$0xf]
    %v3430 = vld [vmem:[#allocation10 + $0x7c] sm:$0xf]
    %v3431 = vld [vmem:[%s7] sm:$0x1]
    %v3433 = vlaneseq
    %v3434 = vshrl.u32 %v3433, 7
    %v3435 = vsub.s32 0, %v3434
    %v3436 = vrot.slane %v3431, %v3435
    %v3470 = vunpack.c.l.b16 %v3399
    %v3471 = vunpack.c.l.b16 %v3400
    %v3472 = vunpack.c.l.b16 %v3401
    %v3473 = vunpack.c.l.b16 %v3402
    %v3474 = vunpack.c.l.b16 %v3403
    %v3475 = vunpack.c.l.b16 %v3404
    %v3476 = vunpack.c.l.b16 %v3405
    %v3477 = vunpack.c.l.b16 %v3406
    %v3478 = vunpack.c.l.b16 %v3407
    %v3479 = vunpack.c.l.b16 %v3408
    %v3480 = vunpack.c.l.b16 %v3409
    %v3481 = vunpack.c.l.b16 %v3410
    %v3482 = vunpack.c.l.b16 %v3411
    %v3483 = vunpack.c.l.b16 %v3412
    %v3484 = vunpack.c.l.b16 %v3413
    %v3485 = vunpack.c.l.b16 %v3414
    %v3486 = vunpack.c.l.b16 %v3415
    %v3487 = vunpack.c.l.b16 %v3416
    %v3488 = vunpack.c.l.b16 %v3417
    %v3489 = vunpack.c.l.b16 %v3418
    %v3490 = vunpack.c.l.b16 %v3419
    %v3491 = vunpack.c.l.b16 %v3420
    %v3492 = vunpack.c.l.b16 %v3421
    %v3493 = vunpack.c.l.b16 %v3422
    %v3494 = vunpack.c.l.b16 %v3423
    %v3495 = vunpack.c.l.b16 %v3424
    %v3496 = vunpack.c.l.b16 %v3425
    %v3497 = vunpack.c.l.b16 %v3426
    %v3498 = vunpack.c.l.b16 %v3427
    %v3499 = vunpack.c.l.b16 %v3428
    %v3500 = vunpack.c.l.b16 %v3429
    %v3501 = vunpack.c.l.b16 %v3430
    %v3502 = vpack.c.b16 %v3471, %v3470
    %v3503 = vpack.c.b16 %v3473, %v3472
    %v3504 = vpack.c.b16 %v3475, %v3474
    %v3505 = vpack.c.b16 %v3477, %v3476
    %v3506 = vpack.c.b16 %v3479, %v3478
    %v3507 = vpack.c.b16 %v3481, %v3480
    %v3508 = vpack.c.b16 %v3483, %v3482
    %v3509 = vpack.c.b16 %v3485, %v3484
    %v3510 = vpack.c.b16 %v3487, %v3486
    %v3511 = vpack.c.b16 %v3489, %v3488
    %v3512 = vpack.c.b16 %v3491, %v3490
    %v3513 = vpack.c.b16 %v3493, %v3492
    %v3514 = vpack.c.b16 %v3495, %v3494
    %v3515 = vpack.c.b16 %v3497, %v3496
    %v3516 = vpack.c.b16 %v3499, %v3498
    %v3517 = vpack.c.b16 %v3501, %v3500
    %3534 = vmatprep.subr.bf16.mxu0 0
    %3535 = vmatpush1.bf16.msra.mxu0 %v3502
    %3536 = vmatprep.subr.bf16.mxu0 0
    %3537 = vmatpush1.bf16.msra.mxu0 %v3503
    %3538 = vmatprep.subr.bf16.mxu0 0
    %3539 = vmatpush1.bf16.msra.mxu0 %v3504
    %3540 = vmatprep.subr.bf16.mxu0 0
    %3541 = vmatpush1.bf16.msra.mxu0 %v3505
    %3542 = vmatprep.subr.bf16.mxu0 0
    %3543 = vmatpush1.bf16.msra.mxu0 %v3506
    %3544 = vmatprep.subr.bf16.mxu0 0
    %3545 = vmatpush1.bf16.msra.mxu0 %v3507
    %3546 = vmatprep.subr.bf16.mxu0 0
    %3547 = vmatpush1.bf16.msra.mxu0 %v3508
    %3548 = vmatprep.subr.bf16.mxu0 0
    %3549 = vmatpush1.bf16.msra.mxu0 %v3509
    %3550 = vmatprep.subr.bf16.mxu0 0
    %3551 = vmatpush1.bf16.msra.mxu0 %v3510
    %3552 = vmatprep.subr.bf16.mxu0 0
    %3553 = vmatpush1.bf16.msra.mxu0 %v3511
    %3554 = vmatprep.subr.bf16.mxu0 0
    %3555 = vmatpush1.bf16.msra.mxu0 %v3512
    %3556 = vmatprep.subr.bf16.mxu0 0
    %3557 = vmatpush1.bf16.msra.mxu0 %v3513
    %3558 = vmatprep.subr.bf16.mxu0 0
    %3559 = vmatpush1.bf16.msra.mxu0 %v3514
    %3560 = vmatprep.subr.bf16.mxu0 0
    %3561 = vmatpush1.bf16.msra.mxu0 %v3515
    %3562 = vmatprep.subr.bf16.mxu0 0
    %3563 = vmatpush1.bf16.msra.mxu0 %v3516
    %3564 = vmatprep.subr.bf16.mxu0 0
    %3565 = vmatpush1.bf16.msra.mxu0 %v3517
    %3566 = vmatprep.mubr.bf16.mxu0 %v3398
    %3567 = vmatmul.mubr.bf16.gmra.mrb[0].mxu0 %v3397
    %v3568 = vpop.f32.mrb[0].mxu0
    %v3569 = vadd.f32 %v3436, %v3568
    %v3570 = vpop.f32.mrb[0].mxu0
    %v3571 = vpop.f32.mrb[0].mxu0
    %v3572 = vpop.f32.mrb[0].mxu0
    %3573 = vdwg.mxu0
    %3574 = vst [vmem:[#allocation11] sm:$0xff] %v3569
    // Predicated region
    $region54: #{tpu_custom_call.1} parent=1 // pred_check
      _
    $region55: #{tpu_custom_call.1} parent=1 // pred_check_branch
      %3576 = sbr.rel (0) target = $region57
    $region56: #{tpu_custom_call.1} parent=1 // pred_region
      %s3578 = ssub.s32 128, 128
      %3579 = vsyncadd [#allocation4], %s3578
      %s3581 = sshll.u32 [#allocation11], 4
      %s3582 = int_to_ptr.vmem [resolvable:$true] %s3581
      %3584 = dma.vmem_to_hbm [thread:$0]  %s3582, 128, %s8, [#allocation4]
    $region57: #{tpu_custom_call.1} parent=1 // pred_fallthru
      _
    // Predicated region
    $region58: #{tpu_custom_call.1} parent=1 // pred_check
      _
    $region59: #{tpu_custom_call.1} parent=1 // pred_check_branch
      %3586 = sbr.rel (0) target = $region61
    $region60: #{tpu_custom_call.1} parent=1 // pred_region
      %3587 = dma.done [#allocation4], 128
    $region61: #{tpu_custom_call.1} parent=1 // pred_fallthru
      _
    %3588 = vsyncpa [#allocation3], 1
    %3589 = vsyncpa [#allocation6], 1
    %3590 = vsyncpa [#allocation9], 1
    %3591 = vsyncpa [#allocation4], 1

</llo_original>
